<compile_context>
chip_gen: v5e
topology: v5e:2x2
jax: 0.10.0
libtpu: 0.0.40
codegen_flags: <defaults>
</compile_context>

<pallas_src>
import jax
import jax.numpy as jnp
from jax.experimental import pallas as pl
from jax.experimental.pallas import tpu as pltpu


# ----------------------------------------------------------------------------
# Fused encoder kernel factory
# ----------------------------------------------------------------------------
def _make_encoder_kernel(n_layers, seq, Bp):
    """Fused kernel: n_layers x bidirectional LSTM + final Linear.

    Ref order: x2d, (wih, whh, b) x [fwd, bwd] x n_layers, fc_w, fc_b,
               logits_out, outf_sc, outb_sc, xpf_sc, xpb_sc
    """

    def kernel(*refs):
        x_ref = refs[0]                                    # (seq*Bp, E)
        nw = 6 * n_layers
        w_refs = refs[1:1 + nw]
        fcw_ref = refs[1 + nw]                             # (2H, O)
        fcb_ref = refs[2 + nw]                             # (1, O)
        o_ref = refs[3 + nw]                               # (Bp, O)
        outf_sc, outb_sc, xpf_sc, xpb_sc = refs[4 + nw:8 + nw]

        H = w_refs[1].shape[0]                             # whh is (H, 4H)

        def gates_to_hc(gates, c):
            # gates: (Bp, 4H), lane-aligned as a whole (4H == 128 here).
            i = jax.nn.sigmoid(gates[:, 0 * H:1 * H])
            f = jax.nn.sigmoid(gates[:, 1 * H:2 * H])
            g = jnp.tanh(gates[:, 2 * H:3 * H])
            o = jax.nn.sigmoid(gates[:, 3 * H:4 * H])
            c_new = f * c + i * g
            return o * jnp.tanh(c_new), c_new

        hf = hb = None
        for layer in range(n_layers):
            wih_f, whh_f, b_f, wih_b, whh_b, b_b = \
                w_refs[6 * layer:6 * layer + 6]

            # ---- hoisted input projection for ALL timesteps (bias folded in)
            if layer == 0:
                x2d = x_ref[...]                           # (seq*Bp, E)
                xpf_sc[...] = (jnp.dot(x2d, wih_f[...],
                                       preferred_element_type=jnp.float32)
                               + b_f[...])
                xpb_sc[...] = (jnp.dot(x2d, wih_b[...],
                                       preferred_element_type=jnp.float32)
                               + b_b[...])
            else:
                # Previous layer output, fwd/bwd halves kept separate; the
                # concat is folded into a row-split of wih (2H, 4H).
                of2d = outf_sc[...]                        # (seq*Bp, H)
                ob2d = outb_sc[...]                        # (seq*Bp, H)
                xpf_sc[...] = (jnp.dot(of2d, wih_f[0:H, :],
                                       preferred_element_type=jnp.float32)
                               + jnp.dot(ob2d, wih_f[H:2 * H, :],
                                         preferred_element_type=jnp.float32)
                               + b_f[...])
                xpb_sc[...] = (jnp.dot(of2d, wih_b[0:H, :],
                                       preferred_element_type=jnp.float32)
                               + jnp.dot(ob2d, wih_b[H:2 * H, :],
                                         preferred_element_type=jnp.float32)
                               + b_b[...])

            # ---- recurrence: both directions in one fully-unrolled time loop
            # (seq is small & static -> full unroll, static slice indices).
            write_out = layer < n_layers - 1   # last layer: only h_T is needed
            z = jnp.zeros((Bp, H), jnp.float32)
            hf, cf, hb, cb = z, z, z, z
            for t in range(seq):
                tb = seq - 1 - t               # in-kernel time reversal (bwd)
                xf = xpf_sc[pl.ds(t * Bp, Bp), :]
                xb = xpb_sc[pl.ds(tb * Bp, Bp), :]
                gf = xf + jnp.dot(hf, whh_f[...],
                                  preferred_element_type=jnp.float32)
                gb = xb + jnp.dot(hb, whh_b[...],
                                  preferred_element_type=jnp.float32)
                hf, cf = gates_to_hc(gf, cf)
                hb, cb = gates_to_hc(gb, cb)
                if write_out:
                    outf_sc[pl.ds(t * Bp, Bp), :] = hf
                    outb_sc[pl.ds(tb * Bp, Bp), :] = hb

        # ---- FC epilogue: logits = cat(h_fwd, h_bwd) @ fc_w + fc_b,
        # with the concat folded into a row-split matmul.
        o_ref[...] = (jnp.dot(hf, fcw_ref[0:H, :],
                              preferred_element_type=jnp.float32)
                      + jnp.dot(hb, fcw_ref[H:2 * H, :],
                                preferred_element_type=jnp.float32)
                      + fcb_ref[...]).astype(o_ref.dtype)

    return kernel


def _full_spec(shape):
    nd = len(shape)
    return pl.BlockSpec(shape, lambda *_: (0,) * nd)


# ----------------------------------------------------------------------------
# Encoder forward: embedding -> bidirectional multi-layer LSTM -> fc
# ----------------------------------------------------------------------------
@jax.jit
def encoder_forward(params, x_ids):
    n_layers = len(params["lstm"])
    H = params["lstm"][0][0]["whh"].shape[0]
    O = params["fc_w"].shape[1]

    # Embedding lookup (simple gather; JAX-side glue).  Dropout = identity
    # (eval mode).
    e = jnp.take(params["embedding"], x_ids, axis=0)       # (seq, B, E)
    seq, B, E = e.shape

    # Pad batch to a full sublane group (8) so vregs aren't half-empty; padded
    # rows are independent and sliced away below.
    Bp = ((B + 7) // 8) * 8
    if Bp != B:
        e = jnp.pad(e, ((0, 0), (0, Bp - B), (0, 0)))
    e2d = e.reshape(seq * Bp, E)                            # (seq*Bp, E)

    flat_inputs = [e2d]
    for layer in params["lstm"]:
        for p in layer:                                     # fwd then bwd
            flat_inputs += [p["wih"], p["whh"], p["b"]]
    flat_inputs += [params["fc_w"], params["fc_b"]]

    logits = pl.pallas_call(
        _make_encoder_kernel(n_layers, seq, Bp),
        out_shape=jax.ShapeDtypeStruct((Bp, O), jnp.float32),
        in_specs=[_full_spec(a.shape) for a in flat_inputs],
        out_specs=_full_spec((Bp, O)),
        scratch_shapes=[
            pltpu.VMEM((seq * Bp, H), jnp.float32),       # prev layer out, fwd
            pltpu.VMEM((seq * Bp, H), jnp.float32),       # prev layer out, bwd
            pltpu.VMEM((seq * Bp, 4 * H), jnp.float32),   # hoisted proj, fwd
            pltpu.VMEM((seq * Bp, 4 * H), jnp.float32),   # hoisted proj, bwd
        ],
    )(*flat_inputs)
    return logits[:B]


# ----------------------------------------------------------------------------
# Parameter construction (deterministic, PyTorch-style uniform init)
# ----------------------------------------------------------------------------
def init_encoder_params(key, vocab_size, embedding_dim, hidden_dim, output_dim,
                        n_layers):
    params = {}
    key, sub = jax.random.split(key)
    params["embedding"] = jax.random.normal(
        sub, (vocab_size, embedding_dim), dtype=jnp.float32)

    k = 1.0 / jnp.sqrt(hidden_dim)
    layers = []
    for layer in range(n_layers):
        in_dim = embedding_dim if layer == 0 else 2 * hidden_dim
        dir_params = []
        for _direction in range(2):  # 0 = forward, 1 = backward
            key, k1, k2, k3, k4 = jax.random.split(key, 5)
            wih = jax.random.uniform(k1, (in_dim, 4 * hidden_dim),
                                     minval=-k, maxval=k, dtype=jnp.float32)
            whh = jax.random.uniform(k2, (hidden_dim, 4 * hidden_dim),
                                     minval=-k, maxval=k, dtype=jnp.float32)
            b_ih = jax.random.uniform(k3, (4 * hidden_dim,),
                                      minval=-k, maxval=k, dtype=jnp.float32)
            b_hh = jax.random.uniform(k4, (4 * hidden_dim,),
                                      minval=-k, maxval=k, dtype=jnp.float32)
            dir_params.append(dict(wih=wih, whh=whh, b=(b_ih + b_hh)[None, :]))
        layers.append(dir_params)
    params["lstm"] = layers

    kf = 1.0 / jnp.sqrt(2 * hidden_dim)
    key, k1, k2 = jax.random.split(key, 3)
    params["fc_w"] = jax.random.uniform(
        k1, (2 * hidden_dim, output_dim), minval=-kf, maxval=kf,
        dtype=jnp.float32)
    params["fc_b"] = jax.random.uniform(
        k2, (1, output_dim), minval=-kf, maxval=kf, dtype=jnp.float32)
    return params


# ----------------------------------------------------------------------------
# Pure-JAX reference (for a numerical self-check)
# ----------------------------------------------------------------------------
def _lstm_cell_ref(x_t, h, c, wih, whh, b):
    H = whh.shape[0]
    gates = x_t @ wih + h @ whh + b
    i = jax.nn.sigmoid(gates[:, 0 * H:1 * H])
    f = jax.nn.sigmoid(gates[:, 1 * H:2 * H])
    g = jnp.tanh(gates[:, 2 * H:3 * H])
    o = jax.nn.sigmoid(gates[:, 3 * H:4 * H])
    c = f * c + i * g
    return o * jnp.tanh(c), c


def encoder_reference(params, x_ids):
    e = jnp.take(params["embedding"], x_ids, axis=0)
    seq, B, _ = e.shape
    H = params["lstm"][0][0]["whh"].shape[0]
    inp = e
    hf = hb = None
    for pf, pb in params["lstm"]:
        h = c = jnp.zeros((B, H), jnp.float32)
        outs_f = []
        for t in range(seq):
            h, c = _lstm_cell_ref(inp[t], h, c, pf["wih"], pf["whh"], pf["b"])
            outs_f.append(h)
        hf = h
        h = c = jnp.zeros((B, H), jnp.float32)
        outs_b = [None] * seq
        for t in range(seq - 1, -1, -1):
            h, c = _lstm_cell_ref(inp[t], h, c, pb["wih"], pb["whh"], pb["b"])
            outs_b[t] = h
        hb = h
        inp = jnp.concatenate([jnp.stack(outs_f), jnp.stack(outs_b)], axis=-1)
    hidden = jnp.concatenate([hf, hb], axis=-1)
    return hidden @ params["fc_w"] + params["fc_b"]


if __name__ == "__main__":
    vocab_size = 50
    embedding_dim = 16
    hidden_dim = 32
    output_dim = 8
    n_layers = 2
    seq_len = 8
    batch = 4

    key = jax.random.PRNGKey(0)
    key, pkey, xkey = jax.random.split(key, 3)
    params = init_encoder_params(pkey, vocab_size, embedding_dim, hidden_dim,
                                 output_dim, n_layers)
    # token ids, seq-major like PyTorch's default LSTM layout
    x_ids = jax.random.randint(xkey, (seq_len, batch), 0, vocab_size,
                               dtype=jnp.int32)

    out = encoder_forward(params, x_ids)
    out = jax.block_until_ready(out)
    ref = encoder_reference(params, x_ids)

    assert out.shape == (batch, output_dim)
    assert jnp.all(jnp.isfinite(out))
    assert jnp.allclose(out, ref, atol=1e-4, rtol=1e-4)
    print("KERNEL_OK")
</pallas_src>

<mosaic_0001>
module attributes {stable_mosaic.version = 11 : i64} {
  func.func @kernel(%arg0: memref<64x16xf32, #tpu.memory_space<vmem>>, %arg1: memref<16x128xf32, #tpu.memory_space<vmem>>, %arg2: memref<32x128xf32, #tpu.memory_space<vmem>>, %arg3: memref<1x128xf32, #tpu.memory_space<vmem>>, %arg4: memref<16x128xf32, #tpu.memory_space<vmem>>, %arg5: memref<32x128xf32, #tpu.memory_space<vmem>>, %arg6: memref<1x128xf32, #tpu.memory_space<vmem>>, %arg7: memref<64x128xf32, #tpu.memory_space<vmem>>, %arg8: memref<32x128xf32, #tpu.memory_space<vmem>>, %arg9: memref<1x128xf32, #tpu.memory_space<vmem>>, %arg10: memref<64x128xf32, #tpu.memory_space<vmem>>, %arg11: memref<32x128xf32, #tpu.memory_space<vmem>>, %arg12: memref<1x128xf32, #tpu.memory_space<vmem>>, %arg13: memref<64x8xf32, #tpu.memory_space<vmem>>, %arg14: memref<1x8xf32, #tpu.memory_space<vmem>>, %arg15: memref<8x8xf32, #tpu.memory_space<vmem>>, %arg16: memref<64x32xf32, #tpu.memory_space<vmem>>, %arg17: memref<64x32xf32, #tpu.memory_space<vmem>>, %arg18: memref<64x128xf32, #tpu.memory_space<vmem>>, %arg19: memref<64x128xf32, #tpu.memory_space<vmem>>) attributes {dimension_semantics = [], scalar_prefetch = 0 : i64, scratch_operands = 4 : i64, tpu.core_type = #tpu.core_type<tc>} {
    %c0 = arith.constant 0 : index
    %c0_0 = arith.constant 0 : index
    %0 = vector.load %arg0[%c0, %c0_0] : memref<64x16xf32, #tpu.memory_space<vmem>>, vector<64x16xf32>
    %c0_1 = arith.constant 0 : index
    %c0_2 = arith.constant 0 : index
    %1 = vector.load %arg1[%c0_1, %c0_2] : memref<16x128xf32, #tpu.memory_space<vmem>>, vector<16x128xf32>
    %cst = arith.constant dense<0.000000e+00> : vector<64x128xf32>
    %2 = tpu.matmul %0, %1, %cst {dimension_numbers = #tpu.dot_dimension_numbers<[1], [0], [0], [1], [0, 0, 1, 1], [], []>} : vector<64x16xf32>, vector<16x128xf32>, vector<64x128xf32> -> vector<64x128xf32>
    %c0_3 = arith.constant 0 : index
    %c0_4 = arith.constant 0 : index
    %3 = vector.load %arg3[%c0_3, %c0_4] : memref<1x128xf32, #tpu.memory_space<vmem>>, vector<1x128xf32>
    %4 = vector.broadcast %3 : vector<1x128xf32> to vector<64x128xf32>
    %5 = arith.addf %2, %4 : vector<64x128xf32>
    %c0_5 = arith.constant 0 : index
    %c0_6 = arith.constant 0 : index
    %6 = vector.load %arg18[%c0_5, %c0_6] : memref<64x128xf32, #tpu.memory_space<vmem>>, vector<64x128xf32>
    tpu.vector_store %arg18[%c0_5, %c0_6], %5 {strides = array<i32>} : memref<64x128xf32, #tpu.memory_space<vmem>>, vector<64x128xf32>,
    %c0_7 = arith.constant 0 : index
    %c0_8 = arith.constant 0 : index
    %7 = vector.load %arg4[%c0_7, %c0_8] : memref<16x128xf32, #tpu.memory_space<vmem>>, vector<16x128xf32>
    %cst_9 = arith.constant dense<0.000000e+00> : vector<64x128xf32>
    %8 = tpu.matmul %0, %7, %cst_9 {dimension_numbers = #tpu.dot_dimension_numbers<[1], [0], [0], [1], [0, 0, 1, 1], [], []>} : vector<64x16xf32>, vector<16x128xf32>, vector<64x128xf32> -> vector<64x128xf32>
    %c0_10 = arith.constant 0 : index
    %c0_11 = arith.constant 0 : index
    %9 = vector.load %arg6[%c0_10, %c0_11] : memref<1x128xf32, #tpu.memory_space<vmem>>, vector<1x128xf32>
    %10 = vector.broadcast %9 : vector<1x128xf32> to vector<64x128xf32>
    %11 = arith.addf %8, %10 : vector<64x128xf32>
    %c0_12 = arith.constant 0 : index
    %c0_13 = arith.constant 0 : index
    %12 = vector.load %arg19[%c0_12, %c0_13] : memref<64x128xf32, #tpu.memory_space<vmem>>, vector<64x128xf32>
    tpu.vector_store %arg19[%c0_12, %c0_13], %11 {strides = array<i32>} : memref<64x128xf32, #tpu.memory_space<vmem>>, vector<64x128xf32>,
    %cst_14 = arith.constant 0.000000e+00 : f32
    %13 = vector.broadcast %cst_14 : f32 to vector<8x32xf32>
    %c0_15 = arith.constant 0 : index
    %c0_16 = arith.constant 0 : index
    %14 = vector.load %arg18[%c0_15, %c0_16] : memref<64x128xf32, #tpu.memory_space<vmem>>, vector<8x128xf32>
    %c56 = arith.constant 56 : index
    %c0_17 = arith.constant 0 : index
    %15 = vector.load %arg19[%c56, %c0_17] : memref<64x128xf32, #tpu.memory_space<vmem>>, vector<8x128xf32>
    %c0_18 = arith.constant 0 : index
    %c0_19 = arith.constant 0 : index
    %16 = vector.load %arg2[%c0_18, %c0_19] : memref<32x128xf32, #tpu.memory_space<vmem>>, vector<32x128xf32>
    %cst_20 = arith.constant dense<0.000000e+00> : vector<8x128xf32>
    %17 = tpu.matmul %13, %16, %cst_20 {dimension_numbers = #tpu.dot_dimension_numbers<[1], [0], [0], [1], [0, 0, 1, 1], [], []>} : vector<8x32xf32>, vector<32x128xf32>, vector<8x128xf32> -> vector<8x128xf32>
    %18 = arith.addf %14, %17 : vector<8x128xf32>
    %c0_21 = arith.constant 0 : index
    %c0_22 = arith.constant 0 : index
    %19 = vector.load %arg5[%c0_21, %c0_22] : memref<32x128xf32, #tpu.memory_space<vmem>>, vector<32x128xf32>
    %cst_23 = arith.constant dense<0.000000e+00> : vector<8x128xf32>
    %20 = tpu.matmul %13, %19, %cst_23 {dimension_numbers = #tpu.dot_dimension_numbers<[1], [0], [0], [1], [0, 0, 1, 1], [], []>} : vector<8x32xf32>, vector<32x128xf32>, vector<8x128xf32> -> vector<8x128xf32>
    %21 = arith.addf %15, %20 : vector<8x128xf32>
    %22 = vector.extract_strided_slice %18 {offsets = [0, 0], sizes = [8, 32], strides = [1, 1]} : vector<8x128xf32> to vector<8x32xf32>
    %23 = arith.negf %22 : vector<8x32xf32>
    %24 = math.exp %23 : vector<8x32xf32>
    %cst_24 = arith.constant 1.000000e+00 : f32
    %25 = vector.broadcast %cst_24 : f32 to vector<8x32xf32>
    %26 = arith.addf %25, %24 : vector<8x32xf32>
    %27 = arith.divf %25, %26 : vector<8x32xf32>
    %28 = vector.extract_strided_slice %18 {offsets = [0, 32], sizes = [8, 32], strides = [1, 1]} : vector<8x128xf32> to vector<8x32xf32>
    %29 = arith.negf %28 : vector<8x32xf32>
    %30 = math.exp %29 : vector<8x32xf32>
    %cst_25 = arith.constant 1.000000e+00 : f32
    %31 = vector.broadcast %cst_25 : f32 to vector<8x32xf32>
    %32 = arith.addf %31, %30 : vector<8x32xf32>
    %33 = arith.divf %31, %32 : vector<8x32xf32>
    %34 = vector.extract_strided_slice %18 {offsets = [0, 64], sizes = [8, 32], strides = [1, 1]} : vector<8x128xf32> to vector<8x32xf32>
    %35 = math.tanh %34 : vector<8x32xf32>
    %36 = vector.extract_strided_slice %18 {offsets = [0, 96], sizes = [8, 32], strides = [1, 1]} : vector<8x128xf32> to vector<8x32xf32>
    %37 = arith.negf %36 : vector<8x32xf32>
    %38 = math.exp %37 : vector<8x32xf32>
    %cst_26 = arith.constant 1.000000e+00 : f32
    %39 = vector.broadcast %cst_26 : f32 to vector<8x32xf32>
    %40 = arith.addf %39, %38 : vector<8x32xf32>
    %41 = arith.divf %39, %40 : vector<8x32xf32>
    %42 = arith.mulf %33, %13 : vector<8x32xf32>
    %43 = arith.mulf %27, %35 : vector<8x32xf32>
    %44 = arith.addf %42, %43 : vector<8x32xf32>
    %45 = math.tanh %44 : vector<8x32xf32>
    %46 = arith.mulf %41, %45 : vector<8x32xf32>
    %47 = vector.extract_strided_slice %21 {offsets = [0, 0], sizes = [8, 32], strides = [1, 1]} : vector<8x128xf32> to vector<8x32xf32>
    %48 = arith.negf %47 : vector<8x32xf32>
    %49 = math.exp %48 : vector<8x32xf32>
    %cst_27 = arith.constant 1.000000e+00 : f32
    %50 = vector.broadcast %cst_27 : f32 to vector<8x32xf32>
    %51 = arith.addf %50, %49 : vector<8x32xf32>
    %52 = arith.divf %50, %51 : vector<8x32xf32>
    %53 = vector.extract_strided_slice %21 {offsets = [0, 32], sizes = [8, 32], strides = [1, 1]} : vector<8x128xf32> to vector<8x32xf32>
    %54 = arith.negf %53 : vector<8x32xf32>
    %55 = math.exp %54 : vector<8x32xf32>
    %cst_28 = arith.constant 1.000000e+00 : f32
    %56 = vector.broadcast %cst_28 : f32 to vector<8x32xf32>
    %57 = arith.addf %56, %55 : vector<8x32xf32>
    %58 = arith.divf %56, %57 : vector<8x32xf32>
    %59 = vector.extract_strided_slice %21 {offsets = [0, 64], sizes = [8, 32], strides = [1, 1]} : vector<8x128xf32> to vector<8x32xf32>
    %60 = math.tanh %59 : vector<8x32xf32>
    %61 = vector.extract_strided_slice %21 {offsets = [0, 96], sizes = [8, 32], strides = [1, 1]} : vector<8x128xf32> to vector<8x32xf32>
    %62 = arith.negf %61 : vector<8x32xf32>
    %63 = math.exp %62 : vector<8x32xf32>
    %cst_29 = arith.constant 1.000000e+00 : f32
    %64 = vector.broadcast %cst_29 : f32 to vector<8x32xf32>
    %65 = arith.addf %64, %63 : vector<8x32xf32>
    %66 = arith.divf %64, %65 : vector<8x32xf32>
    %67 = arith.mulf %58, %13 : vector<8x32xf32>
    %68 = arith.mulf %52, %60 : vector<8x32xf32>
    %69 = arith.addf %67, %68 : vector<8x32xf32>
    %70 = math.tanh %69 : vector<8x32xf32>
    %71 = arith.mulf %66, %70 : vector<8x32xf32>
    %c0_30 = arith.constant 0 : index
    %c0_31 = arith.constant 0 : index
    %72 = vector.load %arg16[%c0_30, %c0_31] : memref<64x32xf32, #tpu.memory_space<vmem>>, vector<8x32xf32>
    tpu.vector_store %arg16[%c0_30, %c0_31], %46 {strides = array<i32>} : memref<64x32xf32, #tpu.memory_space<vmem>>, vector<8x32xf32>,
    %c56_32 = arith.constant 56 : index
    %c0_33 = arith.constant 0 : index
    %73 = vector.load %arg17[%c56_32, %c0_33] : memref<64x32xf32, #tpu.memory_space<vmem>>, vector<8x32xf32>
    tpu.vector_store %arg17[%c56_32, %c0_33], %71 {strides = array<i32>} : memref<64x32xf32, #tpu.memory_space<vmem>>, vector<8x32xf32>,
    %c8 = arith.constant 8 : index
    %c0_34 = arith.constant 0 : index
    %74 = vector.load %arg18[%c8, %c0_34] : memref<64x128xf32, #tpu.memory_space<vmem>>, vector<8x128xf32>
    %c48 = arith.constant 48 : index
    %c0_35 = arith.constant 0 : index
    %75 = vector.load %arg19[%c48, %c0_35] : memref<64x128xf32, #tpu.memory_space<vmem>>, vector<8x128xf32>
    %c0_36 = arith.constant 0 : index
    %c0_37 = arith.constant 0 : index
    %76 = vector.load %arg2[%c0_36, %c0_37] : memref<32x128xf32, #tpu.memory_space<vmem>>, vector<32x128xf32>
    %cst_38 = arith.constant dense<0.000000e+00> : vector<8x128xf32>
    %77 = tpu.matmul %46, %76, %cst_38 {dimension_numbers = #tpu.dot_dimension_numbers<[1], [0], [0], [1], [0, 0, 1, 1], [], []>} : vector<8x32xf32>, vector<32x128xf32>, vector<8x128xf32> -> vector<8x128xf32>
    %78 = arith.addf %74, %77 : vector<8x128xf32>
    %c0_39 = arith.constant 0 : index
    %c0_40 = arith.constant 0 : index
    %79 = vector.load %arg5[%c0_39, %c0_40] : memref<32x128xf32, #tpu.memory_space<vmem>>, vector<32x128xf32>
    %cst_41 = arith.constant dense<0.000000e+00> : vector<8x128xf32>
    %80 = tpu.matmul %71, %79, %cst_41 {dimension_numbers = #tpu.dot_dimension_numbers<[1], [0], [0], [1], [0, 0, 1, 1], [], []>} : vector<8x32xf32>, vector<32x128xf32>, vector<8x128xf32> -> vector<8x128xf32>
    %81 = arith.addf %75, %80 : vector<8x128xf32>
    %82 = vector.extract_strided_slice %78 {offsets = [0, 0], sizes = [8, 32], strides = [1, 1]} : vector<8x128xf32> to vector<8x32xf32>
    %83 = arith.negf %82 : vector<8x32xf32>
    %84 = math.exp %83 : vector<8x32xf32>
    %cst_42 = arith.constant 1.000000e+00 : f32
    %85 = vector.broadcast %cst_42 : f32 to vector<8x32xf32>
    %86 = arith.addf %85, %84 : vector<8x32xf32>
    %87 = arith.divf %85, %86 : vector<8x32xf32>
    %88 = vector.extract_strided_slice %78 {offsets = [0, 32], sizes = [8, 32], strides = [1, 1]} : vector<8x128xf32> to vector<8x32xf32>
    %89 = arith.negf %88 : vector<8x32xf32>
    %90 = math.exp %89 : vector<8x32xf32>
    %cst_43 = arith.constant 1.000000e+00 : f32
    %91 = vector.broadcast %cst_43 : f32 to vector<8x32xf32>
    %92 = arith.addf %91, %90 : vector<8x32xf32>
    %93 = arith.divf %91, %92 : vector<8x32xf32>
    %94 = vector.extract_strided_slice %78 {offsets = [0, 64], sizes = [8, 32], strides = [1, 1]} : vector<8x128xf32> to vector<8x32xf32>
    %95 = math.tanh %94 : vector<8x32xf32>
    %96 = vector.extract_strided_slice %78 {offsets = [0, 96], sizes = [8, 32], strides = [1, 1]} : vector<8x128xf32> to vector<8x32xf32>
    %97 = arith.negf %96 : vector<8x32xf32>
    %98 = math.exp %97 : vector<8x32xf32>
    %cst_44 = arith.constant 1.000000e+00 : f32
    %99 = vector.broadcast %cst_44 : f32 to vector<8x32xf32>
    %100 = arith.addf %99, %98 : vector<8x32xf32>
    %101 = arith.divf %99, %100 : vector<8x32xf32>
    %102 = arith.mulf %93, %44 : vector<8x32xf32>
    %103 = arith.mulf %87, %95 : vector<8x32xf32>
    %104 = arith.addf %102, %103 : vector<8x32xf32>
    %105 = math.tanh %104 : vector<8x32xf32>
    %106 = arith.mulf %101, %105 : vector<8x32xf32>
    %107 = vector.extract_strided_slice %81 {offsets = [0, 0], sizes = [8, 32], strides = [1, 1]} : vector<8x128xf32> to vector<8x32xf32>
    %108 = arith.negf %107 : vector<8x32xf32>
    %109 = math.exp %108 : vector<8x32xf32>
    %cst_45 = arith.constant 1.000000e+00 : f32
    %110 = vector.broadcast %cst_45 : f32 to vector<8x32xf32>
    %111 = arith.addf %110, %109 : vector<8x32xf32>
    %112 = arith.divf %110, %111 : vector<8x32xf32>
    %113 = vector.extract_strided_slice %81 {offsets = [0, 32], sizes = [8, 32], strides = [1, 1]} : vector<8x128xf32> to vector<8x32xf32>
    %114 = arith.negf %113 : vector<8x32xf32>
    %115 = math.exp %114 : vector<8x32xf32>
    %cst_46 = arith.constant 1.000000e+00 : f32
    %116 = vector.broadcast %cst_46 : f32 to vector<8x32xf32>
    %117 = arith.addf %116, %115 : vector<8x32xf32>
    %118 = arith.divf %116, %117 : vector<8x32xf32>
    %119 = vector.extract_strided_slice %81 {offsets = [0, 64], sizes = [8, 32], strides = [1, 1]} : vector<8x128xf32> to vector<8x32xf32>
    %120 = math.tanh %119 : vector<8x32xf32>
    %121 = vector.extract_strided_slice %81 {offsets = [0, 96], sizes = [8, 32], strides = [1, 1]} : vector<8x128xf32> to vector<8x32xf32>
    %122 = arith.negf %121 : vector<8x32xf32>
    %123 = math.exp %122 : vector<8x32xf32>
    %cst_47 = arith.constant 1.000000e+00 : f32
    %124 = vector.broadcast %cst_47 : f32 to vector<8x32xf32>
    %125 = arith.addf %124, %123 : vector<8x32xf32>
    %126 = arith.divf %124, %125 : vector<8x32xf32>
    %127 = arith.mulf %118, %69 : vector<8x32xf32>
    %128 = arith.mulf %112, %120 : vector<8x32xf32>
    %129 = arith.addf %127, %128 : vector<8x32xf32>
    %130 = math.tanh %129 : vector<8x32xf32>
    %131 = arith.mulf %126, %130 : vector<8x32xf32>
    %c8_48 = arith.constant 8 : index
    %c0_49 = arith.constant 0 : index
    %132 = vector.load %arg16[%c8_48, %c0_49] : memref<64x32xf32, #tpu.memory_space<vmem>>, vector<8x32xf32>
    tpu.vector_store %arg16[%c8_48, %c0_49], %106 {strides = array<i32>} : memref<64x32xf32, #tpu.memory_space<vmem>>, vector<8x32xf32>,
    %c48_50 = arith.constant 48 : index
    %c0_51 = arith.constant 0 : index
    %133 = vector.load %arg17[%c48_50, %c0_51] : memref<64x32xf32, #tpu.memory_space<vmem>>, vector<8x32xf32>
    tpu.vector_store %arg17[%c48_50, %c0_51], %131 {strides = array<i32>} : memref<64x32xf32, #tpu.memory_space<vmem>>, vector<8x32xf32>,
    %c16 = arith.constant 16 : index
    %c0_52 = arith.constant 0 : index
    %134 = vector.load %arg18[%c16, %c0_52] : memref<64x128xf32, #tpu.memory_space<vmem>>, vector<8x128xf32>
    %c40 = arith.constant 40 : index
    %c0_53 = arith.constant 0 : index
    %135 = vector.load %arg19[%c40, %c0_53] : memref<64x128xf32, #tpu.memory_space<vmem>>, vector<8x128xf32>
    %c0_54 = arith.constant 0 : index
    %c0_55 = arith.constant 0 : index
    %136 = vector.load %arg2[%c0_54, %c0_55] : memref<32x128xf32, #tpu.memory_space<vmem>>, vector<32x128xf32>
    %cst_56 = arith.constant dense<0.000000e+00> : vector<8x128xf32>
    %137 = tpu.matmul %106, %136, %cst_56 {dimension_numbers = #tpu.dot_dimension_numbers<[1], [0], [0], [1], [0, 0, 1, 1], [], []>} : vector<8x32xf32>, vector<32x128xf32>, vector<8x128xf32> -> vector<8x128xf32>
    %138 = arith.addf %134, %137 : vector<8x128xf32>
    %c0_57 = arith.constant 0 : index
    %c0_58 = arith.constant 0 : index
    %139 = vector.load %arg5[%c0_57, %c0_58] : memref<32x128xf32, #tpu.memory_space<vmem>>, vector<32x128xf32>
    %cst_59 = arith.constant dense<0.000000e+00> : vector<8x128xf32>
    %140 = tpu.matmul %131, %139, %cst_59 {dimension_numbers = #tpu.dot_dimension_numbers<[1], [0], [0], [1], [0, 0, 1, 1], [], []>} : vector<8x32xf32>, vector<32x128xf32>, vector<8x128xf32> -> vector<8x128xf32>
    %141 = arith.addf %135, %140 : vector<8x128xf32>
    %142 = vector.extract_strided_slice %138 {offsets = [0, 0], sizes = [8, 32], strides = [1, 1]} : vector<8x128xf32> to vector<8x32xf32>
    %143 = arith.negf %142 : vector<8x32xf32>
    %144 = math.exp %143 : vector<8x32xf32>
    %cst_60 = arith.constant 1.000000e+00 : f32
    %145 = vector.broadcast %cst_60 : f32 to vector<8x32xf32>
    %146 = arith.addf %145, %144 : vector<8x32xf32>
    %147 = arith.divf %145, %146 : vector<8x32xf32>
    %148 = vector.extract_strided_slice %138 {offsets = [0, 32], sizes = [8, 32], strides = [1, 1]} : vector<8x128xf32> to vector<8x32xf32>
    %149 = arith.negf %148 : vector<8x32xf32>
    %150 = math.exp %149 : vector<8x32xf32>
    %cst_61 = arith.constant 1.000000e+00 : f32
    %151 = vector.broadcast %cst_61 : f32 to vector<8x32xf32>
    %152 = arith.addf %151, %150 : vector<8x32xf32>
    %153 = arith.divf %151, %152 : vector<8x32xf32>
    %154 = vector.extract_strided_slice %138 {offsets = [0, 64], sizes = [8, 32], strides = [1, 1]} : vector<8x128xf32> to vector<8x32xf32>
    %155 = math.tanh %154 : vector<8x32xf32>
    %156 = vector.extract_strided_slice %138 {offsets = [0, 96], sizes = [8, 32], strides = [1, 1]} : vector<8x128xf32> to vector<8x32xf32>
    %157 = arith.negf %156 : vector<8x32xf32>
    %158 = math.exp %157 : vector<8x32xf32>
    %cst_62 = arith.constant 1.000000e+00 : f32
    %159 = vector.broadcast %cst_62 : f32 to vector<8x32xf32>
    %160 = arith.addf %159, %158 : vector<8x32xf32>
    %161 = arith.divf %159, %160 : vector<8x32xf32>
    %162 = arith.mulf %153, %104 : vector<8x32xf32>
    %163 = arith.mulf %147, %155 : vector<8x32xf32>
    %164 = arith.addf %162, %163 : vector<8x32xf32>
    %165 = math.tanh %164 : vector<8x32xf32>
    %166 = arith.mulf %161, %165 : vector<8x32xf32>
    %167 = vector.extract_strided_slice %141 {offsets = [0, 0], sizes = [8, 32], strides = [1, 1]} : vector<8x128xf32> to vector<8x32xf32>
    %168 = arith.negf %167 : vector<8x32xf32>
    %169 = math.exp %168 : vector<8x32xf32>
    %cst_63 = arith.constant 1.000000e+00 : f32
    %170 = vector.broadcast %cst_63 : f32 to vector<8x32xf32>
    %171 = arith.addf %170, %169 : vector<8x32xf32>
    %172 = arith.divf %170, %171 : vector<8x32xf32>
    %173 = vector.extract_strided_slice %141 {offsets = [0, 32], sizes = [8, 32], strides = [1, 1]} : vector<8x128xf32> to vector<8x32xf32>
    %174 = arith.negf %173 : vector<8x32xf32>
    %175 = math.exp %174 : vector<8x32xf32>
    %cst_64 = arith.constant 1.000000e+00 : f32
    %176 = vector.broadcast %cst_64 : f32 to vector<8x32xf32>
    %177 = arith.addf %176, %175 : vector<8x32xf32>
    %178 = arith.divf %176, %177 : vector<8x32xf32>
    %179 = vector.extract_strided_slice %141 {offsets = [0, 64], sizes = [8, 32], strides = [1, 1]} : vector<8x128xf32> to vector<8x32xf32>
    %180 = math.tanh %179 : vector<8x32xf32>
    %181 = vector.extract_strided_slice %141 {offsets = [0, 96], sizes = [8, 32], strides = [1, 1]} : vector<8x128xf32> to vector<8x32xf32>
    %182 = arith.negf %181 : vector<8x32xf32>
    %183 = math.exp %182 : vector<8x32xf32>
    %cst_65 = arith.constant 1.000000e+00 : f32
    %184 = vector.broadcast %cst_65 : f32 to vector<8x32xf32>
    %185 = arith.addf %184, %183 : vector<8x32xf32>
    %186 = arith.divf %184, %185 : vector<8x32xf32>
    %187 = arith.mulf %178, %129 : vector<8x32xf32>
    %188 = arith.mulf %172, %180 : vector<8x32xf32>
    %189 = arith.addf %187, %188 : vector<8x32xf32>
    %190 = math.tanh %189 : vector<8x32xf32>
    %191 = arith.mulf %186, %190 : vector<8x32xf32>
    %c16_66 = arith.constant 16 : index
    %c0_67 = arith.constant 0 : index
    %192 = vector.load %arg16[%c16_66, %c0_67] : memref<64x32xf32, #tpu.memory_space<vmem>>, vector<8x32xf32>
    tpu.vector_store %arg16[%c16_66, %c0_67], %166 {strides = array<i32>} : memref<64x32xf32, #tpu.memory_space<vmem>>, vector<8x32xf32>,
    %c40_68 = arith.constant 40 : index
    %c0_69 = arith.constant 0 : index
    %193 = vector.load %arg17[%c40_68, %c0_69] : memref<64x32xf32, #tpu.memory_space<vmem>>, vector<8x32xf32>
    tpu.vector_store %arg17[%c40_68, %c0_69], %191 {strides = array<i32>} : memref<64x32xf32, #tpu.memory_space<vmem>>, vector<8x32xf32>,
    %c24 = arith.constant 24 : index
    %c0_70 = arith.constant 0 : index
    %194 = vector.load %arg18[%c24, %c0_70] : memref<64x128xf32, #tpu.memory_space<vmem>>, vector<8x128xf32>
    %c32 = arith.constant 32 : index
    %c0_71 = arith.constant 0 : index
    %195 = vector.load %arg19[%c32, %c0_71] : memref<64x128xf32, #tpu.memory_space<vmem>>, vector<8x128xf32>
    %c0_72 = arith.constant 0 : index
    %c0_73 = arith.constant 0 : index
    %196 = vector.load %arg2[%c0_72, %c0_73] : memref<32x128xf32, #tpu.memory_space<vmem>>, vector<32x128xf32>
    %cst_74 = arith.constant dense<0.000000e+00> : vector<8x128xf32>
    %197 = tpu.matmul %166, %196, %cst_74 {dimension_numbers = #tpu.dot_dimension_numbers<[1], [0], [0], [1], [0, 0, 1, 1], [], []>} : vector<8x32xf32>, vector<32x128xf32>, vector<8x128xf32> -> vector<8x128xf32>
    %198 = arith.addf %194, %197 : vector<8x128xf32>
    %c0_75 = arith.constant 0 : index
    %c0_76 = arith.constant 0 : index
    %199 = vector.load %arg5[%c0_75, %c0_76] : memref<32x128xf32, #tpu.memory_space<vmem>>, vector<32x128xf32>
    %cst_77 = arith.constant dense<0.000000e+00> : vector<8x128xf32>
    %200 = tpu.matmul %191, %199, %cst_77 {dimension_numbers = #tpu.dot_dimension_numbers<[1], [0], [0], [1], [0, 0, 1, 1], [], []>} : vector<8x32xf32>, vector<32x128xf32>, vector<8x128xf32> -> vector<8x128xf32>
    %201 = arith.addf %195, %200 : vector<8x128xf32>
    %202 = vector.extract_strided_slice %198 {offsets = [0, 0], sizes = [8, 32], strides = [1, 1]} : vector<8x128xf32> to vector<8x32xf32>
    %203 = arith.negf %202 : vector<8x32xf32>
    %204 = math.exp %203 : vector<8x32xf32>
    %cst_78 = arith.constant 1.000000e+00 : f32
    %205 = vector.broadcast %cst_78 : f32 to vector<8x32xf32>
    %206 = arith.addf %205, %204 : vector<8x32xf32>
    %207 = arith.divf %205, %206 : vector<8x32xf32>
    %208 = vector.extract_strided_slice %198 {offsets = [0, 32], sizes = [8, 32], strides = [1, 1]} : vector<8x128xf32> to vector<8x32xf32>
    %209 = arith.negf %208 : vector<8x32xf32>
    %210 = math.exp %209 : vector<8x32xf32>
    %cst_79 = arith.constant 1.000000e+00 : f32
    %211 = vector.broadcast %cst_79 : f32 to vector<8x32xf32>
    %212 = arith.addf %211, %210 : vector<8x32xf32>
    %213 = arith.divf %211, %212 : vector<8x32xf32>
    %214 = vector.extract_strided_slice %198 {offsets = [0, 64], sizes = [8, 32], strides = [1, 1]} : vector<8x128xf32> to vector<8x32xf32>
    %215 = math.tanh %214 : vector<8x32xf32>
    %216 = vector.extract_strided_slice %198 {offsets = [0, 96], sizes = [8, 32], strides = [1, 1]} : vector<8x128xf32> to vector<8x32xf32>
    %217 = arith.negf %216 : vector<8x32xf32>
    %218 = math.exp %217 : vector<8x32xf32>
    %cst_80 = arith.constant 1.000000e+00 : f32
    %219 = vector.broadcast %cst_80 : f32 to vector<8x32xf32>
    %220 = arith.addf %219, %218 : vector<8x32xf32>
    %221 = arith.divf %219, %220 : vector<8x32xf32>
    %222 = arith.mulf %213, %164 : vector<8x32xf32>
    %223 = arith.mulf %207, %215 : vector<8x32xf32>
    %224 = arith.addf %222, %223 : vector<8x32xf32>
    %225 = math.tanh %224 : vector<8x32xf32>
    %226 = arith.mulf %221, %225 : vector<8x32xf32>
    %227 = vector.extract_strided_slice %201 {offsets = [0, 0], sizes = [8, 32], strides = [1, 1]} : vector<8x128xf32> to vector<8x32xf32>
    %228 = arith.negf %227 : vector<8x32xf32>
    %229 = math.exp %228 : vector<8x32xf32>
    %cst_81 = arith.constant 1.000000e+00 : f32
    %230 = vector.broadcast %cst_81 : f32 to vector<8x32xf32>
    %231 = arith.addf %230, %229 : vector<8x32xf32>
    %232 = arith.divf %230, %231 : vector<8x32xf32>
    %233 = vector.extract_strided_slice %201 {offsets = [0, 32], sizes = [8, 32], strides = [1, 1]} : vector<8x128xf32> to vector<8x32xf32>
    %234 = arith.negf %233 : vector<8x32xf32>
    %235 = math.exp %234 : vector<8x32xf32>
    %cst_82 = arith.constant 1.000000e+00 : f32
    %236 = vector.broadcast %cst_82 : f32 to vector<8x32xf32>
    %237 = arith.addf %236, %235 : vector<8x32xf32>
    %238 = arith.divf %236, %237 : vector<8x32xf32>
    %239 = vector.extract_strided_slice %201 {offsets = [0, 64], sizes = [8, 32], strides = [1, 1]} : vector<8x128xf32> to vector<8x32xf32>
    %240 = math.tanh %239 : vector<8x32xf32>
    %241 = vector.extract_strided_slice %201 {offsets = [0, 96], sizes = [8, 32], strides = [1, 1]} : vector<8x128xf32> to vector<8x32xf32>
    %242 = arith.negf %241 : vector<8x32xf32>
    %243 = math.exp %242 : vector<8x32xf32>
    %cst_83 = arith.constant 1.000000e+00 : f32
    %244 = vector.broadcast %cst_83 : f32 to vector<8x32xf32>
    %245 = arith.addf %244, %243 : vector<8x32xf32>
    %246 = arith.divf %244, %245 : vector<8x32xf32>
    %247 = arith.mulf %238, %189 : vector<8x32xf32>
    %248 = arith.mulf %232, %240 : vector<8x32xf32>
    %249 = arith.addf %247, %248 : vector<8x32xf32>
    %250 = math.tanh %249 : vector<8x32xf32>
    %251 = arith.mulf %246, %250 : vector<8x32xf32>
    %c24_84 = arith.constant 24 : index
    %c0_85 = arith.constant 0 : index
    %252 = vector.load %arg16[%c24_84, %c0_85] : memref<64x32xf32, #tpu.memory_space<vmem>>, vector<8x32xf32>
    tpu.vector_store %arg16[%c24_84, %c0_85], %226 {strides = array<i32>} : memref<64x32xf32, #tpu.memory_space<vmem>>, vector<8x32xf32>,
    %c32_86 = arith.constant 32 : index
    %c0_87 = arith.constant 0 : index
    %253 = vector.load %arg17[%c32_86, %c0_87] : memref<64x32xf32, #tpu.memory_space<vmem>>, vector<8x32xf32>
    tpu.vector_store %arg17[%c32_86, %c0_87], %251 {strides = array<i32>} : memref<64x32xf32, #tpu.memory_space<vmem>>, vector<8x32xf32>,
    %c32_88 = arith.constant 32 : index
    %c0_89 = arith.constant 0 : index
    %254 = vector.load %arg18[%c32_88, %c0_89] : memref<64x128xf32, #tpu.memory_space<vmem>>, vector<8x128xf32>
    %c24_90 = arith.constant 24 : index
    %c0_91 = arith.constant 0 : index
    %255 = vector.load %arg19[%c24_90, %c0_91] : memref<64x128xf32, #tpu.memory_space<vmem>>, vector<8x128xf32>
    %c0_92 = arith.constant 0 : index
    %c0_93 = arith.constant 0 : index
    %256 = vector.load %arg2[%c0_92, %c0_93] : memref<32x128xf32, #tpu.memory_space<vmem>>, vector<32x128xf32>
    %cst_94 = arith.constant dense<0.000000e+00> : vector<8x128xf32>
    %257 = tpu.matmul %226, %256, %cst_94 {dimension_numbers = #tpu.dot_dimension_numbers<[1], [0], [0], [1], [0, 0, 1, 1], [], []>} : vector<8x32xf32>, vector<32x128xf32>, vector<8x128xf32> -> vector<8x128xf32>
    %258 = arith.addf %254, %257 : vector<8x128xf32>
    %c0_95 = arith.constant 0 : index
    %c0_96 = arith.constant 0 : index
    %259 = vector.load %arg5[%c0_95, %c0_96] : memref<32x128xf32, #tpu.memory_space<vmem>>, vector<32x128xf32>
    %cst_97 = arith.constant dense<0.000000e+00> : vector<8x128xf32>
    %260 = tpu.matmul %251, %259, %cst_97 {dimension_numbers = #tpu.dot_dimension_numbers<[1], [0], [0], [1], [0, 0, 1, 1], [], []>} : vector<8x32xf32>, vector<32x128xf32>, vector<8x128xf32> -> vector<8x128xf32>
    %261 = arith.addf %255, %260 : vector<8x128xf32>
    %262 = vector.extract_strided_slice %258 {offsets = [0, 0], sizes = [8, 32], strides = [1, 1]} : vector<8x128xf32> to vector<8x32xf32>
    %263 = arith.negf %262 : vector<8x32xf32>
    %264 = math.exp %263 : vector<8x32xf32>
    %cst_98 = arith.constant 1.000000e+00 : f32
    %265 = vector.broadcast %cst_98 : f32 to vector<8x32xf32>
    %266 = arith.addf %265, %264 : vector<8x32xf32>
    %267 = arith.divf %265, %266 : vector<8x32xf32>
    %268 = vector.extract_strided_slice %258 {offsets = [0, 32], sizes = [8, 32], strides = [1, 1]} : vector<8x128xf32> to vector<8x32xf32>
    %269 = arith.negf %268 : vector<8x32xf32>
    %270 = math.exp %269 : vector<8x32xf32>
    %cst_99 = arith.constant 1.000000e+00 : f32
    %271 = vector.broadcast %cst_99 : f32 to vector<8x32xf32>
    %272 = arith.addf %271, %270 : vector<8x32xf32>
    %273 = arith.divf %271, %272 : vector<8x32xf32>
    %274 = vector.extract_strided_slice %258 {offsets = [0, 64], sizes = [8, 32], strides = [1, 1]} : vector<8x128xf32> to vector<8x32xf32>
    %275 = math.tanh %274 : vector<8x32xf32>
    %276 = vector.extract_strided_slice %258 {offsets = [0, 96], sizes = [8, 32], strides = [1, 1]} : vector<8x128xf32> to vector<8x32xf32>
    %277 = arith.negf %276 : vector<8x32xf32>
    %278 = math.exp %277 : vector<8x32xf32>
    %cst_100 = arith.constant 1.000000e+00 : f32
    %279 = vector.broadcast %cst_100 : f32 to vector<8x32xf32>
    %280 = arith.addf %279, %278 : vector<8x32xf32>
    %281 = arith.divf %279, %280 : vector<8x32xf32>
    %282 = arith.mulf %273, %224 : vector<8x32xf32>
    %283 = arith.mulf %267, %275 : vector<8x32xf32>
    %284 = arith.addf %282, %283 : vector<8x32xf32>
    %285 = math.tanh %284 : vector<8x32xf32>
    %286 = arith.mulf %281, %285 : vector<8x32xf32>
    %287 = vector.extract_strided_slice %261 {offsets = [0, 0], sizes = [8, 32], strides = [1, 1]} : vector<8x128xf32> to vector<8x32xf32>
    %288 = arith.negf %287 : vector<8x32xf32>
    %289 = math.exp %288 : vector<8x32xf32>
    %cst_101 = arith.constant 1.000000e+00 : f32
    %290 = vector.broadcast %cst_101 : f32 to vector<8x32xf32>
    %291 = arith.addf %290, %289 : vector<8x32xf32>
    %292 = arith.divf %290, %291 : vector<8x32xf32>
    %293 = vector.extract_strided_slice %261 {offsets = [0, 32], sizes = [8, 32], strides = [1, 1]} : vector<8x128xf32> to vector<8x32xf32>
    %294 = arith.negf %293 : vector<8x32xf32>
    %295 = math.exp %294 : vector<8x32xf32>
    %cst_102 = arith.constant 1.000000e+00 : f32
    %296 = vector.broadcast %cst_102 : f32 to vector<8x32xf32>
    %297 = arith.addf %296, %295 : vector<8x32xf32>
    %298 = arith.divf %296, %297 : vector<8x32xf32>
    %299 = vector.extract_strided_slice %261 {offsets = [0, 64], sizes = [8, 32], strides = [1, 1]} : vector<8x128xf32> to vector<8x32xf32>
    %300 = math.tanh %299 : vector<8x32xf32>
    %301 = vector.extract_strided_slice %261 {offsets = [0, 96], sizes = [8, 32], strides = [1, 1]} : vector<8x128xf32> to vector<8x32xf32>
    %302 = arith.negf %301 : vector<8x32xf32>
    %303 = math.exp %302 : vector<8x32xf32>
    %cst_103 = arith.constant 1.000000e+00 : f32
    %304 = vector.broadcast %cst_103 : f32 to vector<8x32xf32>
    %305 = arith.addf %304, %303 : vector<8x32xf32>
    %306 = arith.divf %304, %305 : vector<8x32xf32>
    %307 = arith.mulf %298, %249 : vector<8x32xf32>
    %308 = arith.mulf %292, %300 : vector<8x32xf32>
    %309 = arith.addf %307, %308 : vector<8x32xf32>
    %310 = math.tanh %309 : vector<8x32xf32>
    %311 = arith.mulf %306, %310 : vector<8x32xf32>
    %c32_104 = arith.constant 32 : index
    %c0_105 = arith.constant 0 : index
    %312 = vector.load %arg16[%c32_104, %c0_105] : memref<64x32xf32, #tpu.memory_space<vmem>>, vector<8x32xf32>
    tpu.vector_store %arg16[%c32_104, %c0_105], %286 {strides = array<i32>} : memref<64x32xf32, #tpu.memory_space<vmem>>, vector<8x32xf32>,
    %c24_106 = arith.constant 24 : index
    %c0_107 = arith.constant 0 : index
    %313 = vector.load %arg17[%c24_106, %c0_107] : memref<64x32xf32, #tpu.memory_space<vmem>>, vector<8x32xf32>
    tpu.vector_store %arg17[%c24_106, %c0_107], %311 {strides = array<i32>} : memref<64x32xf32, #tpu.memory_space<vmem>>, vector<8x32xf32>,
    %c40_108 = arith.constant 40 : index
    %c0_109 = arith.constant 0 : index
    %314 = vector.load %arg18[%c40_108, %c0_109] : memref<64x128xf32, #tpu.memory_space<vmem>>, vector<8x128xf32>
    %c16_110 = arith.constant 16 : index
    %c0_111 = arith.constant 0 : index
    %315 = vector.load %arg19[%c16_110, %c0_111] : memref<64x128xf32, #tpu.memory_space<vmem>>, vector<8x128xf32>
    %c0_112 = arith.constant 0 : index
    %c0_113 = arith.constant 0 : index
    %316 = vector.load %arg2[%c0_112, %c0_113] : memref<32x128xf32, #tpu.memory_space<vmem>>, vector<32x128xf32>
    %cst_114 = arith.constant dense<0.000000e+00> : vector<8x128xf32>
    %317 = tpu.matmul %286, %316, %cst_114 {dimension_numbers = #tpu.dot_dimension_numbers<[1], [0], [0], [1], [0, 0, 1, 1], [], []>} : vector<8x32xf32>, vector<32x128xf32>, vector<8x128xf32> -> vector<8x128xf32>
    %318 = arith.addf %314, %317 : vector<8x128xf32>
    %c0_115 = arith.constant 0 : index
    %c0_116 = arith.constant 0 : index
    %319 = vector.load %arg5[%c0_115, %c0_116] : memref<32x128xf32, #tpu.memory_space<vmem>>, vector<32x128xf32>
    %cst_117 = arith.constant dense<0.000000e+00> : vector<8x128xf32>
    %320 = tpu.matmul %311, %319, %cst_117 {dimension_numbers = #tpu.dot_dimension_numbers<[1], [0], [0], [1], [0, 0, 1, 1], [], []>} : vector<8x32xf32>, vector<32x128xf32>, vector<8x128xf32> -> vector<8x128xf32>
    %321 = arith.addf %315, %320 : vector<8x128xf32>
    %322 = vector.extract_strided_slice %318 {offsets = [0, 0], sizes = [8, 32], strides = [1, 1]} : vector<8x128xf32> to vector<8x32xf32>
    %323 = arith.negf %322 : vector<8x32xf32>
    %324 = math.exp %323 : vector<8x32xf32>
    %cst_118 = arith.constant 1.000000e+00 : f32
    %325 = vector.broadcast %cst_118 : f32 to vector<8x32xf32>
    %326 = arith.addf %325, %324 : vector<8x32xf32>
    %327 = arith.divf %325, %326 : vector<8x32xf32>
    %328 = vector.extract_strided_slice %318 {offsets = [0, 32], sizes = [8, 32], strides = [1, 1]} : vector<8x128xf32> to vector<8x32xf32>
    %329 = arith.negf %328 : vector<8x32xf32>
    %330 = math.exp %329 : vector<8x32xf32>
    %cst_119 = arith.constant 1.000000e+00 : f32
    %331 = vector.broadcast %cst_119 : f32 to vector<8x32xf32>
    %332 = arith.addf %331, %330 : vector<8x32xf32>
    %333 = arith.divf %331, %332 : vector<8x32xf32>
    %334 = vector.extract_strided_slice %318 {offsets = [0, 64], sizes = [8, 32], strides = [1, 1]} : vector<8x128xf32> to vector<8x32xf32>
    %335 = math.tanh %334 : vector<8x32xf32>
    %336 = vector.extract_strided_slice %318 {offsets = [0, 96], sizes = [8, 32], strides = [1, 1]} : vector<8x128xf32> to vector<8x32xf32>
    %337 = arith.negf %336 : vector<8x32xf32>
    %338 = math.exp %337 : vector<8x32xf32>
    %cst_120 = arith.constant 1.000000e+00 : f32
    %339 = vector.broadcast %cst_120 : f32 to vector<8x32xf32>
    %340 = arith.addf %339, %338 : vector<8x32xf32>
    %341 = arith.divf %339, %340 : vector<8x32xf32>
    %342 = arith.mulf %333, %284 : vector<8x32xf32>
    %343 = arith.mulf %327, %335 : vector<8x32xf32>
    %344 = arith.addf %342, %343 : vector<8x32xf32>
    %345 = math.tanh %344 : vector<8x32xf32>
    %346 = arith.mulf %341, %345 : vector<8x32xf32>
    %347 = vector.extract_strided_slice %321 {offsets = [0, 0], sizes = [8, 32], strides = [1, 1]} : vector<8x128xf32> to vector<8x32xf32>
    %348 = arith.negf %347 : vector<8x32xf32>
    %349 = math.exp %348 : vector<8x32xf32>
    %cst_121 = arith.constant 1.000000e+00 : f32
    %350 = vector.broadcast %cst_121 : f32 to vector<8x32xf32>
    %351 = arith.addf %350, %349 : vector<8x32xf32>
    %352 = arith.divf %350, %351 : vector<8x32xf32>
    %353 = vector.extract_strided_slice %321 {offsets = [0, 32], sizes = [8, 32], strides = [1, 1]} : vector<8x128xf32> to vector<8x32xf32>
    %354 = arith.negf %353 : vector<8x32xf32>
    %355 = math.exp %354 : vector<8x32xf32>
    %cst_122 = arith.constant 1.000000e+00 : f32
    %356 = vector.broadcast %cst_122 : f32 to vector<8x32xf32>
    %357 = arith.addf %356, %355 : vector<8x32xf32>
    %358 = arith.divf %356, %357 : vector<8x32xf32>
    %359 = vector.extract_strided_slice %321 {offsets = [0, 64], sizes = [8, 32], strides = [1, 1]} : vector<8x128xf32> to vector<8x32xf32>
    %360 = math.tanh %359 : vector<8x32xf32>
    %361 = vector.extract_strided_slice %321 {offsets = [0, 96], sizes = [8, 32], strides = [1, 1]} : vector<8x128xf32> to vector<8x32xf32>
    %362 = arith.negf %361 : vector<8x32xf32>
    %363 = math.exp %362 : vector<8x32xf32>
    %cst_123 = arith.constant 1.000000e+00 : f32
    %364 = vector.broadcast %cst_123 : f32 to vector<8x32xf32>
    %365 = arith.addf %364, %363 : vector<8x32xf32>
    %366 = arith.divf %364, %365 : vector<8x32xf32>
    %367 = arith.mulf %358, %309 : vector<8x32xf32>
    %368 = arith.mulf %352, %360 : vector<8x32xf32>
    %369 = arith.addf %367, %368 : vector<8x32xf32>
    %370 = math.tanh %369 : vector<8x32xf32>
    %371 = arith.mulf %366, %370 : vector<8x32xf32>
    %c40_124 = arith.constant 40 : index
    %c0_125 = arith.constant 0 : index
    %372 = vector.load %arg16[%c40_124, %c0_125] : memref<64x32xf32, #tpu.memory_space<vmem>>, vector<8x32xf32>
    tpu.vector_store %arg16[%c40_124, %c0_125], %346 {strides = array<i32>} : memref<64x32xf32, #tpu.memory_space<vmem>>, vector<8x32xf32>,
    %c16_126 = arith.constant 16 : index
    %c0_127 = arith.constant 0 : index
    %373 = vector.load %arg17[%c16_126, %c0_127] : memref<64x32xf32, #tpu.memory_space<vmem>>, vector<8x32xf32>
    tpu.vector_store %arg17[%c16_126, %c0_127], %371 {strides = array<i32>} : memref<64x32xf32, #tpu.memory_space<vmem>>, vector<8x32xf32>,
    %c48_128 = arith.constant 48 : index
    %c0_129 = arith.constant 0 : index
    %374 = vector.load %arg18[%c48_128, %c0_129] : memref<64x128xf32, #tpu.memory_space<vmem>>, vector<8x128xf32>
    %c8_130 = arith.constant 8 : index
    %c0_131 = arith.constant 0 : index
    %375 = vector.load %arg19[%c8_130, %c0_131] : memref<64x128xf32, #tpu.memory_space<vmem>>, vector<8x128xf32>
    %c0_132 = arith.constant 0 : index
    %c0_133 = arith.constant 0 : index
    %376 = vector.load %arg2[%c0_132, %c0_133] : memref<32x128xf32, #tpu.memory_space<vmem>>, vector<32x128xf32>
    %cst_134 = arith.constant dense<0.000000e+00> : vector<8x128xf32>
    %377 = tpu.matmul %346, %376, %cst_134 {dimension_numbers = #tpu.dot_dimension_numbers<[1], [0], [0], [1], [0, 0, 1, 1], [], []>} : vector<8x32xf32>, vector<32x128xf32>, vector<8x128xf32> -> vector<8x128xf32>
    %378 = arith.addf %374, %377 : vector<8x128xf32>
    %c0_135 = arith.constant 0 : index
    %c0_136 = arith.constant 0 : index
    %379 = vector.load %arg5[%c0_135, %c0_136] : memref<32x128xf32, #tpu.memory_space<vmem>>, vector<32x128xf32>
    %cst_137 = arith.constant dense<0.000000e+00> : vector<8x128xf32>
    %380 = tpu.matmul %371, %379, %cst_137 {dimension_numbers = #tpu.dot_dimension_numbers<[1], [0], [0], [1], [0, 0, 1, 1], [], []>} : vector<8x32xf32>, vector<32x128xf32>, vector<8x128xf32> -> vector<8x128xf32>
    %381 = arith.addf %375, %380 : vector<8x128xf32>
    %382 = vector.extract_strided_slice %378 {offsets = [0, 0], sizes = [8, 32], strides = [1, 1]} : vector<8x128xf32> to vector<8x32xf32>
    %383 = arith.negf %382 : vector<8x32xf32>
    %384 = math.exp %383 : vector<8x32xf32>
    %cst_138 = arith.constant 1.000000e+00 : f32
    %385 = vector.broadcast %cst_138 : f32 to vector<8x32xf32>
    %386 = arith.addf %385, %384 : vector<8x32xf32>
    %387 = arith.divf %385, %386 : vector<8x32xf32>
    %388 = vector.extract_strided_slice %378 {offsets = [0, 32], sizes = [8, 32], strides = [1, 1]} : vector<8x128xf32> to vector<8x32xf32>
    %389 = arith.negf %388 : vector<8x32xf32>
    %390 = math.exp %389 : vector<8x32xf32>
    %cst_139 = arith.constant 1.000000e+00 : f32
    %391 = vector.broadcast %cst_139 : f32 to vector<8x32xf32>
    %392 = arith.addf %391, %390 : vector<8x32xf32>
    %393 = arith.divf %391, %392 : vector<8x32xf32>
    %394 = vector.extract_strided_slice %378 {offsets = [0, 64], sizes = [8, 32], strides = [1, 1]} : vector<8x128xf32> to vector<8x32xf32>
    %395 = math.tanh %394 : vector<8x32xf32>
    %396 = vector.extract_strided_slice %378 {offsets = [0, 96], sizes = [8, 32], strides = [1, 1]} : vector<8x128xf32> to vector<8x32xf32>
    %397 = arith.negf %396 : vector<8x32xf32>
    %398 = math.exp %397 : vector<8x32xf32>
    %cst_140 = arith.constant 1.000000e+00 : f32
    %399 = vector.broadcast %cst_140 : f32 to vector<8x32xf32>
    %400 = arith.addf %399, %398 : vector<8x32xf32>
    %401 = arith.divf %399, %400 : vector<8x32xf32>
    %402 = arith.mulf %393, %344 : vector<8x32xf32>
    %403 = arith.mulf %387, %395 : vector<8x32xf32>
    %404 = arith.addf %402, %403 : vector<8x32xf32>
    %405 = math.tanh %404 : vector<8x32xf32>
    %406 = arith.mulf %401, %405 : vector<8x32xf32>
    %407 = vector.extract_strided_slice %381 {offsets = [0, 0], sizes = [8, 32], strides = [1, 1]} : vector<8x128xf32> to vector<8x32xf32>
    %408 = arith.negf %407 : vector<8x32xf32>
    %409 = math.exp %408 : vector<8x32xf32>
    %cst_141 = arith.constant 1.000000e+00 : f32
    %410 = vector.broadcast %cst_141 : f32 to vector<8x32xf32>
    %411 = arith.addf %410, %409 : vector<8x32xf32>
    %412 = arith.divf %410, %411 : vector<8x32xf32>
    %413 = vector.extract_strided_slice %381 {offsets = [0, 32], sizes = [8, 32], strides = [1, 1]} : vector<8x128xf32> to vector<8x32xf32>
    %414 = arith.negf %413 : vector<8x32xf32>
    %415 = math.exp %414 : vector<8x32xf32>
    %cst_142 = arith.constant 1.000000e+00 : f32
    %416 = vector.broadcast %cst_142 : f32 to vector<8x32xf32>
    %417 = arith.addf %416, %415 : vector<8x32xf32>
    %418 = arith.divf %416, %417 : vector<8x32xf32>
    %419 = vector.extract_strided_slice %381 {offsets = [0, 64], sizes = [8, 32], strides = [1, 1]} : vector<8x128xf32> to vector<8x32xf32>
    %420 = math.tanh %419 : vector<8x32xf32>
    %421 = vector.extract_strided_slice %381 {offsets = [0, 96], sizes = [8, 32], strides = [1, 1]} : vector<8x128xf32> to vector<8x32xf32>
    %422 = arith.negf %421 : vector<8x32xf32>
    %423 = math.exp %422 : vector<8x32xf32>
    %cst_143 = arith.constant 1.000000e+00 : f32
    %424 = vector.broadcast %cst_143 : f32 to vector<8x32xf32>
    %425 = arith.addf %424, %423 : vector<8x32xf32>
    %426 = arith.divf %424, %425 : vector<8x32xf32>
    %427 = arith.mulf %418, %369 : vector<8x32xf32>
    %428 = arith.mulf %412, %420 : vector<8x32xf32>
    %429 = arith.addf %427, %428 : vector<8x32xf32>
    %430 = math.tanh %429 : vector<8x32xf32>
    %431 = arith.mulf %426, %430 : vector<8x32xf32>
    %c48_144 = arith.constant 48 : index
    %c0_145 = arith.constant 0 : index
    %432 = vector.load %arg16[%c48_144, %c0_145] : memref<64x32xf32, #tpu.memory_space<vmem>>, vector<8x32xf32>
    tpu.vector_store %arg16[%c48_144, %c0_145], %406 {strides = array<i32>} : memref<64x32xf32, #tpu.memory_space<vmem>>, vector<8x32xf32>,
    %c8_146 = arith.constant 8 : index
    %c0_147 = arith.constant 0 : index
    %433 = vector.load %arg17[%c8_146, %c0_147] : memref<64x32xf32, #tpu.memory_space<vmem>>, vector<8x32xf32>
    tpu.vector_store %arg17[%c8_146, %c0_147], %431 {strides = array<i32>} : memref<64x32xf32, #tpu.memory_space<vmem>>, vector<8x32xf32>,
    %c56_148 = arith.constant 56 : index
    %c0_149 = arith.constant 0 : index
    %434 = vector.load %arg18[%c56_148, %c0_149] : memref<64x128xf32, #tpu.memory_space<vmem>>, vector<8x128xf32>
    %c0_150 = arith.constant 0 : index
    %c0_151 = arith.constant 0 : index
    %435 = vector.load %arg19[%c0_150, %c0_151] : memref<64x128xf32, #tpu.memory_space<vmem>>, vector<8x128xf32>
    %c0_152 = arith.constant 0 : index
    %c0_153 = arith.constant 0 : index
    %436 = vector.load %arg2[%c0_152, %c0_153] : memref<32x128xf32, #tpu.memory_space<vmem>>, vector<32x128xf32>
    %cst_154 = arith.constant dense<0.000000e+00> : vector<8x128xf32>
    %437 = tpu.matmul %406, %436, %cst_154 {dimension_numbers = #tpu.dot_dimension_numbers<[1], [0], [0], [1], [0, 0, 1, 1], [], []>} : vector<8x32xf32>, vector<32x128xf32>, vector<8x128xf32> -> vector<8x128xf32>
    %438 = arith.addf %434, %437 : vector<8x128xf32>
    %c0_155 = arith.constant 0 : index
    %c0_156 = arith.constant 0 : index
    %439 = vector.load %arg5[%c0_155, %c0_156] : memref<32x128xf32, #tpu.memory_space<vmem>>, vector<32x128xf32>
    %cst_157 = arith.constant dense<0.000000e+00> : vector<8x128xf32>
    %440 = tpu.matmul %431, %439, %cst_157 {dimension_numbers = #tpu.dot_dimension_numbers<[1], [0], [0], [1], [0, 0, 1, 1], [], []>} : vector<8x32xf32>, vector<32x128xf32>, vector<8x128xf32> -> vector<8x128xf32>
    %441 = arith.addf %435, %440 : vector<8x128xf32>
    %442 = vector.extract_strided_slice %438 {offsets = [0, 0], sizes = [8, 32], strides = [1, 1]} : vector<8x128xf32> to vector<8x32xf32>
    %443 = arith.negf %442 : vector<8x32xf32>
    %444 = math.exp %443 : vector<8x32xf32>
    %cst_158 = arith.constant 1.000000e+00 : f32
    %445 = vector.broadcast %cst_158 : f32 to vector<8x32xf32>
    %446 = arith.addf %445, %444 : vector<8x32xf32>
    %447 = arith.divf %445, %446 : vector<8x32xf32>
    %448 = vector.extract_strided_slice %438 {offsets = [0, 32], sizes = [8, 32], strides = [1, 1]} : vector<8x128xf32> to vector<8x32xf32>
    %449 = arith.negf %448 : vector<8x32xf32>
    %450 = math.exp %449 : vector<8x32xf32>
    %cst_159 = arith.constant 1.000000e+00 : f32
    %451 = vector.broadcast %cst_159 : f32 to vector<8x32xf32>
    %452 = arith.addf %451, %450 : vector<8x32xf32>
    %453 = arith.divf %451, %452 : vector<8x32xf32>
    %454 = vector.extract_strided_slice %438 {offsets = [0, 64], sizes = [8, 32], strides = [1, 1]} : vector<8x128xf32> to vector<8x32xf32>
    %455 = math.tanh %454 : vector<8x32xf32>
    %456 = vector.extract_strided_slice %438 {offsets = [0, 96], sizes = [8, 32], strides = [1, 1]} : vector<8x128xf32> to vector<8x32xf32>
    %457 = arith.negf %456 : vector<8x32xf32>
    %458 = math.exp %457 : vector<8x32xf32>
    %cst_160 = arith.constant 1.000000e+00 : f32
    %459 = vector.broadcast %cst_160 : f32 to vector<8x32xf32>
    %460 = arith.addf %459, %458 : vector<8x32xf32>
    %461 = arith.divf %459, %460 : vector<8x32xf32>
    %462 = arith.mulf %453, %404 : vector<8x32xf32>
    %463 = arith.mulf %447, %455 : vector<8x32xf32>
    %464 = arith.addf %462, %463 : vector<8x32xf32>
    %465 = math.tanh %464 : vector<8x32xf32>
    %466 = arith.mulf %461, %465 : vector<8x32xf32>
    %467 = vector.extract_strided_slice %441 {offsets = [0, 0], sizes = [8, 32], strides = [1, 1]} : vector<8x128xf32> to vector<8x32xf32>
    %468 = arith.negf %467 : vector<8x32xf32>
    %469 = math.exp %468 : vector<8x32xf32>
    %cst_161 = arith.constant 1.000000e+00 : f32
    %470 = vector.broadcast %cst_161 : f32 to vector<8x32xf32>
    %471 = arith.addf %470, %469 : vector<8x32xf32>
    %472 = arith.divf %470, %471 : vector<8x32xf32>
    %473 = vector.extract_strided_slice %441 {offsets = [0, 32], sizes = [8, 32], strides = [1, 1]} : vector<8x128xf32> to vector<8x32xf32>
    %474 = arith.negf %473 : vector<8x32xf32>
    %475 = math.exp %474 : vector<8x32xf32>
    %cst_162 = arith.constant 1.000000e+00 : f32
    %476 = vector.broadcast %cst_162 : f32 to vector<8x32xf32>
    %477 = arith.addf %476, %475 : vector<8x32xf32>
    %478 = arith.divf %476, %477 : vector<8x32xf32>
    %479 = vector.extract_strided_slice %441 {offsets = [0, 64], sizes = [8, 32], strides = [1, 1]} : vector<8x128xf32> to vector<8x32xf32>
    %480 = math.tanh %479 : vector<8x32xf32>
    %481 = vector.extract_strided_slice %441 {offsets = [0, 96], sizes = [8, 32], strides = [1, 1]} : vector<8x128xf32> to vector<8x32xf32>
    %482 = arith.negf %481 : vector<8x32xf32>
    %483 = math.exp %482 : vector<8x32xf32>
    %cst_163 = arith.constant 1.000000e+00 : f32
    %484 = vector.broadcast %cst_163 : f32 to vector<8x32xf32>
    %485 = arith.addf %484, %483 : vector<8x32xf32>
    %486 = arith.divf %484, %485 : vector<8x32xf32>
    %487 = arith.mulf %478, %429 : vector<8x32xf32>
    %488 = arith.mulf %472, %480 : vector<8x32xf32>
    %489 = arith.addf %487, %488 : vector<8x32xf32>
    %490 = math.tanh %489 : vector<8x32xf32>
    %491 = arith.mulf %486, %490 : vector<8x32xf32>
    %c56_164 = arith.constant 56 : index
    %c0_165 = arith.constant 0 : index
    %492 = vector.load %arg16[%c56_164, %c0_165] : memref<64x32xf32, #tpu.memory_space<vmem>>, vector<8x32xf32>
    tpu.vector_store %arg16[%c56_164, %c0_165], %466 {strides = array<i32>} : memref<64x32xf32, #tpu.memory_space<vmem>>, vector<8x32xf32>,
    %c0_166 = arith.constant 0 : index
    %c0_167 = arith.constant 0 : index
    %493 = vector.load %arg17[%c0_166, %c0_167] : memref<64x32xf32, #tpu.memory_space<vmem>>, vector<8x32xf32>
    tpu.vector_store %arg17[%c0_166, %c0_167], %491 {strides = array<i32>} : memref<64x32xf32, #tpu.memory_space<vmem>>, vector<8x32xf32>,
    %c0_168 = arith.constant 0 : index
    %c0_169 = arith.constant 0 : index
    %494 = vector.load %arg16[%c0_168, %c0_169] : memref<64x32xf32, #tpu.memory_space<vmem>>, vector<64x32xf32>
    %c0_170 = arith.constant 0 : index
    %c0_171 = arith.constant 0 : index
    %495 = vector.load %arg17[%c0_170, %c0_171] : memref<64x32xf32, #tpu.memory_space<vmem>>, vector<64x32xf32>
    %c0_172 = arith.constant 0 : index
    %c0_173 = arith.constant 0 : index
    %496 = vector.load %arg7[%c0_172, %c0_173] : memref<64x128xf32, #tpu.memory_space<vmem>>, vector<32x128xf32>
    %cst_174 = arith.constant dense<0.000000e+00> : vector<64x128xf32>
    %497 = tpu.matmul %494, %496, %cst_174 {dimension_numbers = #tpu.dot_dimension_numbers<[1], [0], [0], [1], [0, 0, 1, 1], [], []>} : vector<64x32xf32>, vector<32x128xf32>, vector<64x128xf32> -> vector<64x128xf32>
    %c32_175 = arith.constant 32 : index
    %c0_176 = arith.constant 0 : index
    %498 = vector.load %arg7[%c32_175, %c0_176] : memref<64x128xf32, #tpu.memory_space<vmem>>, vector<32x128xf32>
    %cst_177 = arith.constant dense<0.000000e+00> : vector<64x128xf32>
    %499 = tpu.matmul %495, %498, %cst_177 {dimension_numbers = #tpu.dot_dimension_numbers<[1], [0], [0], [1], [0, 0, 1, 1], [], []>} : vector<64x32xf32>, vector<32x128xf32>, vector<64x128xf32> -> vector<64x128xf32>
    %500 = arith.addf %497, %499 : vector<64x128xf32>
    %c0_178 = arith.constant 0 : index
    %c0_179 = arith.constant 0 : index
    %501 = vector.load %arg9[%c0_178, %c0_179] : memref<1x128xf32, #tpu.memory_space<vmem>>, vector<1x128xf32>
    %502 = vector.broadcast %501 : vector<1x128xf32> to vector<64x128xf32>
    %503 = arith.addf %500, %502 : vector<64x128xf32>
    %c0_180 = arith.constant 0 : index
    %c0_181 = arith.constant 0 : index
    %504 = vector.load %arg18[%c0_180, %c0_181] : memref<64x128xf32, #tpu.memory_space<vmem>>, vector<64x128xf32>
    tpu.vector_store %arg18[%c0_180, %c0_181], %503 {strides = array<i32>} : memref<64x128xf32, #tpu.memory_space<vmem>>, vector<64x128xf32>,
    %c0_182 = arith.constant 0 : index
    %c0_183 = arith.constant 0 : index
    %505 = vector.load %arg10[%c0_182, %c0_183] : memref<64x128xf32, #tpu.memory_space<vmem>>, vector<32x128xf32>
    %cst_184 = arith.constant dense<0.000000e+00> : vector<64x128xf32>
    %506 = tpu.matmul %494, %505, %cst_184 {dimension_numbers = #tpu.dot_dimension_numbers<[1], [0], [0], [1], [0, 0, 1, 1], [], []>} : vector<64x32xf32>, vector<32x128xf32>, vector<64x128xf32> -> vector<64x128xf32>
    %c32_185 = arith.constant 32 : index
    %c0_186 = arith.constant 0 : index
    %507 = vector.load %arg10[%c32_185, %c0_186] : memref<64x128xf32, #tpu.memory_space<vmem>>, vector<32x128xf32>
    %cst_187 = arith.constant dense<0.000000e+00> : vector<64x128xf32>
    %508 = tpu.matmul %495, %507, %cst_187 {dimension_numbers = #tpu.dot_dimension_numbers<[1], [0], [0], [1], [0, 0, 1, 1], [], []>} : vector<64x32xf32>, vector<32x128xf32>, vector<64x128xf32> -> vector<64x128xf32>
    %509 = arith.addf %506, %508 : vector<64x128xf32>
    %c0_188 = arith.constant 0 : index
    %c0_189 = arith.constant 0 : index
    %510 = vector.load %arg12[%c0_188, %c0_189] : memref<1x128xf32, #tpu.memory_space<vmem>>, vector<1x128xf32>
    %511 = vector.broadcast %510 : vector<1x128xf32> to vector<64x128xf32>
    %512 = arith.addf %509, %511 : vector<64x128xf32>
    %c0_190 = arith.constant 0 : index
    %c0_191 = arith.constant 0 : index
    %513 = vector.load %arg19[%c0_190, %c0_191] : memref<64x128xf32, #tpu.memory_space<vmem>>, vector<64x128xf32>
    tpu.vector_store %arg19[%c0_190, %c0_191], %512 {strides = array<i32>} : memref<64x128xf32, #tpu.memory_space<vmem>>, vector<64x128xf32>,
    %cst_192 = arith.constant 0.000000e+00 : f32
    %514 = vector.broadcast %cst_192 : f32 to vector<8x32xf32>
    %c0_193 = arith.constant 0 : index
    %c0_194 = arith.constant 0 : index
    %515 = vector.load %arg18[%c0_193, %c0_194] : memref<64x128xf32, #tpu.memory_space<vmem>>, vector<8x128xf32>
    %c56_195 = arith.constant 56 : index
    %c0_196 = arith.constant 0 : index
    %516 = vector.load %arg19[%c56_195, %c0_196] : memref<64x128xf32, #tpu.memory_space<vmem>>, vector<8x128xf32>
    %c0_197 = arith.constant 0 : index
    %c0_198 = arith.constant 0 : index
    %517 = vector.load %arg8[%c0_197, %c0_198] : memref<32x128xf32, #tpu.memory_space<vmem>>, vector<32x128xf32>
    %cst_199 = arith.constant dense<0.000000e+00> : vector<8x128xf32>
    %518 = tpu.matmul %514, %517, %cst_199 {dimension_numbers = #tpu.dot_dimension_numbers<[1], [0], [0], [1], [0, 0, 1, 1], [], []>} : vector<8x32xf32>, vector<32x128xf32>, vector<8x128xf32> -> vector<8x128xf32>
    %519 = arith.addf %515, %518 : vector<8x128xf32>
    %c0_200 = arith.constant 0 : index
    %c0_201 = arith.constant 0 : index
    %520 = vector.load %arg11[%c0_200, %c0_201] : memref<32x128xf32, #tpu.memory_space<vmem>>, vector<32x128xf32>
    %cst_202 = arith.constant dense<0.000000e+00> : vector<8x128xf32>
    %521 = tpu.matmul %514, %520, %cst_202 {dimension_numbers = #tpu.dot_dimension_numbers<[1], [0], [0], [1], [0, 0, 1, 1], [], []>} : vector<8x32xf32>, vector<32x128xf32>, vector<8x128xf32> -> vector<8x128xf32>
    %522 = arith.addf %516, %521 : vector<8x128xf32>
    %523 = vector.extract_strided_slice %519 {offsets = [0, 0], sizes = [8, 32], strides = [1, 1]} : vector<8x128xf32> to vector<8x32xf32>
    %524 = arith.negf %523 : vector<8x32xf32>
    %525 = math.exp %524 : vector<8x32xf32>
    %cst_203 = arith.constant 1.000000e+00 : f32
    %526 = vector.broadcast %cst_203 : f32 to vector<8x32xf32>
    %527 = arith.addf %526, %525 : vector<8x32xf32>
    %528 = arith.divf %526, %527 : vector<8x32xf32>
    %529 = vector.extract_strided_slice %519 {offsets = [0, 32], sizes = [8, 32], strides = [1, 1]} : vector<8x128xf32> to vector<8x32xf32>
    %530 = arith.negf %529 : vector<8x32xf32>
    %531 = math.exp %530 : vector<8x32xf32>
    %cst_204 = arith.constant 1.000000e+00 : f32
    %532 = vector.broadcast %cst_204 : f32 to vector<8x32xf32>
    %533 = arith.addf %532, %531 : vector<8x32xf32>
    %534 = arith.divf %532, %533 : vector<8x32xf32>
    %535 = vector.extract_strided_slice %519 {offsets = [0, 64], sizes = [8, 32], strides = [1, 1]} : vector<8x128xf32> to vector<8x32xf32>
    %536 = math.tanh %535 : vector<8x32xf32>
    %537 = vector.extract_strided_slice %519 {offsets = [0, 96], sizes = [8, 32], strides = [1, 1]} : vector<8x128xf32> to vector<8x32xf32>
    %538 = arith.negf %537 : vector<8x32xf32>
    %539 = math.exp %538 : vector<8x32xf32>
    %cst_205 = arith.constant 1.000000e+00 : f32
    %540 = vector.broadcast %cst_205 : f32 to vector<8x32xf32>
    %541 = arith.addf %540, %539 : vector<8x32xf32>
    %542 = arith.divf %540, %541 : vector<8x32xf32>
    %543 = arith.mulf %534, %514 : vector<8x32xf32>
    %544 = arith.mulf %528, %536 : vector<8x32xf32>
    %545 = arith.addf %543, %544 : vector<8x32xf32>
    %546 = math.tanh %545 : vector<8x32xf32>
    %547 = arith.mulf %542, %546 : vector<8x32xf32>
    %548 = vector.extract_strided_slice %522 {offsets = [0, 0], sizes = [8, 32], strides = [1, 1]} : vector<8x128xf32> to vector<8x32xf32>
    %549 = arith.negf %548 : vector<8x32xf32>
    %550 = math.exp %549 : vector<8x32xf32>
    %cst_206 = arith.constant 1.000000e+00 : f32
    %551 = vector.broadcast %cst_206 : f32 to vector<8x32xf32>
    %552 = arith.addf %551, %550 : vector<8x32xf32>
    %553 = arith.divf %551, %552 : vector<8x32xf32>
    %554 = vector.extract_strided_slice %522 {offsets = [0, 32], sizes = [8, 32], strides = [1, 1]} : vector<8x128xf32> to vector<8x32xf32>
    %555 = arith.negf %554 : vector<8x32xf32>
    %556 = math.exp %555 : vector<8x32xf32>
    %cst_207 = arith.constant 1.000000e+00 : f32
    %557 = vector.broadcast %cst_207 : f32 to vector<8x32xf32>
    %558 = arith.addf %557, %556 : vector<8x32xf32>
    %559 = arith.divf %557, %558 : vector<8x32xf32>
    %560 = vector.extract_strided_slice %522 {offsets = [0, 64], sizes = [8, 32], strides = [1, 1]} : vector<8x128xf32> to vector<8x32xf32>
    %561 = math.tanh %560 : vector<8x32xf32>
    %562 = vector.extract_strided_slice %522 {offsets = [0, 96], sizes = [8, 32], strides = [1, 1]} : vector<8x128xf32> to vector<8x32xf32>
    %563 = arith.negf %562 : vector<8x32xf32>
    %564 = math.exp %563 : vector<8x32xf32>
    %cst_208 = arith.constant 1.000000e+00 : f32
    %565 = vector.broadcast %cst_208 : f32 to vector<8x32xf32>
    %566 = arith.addf %565, %564 : vector<8x32xf32>
    %567 = arith.divf %565, %566 : vector<8x32xf32>
    %568 = arith.mulf %559, %514 : vector<8x32xf32>
    %569 = arith.mulf %553, %561 : vector<8x32xf32>
    %570 = arith.addf %568, %569 : vector<8x32xf32>
    %571 = math.tanh %570 : vector<8x32xf32>
    %572 = arith.mulf %567, %571 : vector<8x32xf32>
    %c8_209 = arith.constant 8 : index
    %c0_210 = arith.constant 0 : index
    %573 = vector.load %arg18[%c8_209, %c0_210] : memref<64x128xf32, #tpu.memory_space<vmem>>, vector<8x128xf32>
    %c48_211 = arith.constant 48 : index
    %c0_212 = arith.constant 0 : index
    %574 = vector.load %arg19[%c48_211, %c0_212] : memref<64x128xf32, #tpu.memory_space<vmem>>, vector<8x128xf32>
    %c0_213 = arith.constant 0 : index
    %c0_214 = arith.constant 0 : index
    %575 = vector.load %arg8[%c0_213, %c0_214] : memref<32x128xf32, #tpu.memory_space<vmem>>, vector<32x128xf32>
    %cst_215 = arith.constant dense<0.000000e+00> : vector<8x128xf32>
    %576 = tpu.matmul %547, %575, %cst_215 {dimension_numbers = #tpu.dot_dimension_numbers<[1], [0], [0], [1], [0, 0, 1, 1], [], []>} : vector<8x32xf32>, vector<32x128xf32>, vector<8x128xf32> -> vector<8x128xf32>
    %577 = arith.addf %573, %576 : vector<8x128xf32>
    %c0_216 = arith.constant 0 : index
    %c0_217 = arith.constant 0 : index
    %578 = vector.load %arg11[%c0_216, %c0_217] : memref<32x128xf32, #tpu.memory_space<vmem>>, vector<32x128xf32>
    %cst_218 = arith.constant dense<0.000000e+00> : vector<8x128xf32>
    %579 = tpu.matmul %572, %578, %cst_218 {dimension_numbers = #tpu.dot_dimension_numbers<[1], [0], [0], [1], [0, 0, 1, 1], [], []>} : vector<8x32xf32>, vector<32x128xf32>, vector<8x128xf32> -> vector<8x128xf32>
    %580 = arith.addf %574, %579 : vector<8x128xf32>
    %581 = vector.extract_strided_slice %577 {offsets = [0, 0], sizes = [8, 32], strides = [1, 1]} : vector<8x128xf32> to vector<8x32xf32>
    %582 = arith.negf %581 : vector<8x32xf32>
    %583 = math.exp %582 : vector<8x32xf32>
    %cst_219 = arith.constant 1.000000e+00 : f32
    %584 = vector.broadcast %cst_219 : f32 to vector<8x32xf32>
    %585 = arith.addf %584, %583 : vector<8x32xf32>
    %586 = arith.divf %584, %585 : vector<8x32xf32>
    %587 = vector.extract_strided_slice %577 {offsets = [0, 32], sizes = [8, 32], strides = [1, 1]} : vector<8x128xf32> to vector<8x32xf32>
    %588 = arith.negf %587 : vector<8x32xf32>
    %589 = math.exp %588 : vector<8x32xf32>
    %cst_220 = arith.constant 1.000000e+00 : f32
    %590 = vector.broadcast %cst_220 : f32 to vector<8x32xf32>
    %591 = arith.addf %590, %589 : vector<8x32xf32>
    %592 = arith.divf %590, %591 : vector<8x32xf32>
    %593 = vector.extract_strided_slice %577 {offsets = [0, 64], sizes = [8, 32], strides = [1, 1]} : vector<8x128xf32> to vector<8x32xf32>
    %594 = math.tanh %593 : vector<8x32xf32>
    %595 = vector.extract_strided_slice %577 {offsets = [0, 96], sizes = [8, 32], strides = [1, 1]} : vector<8x128xf32> to vector<8x32xf32>
    %596 = arith.negf %595 : vector<8x32xf32>
    %597 = math.exp %596 : vector<8x32xf32>
    %cst_221 = arith.constant 1.000000e+00 : f32
    %598 = vector.broadcast %cst_221 : f32 to vector<8x32xf32>
    %599 = arith.addf %598, %597 : vector<8x32xf32>
    %600 = arith.divf %598, %599 : vector<8x32xf32>
    %601 = arith.mulf %592, %545 : vector<8x32xf32>
    %602 = arith.mulf %586, %594 : vector<8x32xf32>
    %603 = arith.addf %601, %602 : vector<8x32xf32>
    %604 = math.tanh %603 : vector<8x32xf32>
    %605 = arith.mulf %600, %604 : vector<8x32xf32>
    %606 = vector.extract_strided_slice %580 {offsets = [0, 0], sizes = [8, 32], strides = [1, 1]} : vector<8x128xf32> to vector<8x32xf32>
    %607 = arith.negf %606 : vector<8x32xf32>
    %608 = math.exp %607 : vector<8x32xf32>
    %cst_222 = arith.constant 1.000000e+00 : f32
    %609 = vector.broadcast %cst_222 : f32 to vector<8x32xf32>
    %610 = arith.addf %609, %608 : vector<8x32xf32>
    %611 = arith.divf %609, %610 : vector<8x32xf32>
    %612 = vector.extract_strided_slice %580 {offsets = [0, 32], sizes = [8, 32], strides = [1, 1]} : vector<8x128xf32> to vector<8x32xf32>
    %613 = arith.negf %612 : vector<8x32xf32>
    %614 = math.exp %613 : vector<8x32xf32>
    %cst_223 = arith.constant 1.000000e+00 : f32
    %615 = vector.broadcast %cst_223 : f32 to vector<8x32xf32>
    %616 = arith.addf %615, %614 : vector<8x32xf32>
    %617 = arith.divf %615, %616 : vector<8x32xf32>
    %618 = vector.extract_strided_slice %580 {offsets = [0, 64], sizes = [8, 32], strides = [1, 1]} : vector<8x128xf32> to vector<8x32xf32>
    %619 = math.tanh %618 : vector<8x32xf32>
    %620 = vector.extract_strided_slice %580 {offsets = [0, 96], sizes = [8, 32], strides = [1, 1]} : vector<8x128xf32> to vector<8x32xf32>
    %621 = arith.negf %620 : vector<8x32xf32>
    %622 = math.exp %621 : vector<8x32xf32>
    %cst_224 = arith.constant 1.000000e+00 : f32
    %623 = vector.broadcast %cst_224 : f32 to vector<8x32xf32>
    %624 = arith.addf %623, %622 : vector<8x32xf32>
    %625 = arith.divf %623, %624 : vector<8x32xf32>
    %626 = arith.mulf %617, %570 : vector<8x32xf32>
    %627 = arith.mulf %611, %619 : vector<8x32xf32>
    %628 = arith.addf %626, %627 : vector<8x32xf32>
    %629 = math.tanh %628 : vector<8x32xf32>
    %630 = arith.mulf %625, %629 : vector<8x32xf32>
    %c16_225 = arith.constant 16 : index
    %c0_226 = arith.constant 0 : index
    %631 = vector.load %arg18[%c16_225, %c0_226] : memref<64x128xf32, #tpu.memory_space<vmem>>, vector<8x128xf32>
    %c40_227 = arith.constant 40 : index
    %c0_228 = arith.constant 0 : index
    %632 = vector.load %arg19[%c40_227, %c0_228] : memref<64x128xf32, #tpu.memory_space<vmem>>, vector<8x128xf32>
    %c0_229 = arith.constant 0 : index
    %c0_230 = arith.constant 0 : index
    %633 = vector.load %arg8[%c0_229, %c0_230] : memref<32x128xf32, #tpu.memory_space<vmem>>, vector<32x128xf32>
    %cst_231 = arith.constant dense<0.000000e+00> : vector<8x128xf32>
    %634 = tpu.matmul %605, %633, %cst_231 {dimension_numbers = #tpu.dot_dimension_numbers<[1], [0], [0], [1], [0, 0, 1, 1], [], []>} : vector<8x32xf32>, vector<32x128xf32>, vector<8x128xf32> -> vector<8x128xf32>
    %635 = arith.addf %631, %634 : vector<8x128xf32>
    %c0_232 = arith.constant 0 : index
    %c0_233 = arith.constant 0 : index
    %636 = vector.load %arg11[%c0_232, %c0_233] : memref<32x128xf32, #tpu.memory_space<vmem>>, vector<32x128xf32>
    %cst_234 = arith.constant dense<0.000000e+00> : vector<8x128xf32>
    %637 = tpu.matmul %630, %636, %cst_234 {dimension_numbers = #tpu.dot_dimension_numbers<[1], [0], [0], [1], [0, 0, 1, 1], [], []>} : vector<8x32xf32>, vector<32x128xf32>, vector<8x128xf32> -> vector<8x128xf32>
    %638 = arith.addf %632, %637 : vector<8x128xf32>
    %639 = vector.extract_strided_slice %635 {offsets = [0, 0], sizes = [8, 32], strides = [1, 1]} : vector<8x128xf32> to vector<8x32xf32>
    %640 = arith.negf %639 : vector<8x32xf32>
    %641 = math.exp %640 : vector<8x32xf32>
    %cst_235 = arith.constant 1.000000e+00 : f32
    %642 = vector.broadcast %cst_235 : f32 to vector<8x32xf32>
    %643 = arith.addf %642, %641 : vector<8x32xf32>
    %644 = arith.divf %642, %643 : vector<8x32xf32>
    %645 = vector.extract_strided_slice %635 {offsets = [0, 32], sizes = [8, 32], strides = [1, 1]} : vector<8x128xf32> to vector<8x32xf32>
    %646 = arith.negf %645 : vector<8x32xf32>
    %647 = math.exp %646 : vector<8x32xf32>
    %cst_236 = arith.constant 1.000000e+00 : f32
    %648 = vector.broadcast %cst_236 : f32 to vector<8x32xf32>
    %649 = arith.addf %648, %647 : vector<8x32xf32>
    %650 = arith.divf %648, %649 : vector<8x32xf32>
    %651 = vector.extract_strided_slice %635 {offsets = [0, 64], sizes = [8, 32], strides = [1, 1]} : vector<8x128xf32> to vector<8x32xf32>
    %652 = math.tanh %651 : vector<8x32xf32>
    %653 = vector.extract_strided_slice %635 {offsets = [0, 96], sizes = [8, 32], strides = [1, 1]} : vector<8x128xf32> to vector<8x32xf32>
    %654 = arith.negf %653 : vector<8x32xf32>
    %655 = math.exp %654 : vector<8x32xf32>
    %cst_237 = arith.constant 1.000000e+00 : f32
    %656 = vector.broadcast %cst_237 : f32 to vector<8x32xf32>
    %657 = arith.addf %656, %655 : vector<8x32xf32>
    %658 = arith.divf %656, %657 : vector<8x32xf32>
    %659 = arith.mulf %650, %603 : vector<8x32xf32>
    %660 = arith.mulf %644, %652 : vector<8x32xf32>
    %661 = arith.addf %659, %660 : vector<8x32xf32>
    %662 = math.tanh %661 : vector<8x32xf32>
    %663 = arith.mulf %658, %662 : vector<8x32xf32>
    %664 = vector.extract_strided_slice %638 {offsets = [0, 0], sizes = [8, 32], strides = [1, 1]} : vector<8x128xf32> to vector<8x32xf32>
    %665 = arith.negf %664 : vector<8x32xf32>
    %666 = math.exp %665 : vector<8x32xf32>
    %cst_238 = arith.constant 1.000000e+00 : f32
    %667 = vector.broadcast %cst_238 : f32 to vector<8x32xf32>
    %668 = arith.addf %667, %666 : vector<8x32xf32>
    %669 = arith.divf %667, %668 : vector<8x32xf32>
    %670 = vector.extract_strided_slice %638 {offsets = [0, 32], sizes = [8, 32], strides = [1, 1]} : vector<8x128xf32> to vector<8x32xf32>
    %671 = arith.negf %670 : vector<8x32xf32>
    %672 = math.exp %671 : vector<8x32xf32>
    %cst_239 = arith.constant 1.000000e+00 : f32
    %673 = vector.broadcast %cst_239 : f32 to vector<8x32xf32>
    %674 = arith.addf %673, %672 : vector<8x32xf32>
    %675 = arith.divf %673, %674 : vector<8x32xf32>
    %676 = vector.extract_strided_slice %638 {offsets = [0, 64], sizes = [8, 32], strides = [1, 1]} : vector<8x128xf32> to vector<8x32xf32>
    %677 = math.tanh %676 : vector<8x32xf32>
    %678 = vector.extract_strided_slice %638 {offsets = [0, 96], sizes = [8, 32], strides = [1, 1]} : vector<8x128xf32> to vector<8x32xf32>
    %679 = arith.negf %678 : vector<8x32xf32>
    %680 = math.exp %679 : vector<8x32xf32>
    %cst_240 = arith.constant 1.000000e+00 : f32
    %681 = vector.broadcast %cst_240 : f32 to vector<8x32xf32>
    %682 = arith.addf %681, %680 : vector<8x32xf32>
    %683 = arith.divf %681, %682 : vector<8x32xf32>
    %684 = arith.mulf %675, %628 : vector<8x32xf32>
    %685 = arith.mulf %669, %677 : vector<8x32xf32>
    %686 = arith.addf %684, %685 : vector<8x32xf32>
    %687 = math.tanh %686 : vector<8x32xf32>
    %688 = arith.mulf %683, %687 : vector<8x32xf32>
    %c24_241 = arith.constant 24 : index
    %c0_242 = arith.constant 0 : index
    %689 = vector.load %arg18[%c24_241, %c0_242] : memref<64x128xf32, #tpu.memory_space<vmem>>, vector<8x128xf32>
    %c32_243 = arith.constant 32 : index
    %c0_244 = arith.constant 0 : index
    %690 = vector.load %arg19[%c32_243, %c0_244] : memref<64x128xf32, #tpu.memory_space<vmem>>, vector<8x128xf32>
    %c0_245 = arith.constant 0 : index
    %c0_246 = arith.constant 0 : index
    %691 = vector.load %arg8[%c0_245, %c0_246] : memref<32x128xf32, #tpu.memory_space<vmem>>, vector<32x128xf32>
    %cst_247 = arith.constant dense<0.000000e+00> : vector<8x128xf32>
    %692 = tpu.matmul %663, %691, %cst_247 {dimension_numbers = #tpu.dot_dimension_numbers<[1], [0], [0], [1], [0, 0, 1, 1], [], []>} : vector<8x32xf32>, vector<32x128xf32>, vector<8x128xf32> -> vector<8x128xf32>
    %693 = arith.addf %689, %692 : vector<8x128xf32>
    %c0_248 = arith.constant 0 : index
    %c0_249 = arith.constant 0 : index
    %694 = vector.load %arg11[%c0_248, %c0_249] : memref<32x128xf32, #tpu.memory_space<vmem>>, vector<32x128xf32>
    %cst_250 = arith.constant dense<0.000000e+00> : vector<8x128xf32>
    %695 = tpu.matmul %688, %694, %cst_250 {dimension_numbers = #tpu.dot_dimension_numbers<[1], [0], [0], [1], [0, 0, 1, 1], [], []>} : vector<8x32xf32>, vector<32x128xf32>, vector<8x128xf32> -> vector<8x128xf32>
    %696 = arith.addf %690, %695 : vector<8x128xf32>
    %697 = vector.extract_strided_slice %693 {offsets = [0, 0], sizes = [8, 32], strides = [1, 1]} : vector<8x128xf32> to vector<8x32xf32>
    %698 = arith.negf %697 : vector<8x32xf32>
    %699 = math.exp %698 : vector<8x32xf32>
    %cst_251 = arith.constant 1.000000e+00 : f32
    %700 = vector.broadcast %cst_251 : f32 to vector<8x32xf32>
    %701 = arith.addf %700, %699 : vector<8x32xf32>
    %702 = arith.divf %700, %701 : vector<8x32xf32>
    %703 = vector.extract_strided_slice %693 {offsets = [0, 32], sizes = [8, 32], strides = [1, 1]} : vector<8x128xf32> to vector<8x32xf32>
    %704 = arith.negf %703 : vector<8x32xf32>
    %705 = math.exp %704 : vector<8x32xf32>
    %cst_252 = arith.constant 1.000000e+00 : f32
    %706 = vector.broadcast %cst_252 : f32 to vector<8x32xf32>
    %707 = arith.addf %706, %705 : vector<8x32xf32>
    %708 = arith.divf %706, %707 : vector<8x32xf32>
    %709 = vector.extract_strided_slice %693 {offsets = [0, 64], sizes = [8, 32], strides = [1, 1]} : vector<8x128xf32> to vector<8x32xf32>
    %710 = math.tanh %709 : vector<8x32xf32>
    %711 = vector.extract_strided_slice %693 {offsets = [0, 96], sizes = [8, 32], strides = [1, 1]} : vector<8x128xf32> to vector<8x32xf32>
    %712 = arith.negf %711 : vector<8x32xf32>
    %713 = math.exp %712 : vector<8x32xf32>
    %cst_253 = arith.constant 1.000000e+00 : f32
    %714 = vector.broadcast %cst_253 : f32 to vector<8x32xf32>
    %715 = arith.addf %714, %713 : vector<8x32xf32>
    %716 = arith.divf %714, %715 : vector<8x32xf32>
    %717 = arith.mulf %708, %661 : vector<8x32xf32>
    %718 = arith.mulf %702, %710 : vector<8x32xf32>
    %719 = arith.addf %717, %718 : vector<8x32xf32>
    %720 = math.tanh %719 : vector<8x32xf32>
    %721 = arith.mulf %716, %720 : vector<8x32xf32>
    %722 = vector.extract_strided_slice %696 {offsets = [0, 0], sizes = [8, 32], strides = [1, 1]} : vector<8x128xf32> to vector<8x32xf32>
    %723 = arith.negf %722 : vector<8x32xf32>
    %724 = math.exp %723 : vector<8x32xf32>
    %cst_254 = arith.constant 1.000000e+00 : f32
    %725 = vector.broadcast %cst_254 : f32 to vector<8x32xf32>
    %726 = arith.addf %725, %724 : vector<8x32xf32>
    %727 = arith.divf %725, %726 : vector<8x32xf32>
    %728 = vector.extract_strided_slice %696 {offsets = [0, 32], sizes = [8, 32], strides = [1, 1]} : vector<8x128xf32> to vector<8x32xf32>
    %729 = arith.negf %728 : vector<8x32xf32>
    %730 = math.exp %729 : vector<8x32xf32>
    %cst_255 = arith.constant 1.000000e+00 : f32
    %731 = vector.broadcast %cst_255 : f32 to vector<8x32xf32>
    %732 = arith.addf %731, %730 : vector<8x32xf32>
    %733 = arith.divf %731, %732 : vector<8x32xf32>
    %734 = vector.extract_strided_slice %696 {offsets = [0, 64], sizes = [8, 32], strides = [1, 1]} : vector<8x128xf32> to vector<8x32xf32>
    %735 = math.tanh %734 : vector<8x32xf32>
    %736 = vector.extract_strided_slice %696 {offsets = [0, 96], sizes = [8, 32], strides = [1, 1]} : vector<8x128xf32> to vector<8x32xf32>
    %737 = arith.negf %736 : vector<8x32xf32>
    %738 = math.exp %737 : vector<8x32xf32>
    %cst_256 = arith.constant 1.000000e+00 : f32
    %739 = vector.broadcast %cst_256 : f32 to vector<8x32xf32>
    %740 = arith.addf %739, %738 : vector<8x32xf32>
    %741 = arith.divf %739, %740 : vector<8x32xf32>
    %742 = arith.mulf %733, %686 : vector<8x32xf32>
    %743 = arith.mulf %727, %735 : vector<8x32xf32>
    %744 = arith.addf %742, %743 : vector<8x32xf32>
    %745 = math.tanh %744 : vector<8x32xf32>
    %746 = arith.mulf %741, %745 : vector<8x32xf32>
    %c32_257 = arith.constant 32 : index
    %c0_258 = arith.constant 0 : index
    %747 = vector.load %arg18[%c32_257, %c0_258] : memref<64x128xf32, #tpu.memory_space<vmem>>, vector<8x128xf32>
    %c24_259 = arith.constant 24 : index
    %c0_260 = arith.constant 0 : index
    %748 = vector.load %arg19[%c24_259, %c0_260] : memref<64x128xf32, #tpu.memory_space<vmem>>, vector<8x128xf32>
    %c0_261 = arith.constant 0 : index
    %c0_262 = arith.constant 0 : index
    %749 = vector.load %arg8[%c0_261, %c0_262] : memref<32x128xf32, #tpu.memory_space<vmem>>, vector<32x128xf32>
    %cst_263 = arith.constant dense<0.000000e+00> : vector<8x128xf32>
    %750 = tpu.matmul %721, %749, %cst_263 {dimension_numbers = #tpu.dot_dimension_numbers<[1], [0], [0], [1], [0, 0, 1, 1], [], []>} : vector<8x32xf32>, vector<32x128xf32>, vector<8x128xf32> -> vector<8x128xf32>
    %751 = arith.addf %747, %750 : vector<8x128xf32>
    %c0_264 = arith.constant 0 : index
    %c0_265 = arith.constant 0 : index
    %752 = vector.load %arg11[%c0_264, %c0_265] : memref<32x128xf32, #tpu.memory_space<vmem>>, vector<32x128xf32>
    %cst_266 = arith.constant dense<0.000000e+00> : vector<8x128xf32>
    %753 = tpu.matmul %746, %752, %cst_266 {dimension_numbers = #tpu.dot_dimension_numbers<[1], [0], [0], [1], [0, 0, 1, 1], [], []>} : vector<8x32xf32>, vector<32x128xf32>, vector<8x128xf32> -> vector<8x128xf32>
    %754 = arith.addf %748, %753 : vector<8x128xf32>
    %755 = vector.extract_strided_slice %751 {offsets = [0, 0], sizes = [8, 32], strides = [1, 1]} : vector<8x128xf32> to vector<8x32xf32>
    %756 = arith.negf %755 : vector<8x32xf32>
    %757 = math.exp %756 : vector<8x32xf32>
    %cst_267 = arith.constant 1.000000e+00 : f32
    %758 = vector.broadcast %cst_267 : f32 to vector<8x32xf32>
    %759 = arith.addf %758, %757 : vector<8x32xf32>
    %760 = arith.divf %758, %759 : vector<8x32xf32>
    %761 = vector.extract_strided_slice %751 {offsets = [0, 32], sizes = [8, 32], strides = [1, 1]} : vector<8x128xf32> to vector<8x32xf32>
    %762 = arith.negf %761 : vector<8x32xf32>
    %763 = math.exp %762 : vector<8x32xf32>
    %cst_268 = arith.constant 1.000000e+00 : f32
    %764 = vector.broadcast %cst_268 : f32 to vector<8x32xf32>
    %765 = arith.addf %764, %763 : vector<8x32xf32>
    %766 = arith.divf %764, %765 : vector<8x32xf32>
    %767 = vector.extract_strided_slice %751 {offsets = [0, 64], sizes = [8, 32], strides = [1, 1]} : vector<8x128xf32> to vector<8x32xf32>
    %768 = math.tanh %767 : vector<8x32xf32>
    %769 = vector.extract_strided_slice %751 {offsets = [0, 96], sizes = [8, 32], strides = [1, 1]} : vector<8x128xf32> to vector<8x32xf32>
    %770 = arith.negf %769 : vector<8x32xf32>
    %771 = math.exp %770 : vector<8x32xf32>
    %cst_269 = arith.constant 1.000000e+00 : f32
    %772 = vector.broadcast %cst_269 : f32 to vector<8x32xf32>
    %773 = arith.addf %772, %771 : vector<8x32xf32>
    %774 = arith.divf %772, %773 : vector<8x32xf32>
    %775 = arith.mulf %766, %719 : vector<8x32xf32>
    %776 = arith.mulf %760, %768 : vector<8x32xf32>
    %777 = arith.addf %775, %776 : vector<8x32xf32>
    %778 = math.tanh %777 : vector<8x32xf32>
    %779 = arith.mulf %774, %778 : vector<8x32xf32>
    %780 = vector.extract_strided_slice %754 {offsets = [0, 0], sizes = [8, 32], strides = [1, 1]} : vector<8x128xf32> to vector<8x32xf32>
    %781 = arith.negf %780 : vector<8x32xf32>
    %782 = math.exp %781 : vector<8x32xf32>
    %cst_270 = arith.constant 1.000000e+00 : f32
    %783 = vector.broadcast %cst_270 : f32 to vector<8x32xf32>
    %784 = arith.addf %783, %782 : vector<8x32xf32>
    %785 = arith.divf %783, %784 : vector<8x32xf32>
    %786 = vector.extract_strided_slice %754 {offsets = [0, 32], sizes = [8, 32], strides = [1, 1]} : vector<8x128xf32> to vector<8x32xf32>
    %787 = arith.negf %786 : vector<8x32xf32>
    %788 = math.exp %787 : vector<8x32xf32>
    %cst_271 = arith.constant 1.000000e+00 : f32
    %789 = vector.broadcast %cst_271 : f32 to vector<8x32xf32>
    %790 = arith.addf %789, %788 : vector<8x32xf32>
    %791 = arith.divf %789, %790 : vector<8x32xf32>
    %792 = vector.extract_strided_slice %754 {offsets = [0, 64], sizes = [8, 32], strides = [1, 1]} : vector<8x128xf32> to vector<8x32xf32>
    %793 = math.tanh %792 : vector<8x32xf32>
    %794 = vector.extract_strided_slice %754 {offsets = [0, 96], sizes = [8, 32], strides = [1, 1]} : vector<8x128xf32> to vector<8x32xf32>
    %795 = arith.negf %794 : vector<8x32xf32>
    %796 = math.exp %795 : vector<8x32xf32>
    %cst_272 = arith.constant 1.000000e+00 : f32
    %797 = vector.broadcast %cst_272 : f32 to vector<8x32xf32>
    %798 = arith.addf %797, %796 : vector<8x32xf32>
    %799 = arith.divf %797, %798 : vector<8x32xf32>
    %800 = arith.mulf %791, %744 : vector<8x32xf32>
    %801 = arith.mulf %785, %793 : vector<8x32xf32>
    %802 = arith.addf %800, %801 : vector<8x32xf32>
    %803 = math.tanh %802 : vector<8x32xf32>
    %804 = arith.mulf %799, %803 : vector<8x32xf32>
    %c40_273 = arith.constant 40 : index
    %c0_274 = arith.constant 0 : index
    %805 = vector.load %arg18[%c40_273, %c0_274] : memref<64x128xf32, #tpu.memory_space<vmem>>, vector<8x128xf32>
    %c16_275 = arith.constant 16 : index
    %c0_276 = arith.constant 0 : index
    %806 = vector.load %arg19[%c16_275, %c0_276] : memref<64x128xf32, #tpu.memory_space<vmem>>, vector<8x128xf32>
    %c0_277 = arith.constant 0 : index
    %c0_278 = arith.constant 0 : index
    %807 = vector.load %arg8[%c0_277, %c0_278] : memref<32x128xf32, #tpu.memory_space<vmem>>, vector<32x128xf32>
    %cst_279 = arith.constant dense<0.000000e+00> : vector<8x128xf32>
    %808 = tpu.matmul %779, %807, %cst_279 {dimension_numbers = #tpu.dot_dimension_numbers<[1], [0], [0], [1], [0, 0, 1, 1], [], []>} : vector<8x32xf32>, vector<32x128xf32>, vector<8x128xf32> -> vector<8x128xf32>
    %809 = arith.addf %805, %808 : vector<8x128xf32>
    %c0_280 = arith.constant 0 : index
    %c0_281 = arith.constant 0 : index
    %810 = vector.load %arg11[%c0_280, %c0_281] : memref<32x128xf32, #tpu.memory_space<vmem>>, vector<32x128xf32>
    %cst_282 = arith.constant dense<0.000000e+00> : vector<8x128xf32>
    %811 = tpu.matmul %804, %810, %cst_282 {dimension_numbers = #tpu.dot_dimension_numbers<[1], [0], [0], [1], [0, 0, 1, 1], [], []>} : vector<8x32xf32>, vector<32x128xf32>, vector<8x128xf32> -> vector<8x128xf32>
    %812 = arith.addf %806, %811 : vector<8x128xf32>
    %813 = vector.extract_strided_slice %809 {offsets = [0, 0], sizes = [8, 32], strides = [1, 1]} : vector<8x128xf32> to vector<8x32xf32>
    %814 = arith.negf %813 : vector<8x32xf32>
    %815 = math.exp %814 : vector<8x32xf32>
    %cst_283 = arith.constant 1.000000e+00 : f32
    %816 = vector.broadcast %cst_283 : f32 to vector<8x32xf32>
    %817 = arith.addf %816, %815 : vector<8x32xf32>
    %818 = arith.divf %816, %817 : vector<8x32xf32>
    %819 = vector.extract_strided_slice %809 {offsets = [0, 32], sizes = [8, 32], strides = [1, 1]} : vector<8x128xf32> to vector<8x32xf32>
    %820 = arith.negf %819 : vector<8x32xf32>
    %821 = math.exp %820 : vector<8x32xf32>
    %cst_284 = arith.constant 1.000000e+00 : f32
    %822 = vector.broadcast %cst_284 : f32 to vector<8x32xf32>
    %823 = arith.addf %822, %821 : vector<8x32xf32>
    %824 = arith.divf %822, %823 : vector<8x32xf32>
    %825 = vector.extract_strided_slice %809 {offsets = [0, 64], sizes = [8, 32], strides = [1, 1]} : vector<8x128xf32> to vector<8x32xf32>
    %826 = math.tanh %825 : vector<8x32xf32>
    %827 = vector.extract_strided_slice %809 {offsets = [0, 96], sizes = [8, 32], strides = [1, 1]} : vector<8x128xf32> to vector<8x32xf32>
    %828 = arith.negf %827 : vector<8x32xf32>
    %829 = math.exp %828 : vector<8x32xf32>
    %cst_285 = arith.constant 1.000000e+00 : f32
    %830 = vector.broadcast %cst_285 : f32 to vector<8x32xf32>
    %831 = arith.addf %830, %829 : vector<8x32xf32>
    %832 = arith.divf %830, %831 : vector<8x32xf32>
    %833 = arith.mulf %824, %777 : vector<8x32xf32>
    %834 = arith.mulf %818, %826 : vector<8x32xf32>
    %835 = arith.addf %833, %834 : vector<8x32xf32>
    %836 = math.tanh %835 : vector<8x32xf32>
    %837 = arith.mulf %832, %836 : vector<8x32xf32>
    %838 = vector.extract_strided_slice %812 {offsets = [0, 0], sizes = [8, 32], strides = [1, 1]} : vector<8x128xf32> to vector<8x32xf32>
    %839 = arith.negf %838 : vector<8x32xf32>
    %840 = math.exp %839 : vector<8x32xf32>
    %cst_286 = arith.constant 1.000000e+00 : f32
    %841 = vector.broadcast %cst_286 : f32 to vector<8x32xf32>
    %842 = arith.addf %841, %840 : vector<8x32xf32>
    %843 = arith.divf %841, %842 : vector<8x32xf32>
    %844 = vector.extract_strided_slice %812 {offsets = [0, 32], sizes = [8, 32], strides = [1, 1]} : vector<8x128xf32> to vector<8x32xf32>
    %845 = arith.negf %844 : vector<8x32xf32>
    %846 = math.exp %845 : vector<8x32xf32>
    %cst_287 = arith.constant 1.000000e+00 : f32
    %847 = vector.broadcast %cst_287 : f32 to vector<8x32xf32>
    %848 = arith.addf %847, %846 : vector<8x32xf32>
    %849 = arith.divf %847, %848 : vector<8x32xf32>
    %850 = vector.extract_strided_slice %812 {offsets = [0, 64], sizes = [8, 32], strides = [1, 1]} : vector<8x128xf32> to vector<8x32xf32>
    %851 = math.tanh %850 : vector<8x32xf32>
    %852 = vector.extract_strided_slice %812 {offsets = [0, 96], sizes = [8, 32], strides = [1, 1]} : vector<8x128xf32> to vector<8x32xf32>
    %853 = arith.negf %852 : vector<8x32xf32>
    %854 = math.exp %853 : vector<8x32xf32>
    %cst_288 = arith.constant 1.000000e+00 : f32
    %855 = vector.broadcast %cst_288 : f32 to vector<8x32xf32>
    %856 = arith.addf %855, %854 : vector<8x32xf32>
    %857 = arith.divf %855, %856 : vector<8x32xf32>
    %858 = arith.mulf %849, %802 : vector<8x32xf32>
    %859 = arith.mulf %843, %851 : vector<8x32xf32>
    %860 = arith.addf %858, %859 : vector<8x32xf32>
    %861 = math.tanh %860 : vector<8x32xf32>
    %862 = arith.mulf %857, %861 : vector<8x32xf32>
    %c48_289 = arith.constant 48 : index
    %c0_290 = arith.constant 0 : index
    %863 = vector.load %arg18[%c48_289, %c0_290] : memref<64x128xf32, #tpu.memory_space<vmem>>, vector<8x128xf32>
    %c8_291 = arith.constant 8 : index
    %c0_292 = arith.constant 0 : index
    %864 = vector.load %arg19[%c8_291, %c0_292] : memref<64x128xf32, #tpu.memory_space<vmem>>, vector<8x128xf32>
    %c0_293 = arith.constant 0 : index
    %c0_294 = arith.constant 0 : index
    %865 = vector.load %arg8[%c0_293, %c0_294] : memref<32x128xf32, #tpu.memory_space<vmem>>, vector<32x128xf32>
    %cst_295 = arith.constant dense<0.000000e+00> : vector<8x128xf32>
    %866 = tpu.matmul %837, %865, %cst_295 {dimension_numbers = #tpu.dot_dimension_numbers<[1], [0], [0], [1], [0, 0, 1, 1], [], []>} : vector<8x32xf32>, vector<32x128xf32>, vector<8x128xf32> -> vector<8x128xf32>
    %867 = arith.addf %863, %866 : vector<8x128xf32>
    %c0_296 = arith.constant 0 : index
    %c0_297 = arith.constant 0 : index
    %868 = vector.load %arg11[%c0_296, %c0_297] : memref<32x128xf32, #tpu.memory_space<vmem>>, vector<32x128xf32>
    %cst_298 = arith.constant dense<0.000000e+00> : vector<8x128xf32>
    %869 = tpu.matmul %862, %868, %cst_298 {dimension_numbers = #tpu.dot_dimension_numbers<[1], [0], [0], [1], [0, 0, 1, 1], [], []>} : vector<8x32xf32>, vector<32x128xf32>, vector<8x128xf32> -> vector<8x128xf32>
    %870 = arith.addf %864, %869 : vector<8x128xf32>
    %871 = vector.extract_strided_slice %867 {offsets = [0, 0], sizes = [8, 32], strides = [1, 1]} : vector<8x128xf32> to vector<8x32xf32>
    %872 = arith.negf %871 : vector<8x32xf32>
    %873 = math.exp %872 : vector<8x32xf32>
    %cst_299 = arith.constant 1.000000e+00 : f32
    %874 = vector.broadcast %cst_299 : f32 to vector<8x32xf32>
    %875 = arith.addf %874, %873 : vector<8x32xf32>
    %876 = arith.divf %874, %875 : vector<8x32xf32>
    %877 = vector.extract_strided_slice %867 {offsets = [0, 32], sizes = [8, 32], strides = [1, 1]} : vector<8x128xf32> to vector<8x32xf32>
    %878 = arith.negf %877 : vector<8x32xf32>
    %879 = math.exp %878 : vector<8x32xf32>
    %cst_300 = arith.constant 1.000000e+00 : f32
    %880 = vector.broadcast %cst_300 : f32 to vector<8x32xf32>
    %881 = arith.addf %880, %879 : vector<8x32xf32>
    %882 = arith.divf %880, %881 : vector<8x32xf32>
    %883 = vector.extract_strided_slice %867 {offsets = [0, 64], sizes = [8, 32], strides = [1, 1]} : vector<8x128xf32> to vector<8x32xf32>
    %884 = math.tanh %883 : vector<8x32xf32>
    %885 = vector.extract_strided_slice %867 {offsets = [0, 96], sizes = [8, 32], strides = [1, 1]} : vector<8x128xf32> to vector<8x32xf32>
    %886 = arith.negf %885 : vector<8x32xf32>
    %887 = math.exp %886 : vector<8x32xf32>
    %cst_301 = arith.constant 1.000000e+00 : f32
    %888 = vector.broadcast %cst_301 : f32 to vector<8x32xf32>
    %889 = arith.addf %888, %887 : vector<8x32xf32>
    %890 = arith.divf %888, %889 : vector<8x32xf32>
    %891 = arith.mulf %882, %835 : vector<8x32xf32>
    %892 = arith.mulf %876, %884 : vector<8x32xf32>
    %893 = arith.addf %891, %892 : vector<8x32xf32>
    %894 = math.tanh %893 : vector<8x32xf32>
    %895 = arith.mulf %890, %894 : vector<8x32xf32>
    %896 = vector.extract_strided_slice %870 {offsets = [0, 0], sizes = [8, 32], strides = [1, 1]} : vector<8x128xf32> to vector<8x32xf32>
    %897 = arith.negf %896 : vector<8x32xf32>
    %898 = math.exp %897 : vector<8x32xf32>
    %cst_302 = arith.constant 1.000000e+00 : f32
    %899 = vector.broadcast %cst_302 : f32 to vector<8x32xf32>
    %900 = arith.addf %899, %898 : vector<8x32xf32>
    %901 = arith.divf %899, %900 : vector<8x32xf32>
    %902 = vector.extract_strided_slice %870 {offsets = [0, 32], sizes = [8, 32], strides = [1, 1]} : vector<8x128xf32> to vector<8x32xf32>
    %903 = arith.negf %902 : vector<8x32xf32>
    %904 = math.exp %903 : vector<8x32xf32>
    %cst_303 = arith.constant 1.000000e+00 : f32
    %905 = vector.broadcast %cst_303 : f32 to vector<8x32xf32>
    %906 = arith.addf %905, %904 : vector<8x32xf32>
    %907 = arith.divf %905, %906 : vector<8x32xf32>
    %908 = vector.extract_strided_slice %870 {offsets = [0, 64], sizes = [8, 32], strides = [1, 1]} : vector<8x128xf32> to vector<8x32xf32>
    %909 = math.tanh %908 : vector<8x32xf32>
    %910 = vector.extract_strided_slice %870 {offsets = [0, 96], sizes = [8, 32], strides = [1, 1]} : vector<8x128xf32> to vector<8x32xf32>
    %911 = arith.negf %910 : vector<8x32xf32>
    %912 = math.exp %911 : vector<8x32xf32>
    %cst_304 = arith.constant 1.000000e+00 : f32
    %913 = vector.broadcast %cst_304 : f32 to vector<8x32xf32>
    %914 = arith.addf %913, %912 : vector<8x32xf32>
    %915 = arith.divf %913, %914 : vector<8x32xf32>
    %916 = arith.mulf %907, %860 : vector<8x32xf32>
    %917 = arith.mulf %901, %909 : vector<8x32xf32>
    %918 = arith.addf %916, %917 : vector<8x32xf32>
    %919 = math.tanh %918 : vector<8x32xf32>
    %920 = arith.mulf %915, %919 : vector<8x32xf32>
    %c56_305 = arith.constant 56 : index
    %c0_306 = arith.constant 0 : index
    %921 = vector.load %arg18[%c56_305, %c0_306] : memref<64x128xf32, #tpu.memory_space<vmem>>, vector<8x128xf32>
    %c0_307 = arith.constant 0 : index
    %c0_308 = arith.constant 0 : index
    %922 = vector.load %arg19[%c0_307, %c0_308] : memref<64x128xf32, #tpu.memory_space<vmem>>, vector<8x128xf32>
    %c0_309 = arith.constant 0 : index
    %c0_310 = arith.constant 0 : index
    %923 = vector.load %arg8[%c0_309, %c0_310] : memref<32x128xf32, #tpu.memory_space<vmem>>, vector<32x128xf32>
    %cst_311 = arith.constant dense<0.000000e+00> : vector<8x128xf32>
    %924 = tpu.matmul %895, %923, %cst_311 {dimension_numbers = #tpu.dot_dimension_numbers<[1], [0], [0], [1], [0, 0, 1, 1], [], []>} : vector<8x32xf32>, vector<32x128xf32>, vector<8x128xf32> -> vector<8x128xf32>
    %925 = arith.addf %921, %924 : vector<8x128xf32>
    %c0_312 = arith.constant 0 : index
    %c0_313 = arith.constant 0 : index
    %926 = vector.load %arg11[%c0_312, %c0_313] : memref<32x128xf32, #tpu.memory_space<vmem>>, vector<32x128xf32>
    %cst_314 = arith.constant dense<0.000000e+00> : vector<8x128xf32>
    %927 = tpu.matmul %920, %926, %cst_314 {dimension_numbers = #tpu.dot_dimension_numbers<[1], [0], [0], [1], [0, 0, 1, 1], [], []>} : vector<8x32xf32>, vector<32x128xf32>, vector<8x128xf32> -> vector<8x128xf32>
    %928 = arith.addf %922, %927 : vector<8x128xf32>
    %929 = vector.extract_strided_slice %925 {offsets = [0, 0], sizes = [8, 32], strides = [1, 1]} : vector<8x128xf32> to vector<8x32xf32>
    %930 = arith.negf %929 : vector<8x32xf32>
    %931 = math.exp %930 : vector<8x32xf32>
    %cst_315 = arith.constant 1.000000e+00 : f32
    %932 = vector.broadcast %cst_315 : f32 to vector<8x32xf32>
    %933 = arith.addf %932, %931 : vector<8x32xf32>
    %934 = arith.divf %932, %933 : vector<8x32xf32>
    %935 = vector.extract_strided_slice %925 {offsets = [0, 32], sizes = [8, 32], strides = [1, 1]} : vector<8x128xf32> to vector<8x32xf32>
    %936 = arith.negf %935 : vector<8x32xf32>
    %937 = math.exp %936 : vector<8x32xf32>
    %cst_316 = arith.constant 1.000000e+00 : f32
    %938 = vector.broadcast %cst_316 : f32 to vector<8x32xf32>
    %939 = arith.addf %938, %937 : vector<8x32xf32>
    %940 = arith.divf %938, %939 : vector<8x32xf32>
    %941 = vector.extract_strided_slice %925 {offsets = [0, 64], sizes = [8, 32], strides = [1, 1]} : vector<8x128xf32> to vector<8x32xf32>
    %942 = math.tanh %941 : vector<8x32xf32>
    %943 = vector.extract_strided_slice %925 {offsets = [0, 96], sizes = [8, 32], strides = [1, 1]} : vector<8x128xf32> to vector<8x32xf32>
    %944 = arith.negf %943 : vector<8x32xf32>
    %945 = math.exp %944 : vector<8x32xf32>
    %cst_317 = arith.constant 1.000000e+00 : f32
    %946 = vector.broadcast %cst_317 : f32 to vector<8x32xf32>
    %947 = arith.addf %946, %945 : vector<8x32xf32>
    %948 = arith.divf %946, %947 : vector<8x32xf32>
    %949 = arith.mulf %940, %893 : vector<8x32xf32>
    %950 = arith.mulf %934, %942 : vector<8x32xf32>
    %951 = arith.addf %949, %950 : vector<8x32xf32>
    %952 = math.tanh %951 : vector<8x32xf32>
    %953 = arith.mulf %948, %952 : vector<8x32xf32>
    %954 = vector.extract_strided_slice %928 {offsets = [0, 0], sizes = [8, 32], strides = [1, 1]} : vector<8x128xf32> to vector<8x32xf32>
    %955 = arith.negf %954 : vector<8x32xf32>
    %956 = math.exp %955 : vector<8x32xf32>
    %cst_318 = arith.constant 1.000000e+00 : f32
    %957 = vector.broadcast %cst_318 : f32 to vector<8x32xf32>
    %958 = arith.addf %957, %956 : vector<8x32xf32>
    %959 = arith.divf %957, %958 : vector<8x32xf32>
    %960 = vector.extract_strided_slice %928 {offsets = [0, 32], sizes = [8, 32], strides = [1, 1]} : vector<8x128xf32> to vector<8x32xf32>
    %961 = arith.negf %960 : vector<8x32xf32>
    %962 = math.exp %961 : vector<8x32xf32>
    %cst_319 = arith.constant 1.000000e+00 : f32
    %963 = vector.broadcast %cst_319 : f32 to vector<8x32xf32>
    %964 = arith.addf %963, %962 : vector<8x32xf32>
    %965 = arith.divf %963, %964 : vector<8x32xf32>
    %966 = vector.extract_strided_slice %928 {offsets = [0, 64], sizes = [8, 32], strides = [1, 1]} : vector<8x128xf32> to vector<8x32xf32>
    %967 = math.tanh %966 : vector<8x32xf32>
    %968 = vector.extract_strided_slice %928 {offsets = [0, 96], sizes = [8, 32], strides = [1, 1]} : vector<8x128xf32> to vector<8x32xf32>
    %969 = arith.negf %968 : vector<8x32xf32>
    %970 = math.exp %969 : vector<8x32xf32>
    %cst_320 = arith.constant 1.000000e+00 : f32
    %971 = vector.broadcast %cst_320 : f32 to vector<8x32xf32>
    %972 = arith.addf %971, %970 : vector<8x32xf32>
    %973 = arith.divf %971, %972 : vector<8x32xf32>
    %974 = arith.mulf %965, %918 : vector<8x32xf32>
    %975 = arith.mulf %959, %967 : vector<8x32xf32>
    %976 = arith.addf %974, %975 : vector<8x32xf32>
    %977 = math.tanh %976 : vector<8x32xf32>
    %978 = arith.mulf %973, %977 : vector<8x32xf32>
    %c0_321 = arith.constant 0 : index
    %c0_322 = arith.constant 0 : index
    %979 = vector.load %arg13[%c0_321, %c0_322] : memref<64x8xf32, #tpu.memory_space<vmem>>, vector<32x8xf32>
    %cst_323 = arith.constant dense<0.000000e+00> : vector<8x8xf32>
    %980 = tpu.matmul %953, %979, %cst_323 {dimension_numbers = #tpu.dot_dimension_numbers<[1], [0], [0], [1], [0, 0, 1, 1], [], []>} : vector<8x32xf32>, vector<32x8xf32>, vector<8x8xf32> -> vector<8x8xf32>
    %c32_324 = arith.constant 32 : index
    %c0_325 = arith.constant 0 : index
    %981 = vector.load %arg13[%c32_324, %c0_325] : memref<64x8xf32, #tpu.memory_space<vmem>>, vector<32x8xf32>
    %cst_326 = arith.constant dense<0.000000e+00> : vector<8x8xf32>
    %982 = tpu.matmul %978, %981, %cst_326 {dimension_numbers = #tpu.dot_dimension_numbers<[1], [0], [0], [1], [0, 0, 1, 1], [], []>} : vector<8x32xf32>, vector<32x8xf32>, vector<8x8xf32> -> vector<8x8xf32>
    %983 = arith.addf %980, %982 : vector<8x8xf32>
    %c0_327 = arith.constant 0 : index
    %c0_328 = arith.constant 0 : index
    %984 = vector.load %arg14[%c0_327, %c0_328] : memref<1x8xf32, #tpu.memory_space<vmem>>, vector<1x8xf32>
    %985 = vector.broadcast %984 : vector<1x8xf32> to vector<8x8xf32>
    %986 = arith.addf %983, %985 : vector<8x8xf32>
    %c0_329 = arith.constant 0 : index
    %c0_330 = arith.constant 0 : index
    %987 = vector.load %arg15[%c0_329, %c0_330] : memref<8x8xf32, #tpu.memory_space<vmem>>, vector<8x8xf32>
    tpu.vector_store %arg15[%c0_329, %c0_330], %986 {strides = array<i32>} : memref<8x8xf32, #tpu.memory_space<vmem>>, vector<8x8xf32>,
    return
  }
}

</mosaic_0001>

<llo_original>
// kernel: encoder_forward.1
$region0: #{encoder_forward.1}
  #allocation0 [shape = 'u32[]', space=smem, size = 0x4, offset = 0x4, fixed_abs, tag = 'smem constant byte address 0x4 - core index']
  #allocation1 [shape = 'u32[72,128]{1,0:T(1,128)}', space=vmem, size = 0x9000, scoped, tag = 'internal scratch']
  #allocation2 [shape = 'f32[64,32]{1,0:T(8,128)}', space=vmem, size = 0x8000, scoped, tag = 'scratch operand']
  #allocation3 [shape = 'f32[64,32]{1,0:T(8,128)}', space=vmem, size = 0x8000, scoped, tag = 'scratch operand']
  #allocation4 [shape = 'f32[64,128]{1,0:T(8,128)}', space=vmem, size = 0x8000, scoped, tag = 'scratch operand']
  #allocation5 [shape = 'f32[64,128]{1,0:T(8,128)}', space=vmem, size = 0x8000, scoped, tag = 'scratch operand']
  %s0 = inlined_call_operand.vmem [shape: f32[64,16], index: 0, kind: input, shape index: {}]
  %s1 = inlined_call_operand.vmem [shape: f32[16,128], index: 1, kind: input, shape index: {}]
  %s2 = inlined_call_operand.vmem [shape: f32[32,128], index: 2, kind: input, shape index: {}]
  %s3 = inlined_call_operand.vmem [shape: f32[1,128], index: 3, kind: input, shape index: {}]
  %s4 = inlined_call_operand.vmem [shape: f32[16,128], index: 4, kind: input, shape index: {}]
  %s5 = inlined_call_operand.vmem [shape: f32[32,128], index: 5, kind: input, shape index: {}]
  %s6 = inlined_call_operand.vmem [shape: f32[1,128], index: 6, kind: input, shape index: {}]
  %s7 = inlined_call_operand.vmem [shape: f32[64,128], index: 7, kind: input, shape index: {}]
  %s8 = inlined_call_operand.vmem [shape: f32[32,128], index: 8, kind: input, shape index: {}]
  %s9 = inlined_call_operand.vmem [shape: f32[1,128], index: 9, kind: input, shape index: {}]
  %s10 = inlined_call_operand.vmem [shape: f32[64,128], index: 10, kind: input, shape index: {}]
  %s11 = inlined_call_operand.vmem [shape: f32[32,128], index: 11, kind: input, shape index: {}]
  %s12 = inlined_call_operand.vmem [shape: f32[1,128], index: 12, kind: input, shape index: {}]
  %s13 = inlined_call_operand.vmem [shape: f32[64,8], index: 13, kind: input, shape index: {}]
  %s14 = inlined_call_operand.vmem [shape: f32[1,8], index: 14, kind: input, shape index: {}]
  %s15 = inlined_call_operand.vmem [shape: f32[8,8], index: 15, kind: output, shape index: {}]
  %s16 = sld [smem:[#allocation0]]
  $region70: #{encoder_forward.1} parent=0
    _
  %s18 = ssub.s32 1, %s16
  %s19 = scalar_select 0, %s18, %s16
  // Predicated region
  $region2: #{encoder_forward.1} parent=0 // pred_check
    _
  $region3: #{encoder_forward.1} parent=0 // pred_check_branch
    %21 = sbr.rel (0) target = $region5
  $region4: #{encoder_forward.1} parent=0 // pred_region
    _
  $region5: #{encoder_forward.1} parent=0 // pred_fallthru
    _
  // Predicated region
  $region6: #{encoder_forward.1} parent=0 // pred_check
    _
  $region7: #{encoder_forward.1} parent=0 // pred_check_branch
    %23 = sbr.rel (0) target = $region9
  $region8: #{encoder_forward.1} parent=0 // pred_region
    _
  $region9: #{encoder_forward.1} parent=0 // pred_fallthru
    _
  // Predicated region
  $region10: #{encoder_forward.1} parent=0 // pred_check
    _
  $region11: #{encoder_forward.1} parent=0 // pred_check_branch
    %25 = sbr.rel (0) target = $region13
  $region12: #{encoder_forward.1} parent=0 // pred_region
    _
  $region13: #{encoder_forward.1} parent=0 // pred_fallthru
    _
  // Predicated region
  $region14: #{encoder_forward.1} parent=0 // pred_check
    _
  $region15: #{encoder_forward.1} parent=0 // pred_check_branch
    %27 = sbr.rel (0) target = $region17
  $region16: #{encoder_forward.1} parent=0 // pred_region
    _
  $region17: #{encoder_forward.1} parent=0 // pred_fallthru
    _
  // Predicated region
  $region18: #{encoder_forward.1} parent=0 // pred_check
    _
  $region19: #{encoder_forward.1} parent=0 // pred_check_branch
    %29 = sbr.rel (0) target = $region21
  $region20: #{encoder_forward.1} parent=0 // pred_region
    _
  $region21: #{encoder_forward.1} parent=0 // pred_fallthru
    _
  // Predicated region
  $region22: #{encoder_forward.1} parent=0 // pred_check
    _
  $region23: #{encoder_forward.1} parent=0 // pred_check_branch
    %31 = sbr.rel (0) target = $region25
  $region24: #{encoder_forward.1} parent=0 // pred_region
    _
  $region25: #{encoder_forward.1} parent=0 // pred_fallthru
    _
  // Predicated region
  $region26: #{encoder_forward.1} parent=0 // pred_check
    _
  $region27: #{encoder_forward.1} parent=0 // pred_check_branch
    %33 = sbr.rel (0) target = $region29
  $region28: #{encoder_forward.1} parent=0 // pred_region
    _
  $region29: #{encoder_forward.1} parent=0 // pred_fallthru
    _
  // Predicated region
  $region30: #{encoder_forward.1} parent=0 // pred_check
    _
  $region31: #{encoder_forward.1} parent=0 // pred_check_branch
    %35 = sbr.rel (0) target = $region33
  $region32: #{encoder_forward.1} parent=0 // pred_region
    _
  $region33: #{encoder_forward.1} parent=0 // pred_fallthru
    _
  // Predicated region
  $region34: #{encoder_forward.1} parent=0 // pred_check
    _
  $region35: #{encoder_forward.1} parent=0 // pred_check_branch
    %37 = sbr.rel (0) target = $region37
  $region36: #{encoder_forward.1} parent=0 // pred_region
    _
  $region37: #{encoder_forward.1} parent=0 // pred_fallthru
    _
  // Predicated region
  $region38: #{encoder_forward.1} parent=0 // pred_check
    _
  $region39: #{encoder_forward.1} parent=0 // pred_check_branch
    %39 = sbr.rel (0) target = $region41
  $region40: #{encoder_forward.1} parent=0 // pred_region
    _
  $region41: #{encoder_forward.1} parent=0 // pred_fallthru
    _
  // Predicated region
  $region42: #{encoder_forward.1} parent=0 // pred_check
    _
  $region43: #{encoder_forward.1} parent=0 // pred_check_branch
    %41 = sbr.rel (0) target = $region45
  $region44: #{encoder_forward.1} parent=0 // pred_region
    _
  $region45: #{encoder_forward.1} parent=0 // pred_fallthru
    _
  // Predicated region
  $region46: #{encoder_forward.1} parent=0 // pred_check
    _
  $region47: #{encoder_forward.1} parent=0 // pred_check_branch
    %43 = sbr.rel (0) target = $region49
  $region48: #{encoder_forward.1} parent=0 // pred_region
    _
  $region49: #{encoder_forward.1} parent=0 // pred_fallthru
    _
  // Predicated region
  $region50: #{encoder_forward.1} parent=0 // pred_check
    _
  $region51: #{encoder_forward.1} parent=0 // pred_check_branch
    %45 = sbr.rel (0) target = $region53
  $region52: #{encoder_forward.1} parent=0 // pred_region
    _
  $region53: #{encoder_forward.1} parent=0 // pred_fallthru
    _
  // Predicated region
  $region54: #{encoder_forward.1} parent=0 // pred_check
    _
  $region55: #{encoder_forward.1} parent=0 // pred_check_branch
    %47 = sbr.rel (0) target = $region57
  $region56: #{encoder_forward.1} parent=0 // pred_region
    _
  $region57: #{encoder_forward.1} parent=0 // pred_fallthru
    _
  // Predicated region
  $region58: #{encoder_forward.1} parent=0 // pred_check
    _
  $region59: #{encoder_forward.1} parent=0 // pred_check_branch
    %49 = sbr.rel (0) target = $region61
  $region60: #{encoder_forward.1} parent=0 // pred_region
    _
  $region61: #{encoder_forward.1} parent=0 // pred_fallthru
    _
  %v50 = vld [vmem:[%s0] sm:$0xff]
  %v51 = vld [vmem:[%s0 + $0x8] sm:$0xff]
  %v52 = vld [vmem:[%s0 + $0x10] sm:$0xff]
  %v53 = vld [vmem:[%s0 + $0x18] sm:$0xff]
  %v54 = vld [vmem:[%s0 + $0x20] sm:$0xff]
  %v55 = vld [vmem:[%s0 + $0x28] sm:$0xff]
  %v56 = vld [vmem:[%s0 + $0x30] sm:$0xff]
  %v57 = vld [vmem:[%s0 + $0x38] sm:$0xff]
  %v58 = vld [vmem:[%s1] sm:$0xff]
  %v59 = vld [vmem:[%s1 + $0x8] sm:$0xff]
  %v60 = vld [vmem:[%s3] sm:$0x1]
  %v62 = vperm.slane %v60, 0
  %vm64 = vcmask 130048
  %v66 = vsel %vm64, %v50, 0
  %v69 = vsel %vm64, %v51, 0
  %v72 = vsel %vm64, %v52, 0
  %v75 = vsel %vm64, %v53, 0
  %v78 = vsel %vm64, %v54, 0
  %v81 = vsel %vm64, %v55, 0
  %v84 = vsel %vm64, %v56, 0
  %v87 = vsel %vm64, %v57, 0
  %89 = vmatpush.msra.mxu0 0.0
  %90 = vmatpush.msra.mxu0 0.0
  %91 = vmatpush.msra.mxu0 0.0
  %92 = vmatpush.msra.mxu0 0.0
  %93 = vmatpush.msra.mxu0 0.0
  %94 = vmatpush.msra.mxu0 0.0
  %95 = vmatpush.msra.mxu0 0.0
  %96 = vmatpush.msra.mxu0 0.0
  %97 = vmatpush.msra.mxu0 0.0
  %98 = vmatpush.msra.mxu0 0.0
  %99 = vmatpush.msra.mxu0 0.0
  %100 = vmatpush.msra.mxu0 0.0
  %101 = vmatpush.msra.mxu0 0.0
  %102 = vmatpush.msra.mxu0 0.0
  %103 = vmatpush.msra.mxu0 %v59
  %104 = vmatpush.msra.mxu0 %v58
  %105 = vmatmul.f32.gmra.mxu0 %v66
  %v106 = vpop.f32.mrf.mxu0
  %v107 = vadd.f32 %v62, %v106
  %108 = vmatmul.f32.gmra.mxu0 %v69
  %v109 = vpop.f32.mrf.mxu0
  %v110 = vadd.f32 %v62, %v109
  %111 = vmatmul.f32.gmra.mxu0 %v72
  %v112 = vpop.f32.mrf.mxu0
  %v113 = vadd.f32 %v62, %v112
  %114 = vmatmul.f32.gmra.mxu0 %v75
  %v115 = vpop.f32.mrf.mxu0
  %v116 = vadd.f32 %v62, %v115
  %117 = vmatmul.f32.gmra.mxu0 %v78
  %v118 = vpop.f32.mrf.mxu0
  %v119 = vadd.f32 %v62, %v118
  %120 = vmatmul.f32.gmra.mxu0 %v81
  %v121 = vpop.f32.mrf.mxu0
  %v122 = vadd.f32 %v62, %v121
  %123 = vmatmul.f32.gmra.mxu0 %v84
  %v124 = vpop.f32.mrf.mxu0
  %v125 = vadd.f32 %v62, %v124
  %126 = vmatmul.f32.gmra.mxu0 %v87
  %v127 = vpop.f32.mrf.mxu0
  %v128 = vadd.f32 %v62, %v127
  %129 = vdwg.mxu0
  %130 = vst [vmem:[#allocation4] sm:$0xff] %v107
  %131 = vst [vmem:[#allocation4 + $0x8] sm:$0xff] %v110
  %132 = vst [vmem:[#allocation4 + $0x10] sm:$0xff] %v113
  %133 = vst [vmem:[#allocation4 + $0x18] sm:$0xff] %v116
  %134 = vst [vmem:[#allocation4 + $0x20] sm:$0xff] %v119
  %135 = vst [vmem:[#allocation4 + $0x28] sm:$0xff] %v122
  %136 = vst [vmem:[#allocation4 + $0x30] sm:$0xff] %v125
  %137 = vst [vmem:[#allocation4 + $0x38] sm:$0xff] %v128
  %v138 = vld [vmem:[%s4] sm:$0xff]
  %v139 = vld [vmem:[%s4 + $0x8] sm:$0xff]
  %v140 = vld [vmem:[%s6] sm:$0x1]
  %v142 = vperm.slane %v140, 0
  %144 = vmatpush.msra.mxu0 0.0
  %145 = vmatpush.msra.mxu0 0.0
  %146 = vmatpush.msra.mxu0 0.0
  %147 = vmatpush.msra.mxu0 0.0
  %148 = vmatpush.msra.mxu0 0.0
  %149 = vmatpush.msra.mxu0 0.0
  %150 = vmatpush.msra.mxu0 0.0
  %151 = vmatpush.msra.mxu0 0.0
  %152 = vmatpush.msra.mxu0 0.0
  %153 = vmatpush.msra.mxu0 0.0
  %154 = vmatpush.msra.mxu0 0.0
  %155 = vmatpush.msra.mxu0 0.0
  %156 = vmatpush.msra.mxu0 0.0
  %157 = vmatpush.msra.mxu0 0.0
  %158 = vmatpush.msra.mxu0 %v139
  %159 = vmatpush.msra.mxu0 %v138
  %160 = vmatmul.f32.gmra.mxu0 %v66
  %v161 = vpop.f32.mrf.mxu0
  %v162 = vadd.f32 %v142, %v161
  %163 = vmatmul.f32.gmra.mxu0 %v69
  %v164 = vpop.f32.mrf.mxu0
  %v165 = vadd.f32 %v142, %v164
  %166 = vmatmul.f32.gmra.mxu0 %v72
  %v167 = vpop.f32.mrf.mxu0
  %v168 = vadd.f32 %v142, %v167
  %169 = vmatmul.f32.gmra.mxu0 %v75
  %v170 = vpop.f32.mrf.mxu0
  %v171 = vadd.f32 %v142, %v170
  %172 = vmatmul.f32.gmra.mxu0 %v78
  %v173 = vpop.f32.mrf.mxu0
  %v174 = vadd.f32 %v142, %v173
  %175 = vmatmul.f32.gmra.mxu0 %v81
  %v176 = vpop.f32.mrf.mxu0
  %v177 = vadd.f32 %v142, %v176
  %178 = vmatmul.f32.gmra.mxu0 %v84
  %v179 = vpop.f32.mrf.mxu0
  %v180 = vadd.f32 %v142, %v179
  %181 = vmatmul.f32.gmra.mxu0 %v87
  %v182 = vpop.f32.mrf.mxu0
  %v183 = vadd.f32 %v142, %v182
  %184 = vdwg.mxu0
  %185 = vst [vmem:[#allocation5] sm:$0xff] %v162
  %186 = vst [vmem:[#allocation5 + $0x8] sm:$0xff] %v165
  %187 = vst [vmem:[#allocation5 + $0x10] sm:$0xff] %v168
  %188 = vst [vmem:[#allocation5 + $0x18] sm:$0xff] %v171
  %189 = vst [vmem:[#allocation5 + $0x20] sm:$0xff] %v174
  %190 = vst [vmem:[#allocation5 + $0x28] sm:$0xff] %v177
  %191 = vst [vmem:[#allocation5 + $0x30] sm:$0xff] %v180
  %192 = vst [vmem:[#allocation5 + $0x38] sm:$0xff] %v183
  %v193 = vld [vmem:[#allocation4] sm:$0xff]
  %v194 = vld [vmem:[#allocation5 + $0x38] sm:$0xff]
  %v195 = vld [vmem:[%s2] sm:$0xff]
  %v196 = vld [vmem:[%s2 + $0x8] sm:$0xff]
  %v197 = vld [vmem:[%s2 + $0x10] sm:$0xff]
  %v198 = vld [vmem:[%s2 + $0x18] sm:$0xff]
  %vm199 = vcmask 261120
  %v201 = vsel %vm199, 0.0, 0
  %203 = vmatpush.msra.mxu0 0.0
  %204 = vmatpush.msra.mxu0 0.0
  %205 = vmatpush.msra.mxu0 0.0
  %206 = vmatpush.msra.mxu0 0.0
  %207 = vmatpush.msra.mxu0 0.0
  %208 = vmatpush.msra.mxu0 0.0
  %209 = vmatpush.msra.mxu0 0.0
  %210 = vmatpush.msra.mxu0 0.0
  %211 = vmatpush.msra.mxu0 0.0
  %212 = vmatpush.msra.mxu0 0.0
  %213 = vmatpush.msra.mxu0 0.0
  %214 = vmatpush.msra.mxu0 0.0
  %215 = vmatpush.msra.mxu0 %v198
  %216 = vmatpush.msra.mxu0 %v197
  %217 = vmatpush.msra.mxu0 %v196
  %218 = vmatpush.msra.mxu0 %v195
  %219 = vmatmul.f32.gmra.mxu0 %v201
  %v220 = vpop.f32.mrf.mxu0
  %v221 = vadd.f32 0.0, %v220
  %222 = vdwg.mxu0
  %v223 = vadd.f32 %v193, %v221
  %v224 = vld [vmem:[%s5] sm:$0xff]
  %v225 = vld [vmem:[%s5 + $0x8] sm:$0xff]
  %v226 = vld [vmem:[%s5 + $0x10] sm:$0xff]
  %v227 = vld [vmem:[%s5 + $0x18] sm:$0xff]
  %228 = vmatpush.msra.mxu0 0.0
  %229 = vmatpush.msra.mxu0 0.0
  %230 = vmatpush.msra.mxu0 0.0
  %231 = vmatpush.msra.mxu0 0.0
  %232 = vmatpush.msra.mxu0 0.0
  %233 = vmatpush.msra.mxu0 0.0
  %234 = vmatpush.msra.mxu0 0.0
  %235 = vmatpush.msra.mxu0 0.0
  %236 = vmatpush.msra.mxu0 0.0
  %237 = vmatpush.msra.mxu0 0.0
  %238 = vmatpush.msra.mxu0 0.0
  %239 = vmatpush.msra.mxu0 0.0
  %240 = vmatpush.msra.mxu0 %v227
  %241 = vmatpush.msra.mxu0 %v226
  %242 = vmatpush.msra.mxu0 %v225
  %243 = vmatpush.msra.mxu0 %v224
  %244 = vmatmul.f32.gmra.mxu0 %v201
  %v245 = vpop.f32.mrf.mxu0
  %v246 = vadd.f32 0.0, %v245
  %247 = vdwg.mxu0
  %v248 = vadd.f32 %v194, %v246
  %v249 = vxor.u32 %v223, 2147483648
  %v250 = vmul.f32 %v249, 1.442695
  %v251 = vpow.pop %v250
  %v252 = vadd.f32 %v251, 1.0
  %v253 = vrcp.pop %v252
  %v254 = vmul.f32 %v252, %v253
  %v255 = vsub.f32 1.0, %v254
  %v256 = vmul.f32 %v253, %v255
  %v257 = vadd.f32 %v253, %v256
  %vm258 = vweird.f32 %v252
  %vm259 = vweird.f32 %v253
  %vm260 = vmor %vm258, %vm259
  %v261 = vsel %vm260, %v253, %v257
  %v262 = vand.u32 2147483647, %v252
  %vm263 = vcmp.eq.f32.partialorder %v262, 8.507059e+37
  %v264 = vand.u32 %v252, 2147483648
  %v265 = vor.u32 1.1754944e-38, %v264
  %v266 = vsel %vm263, %v265, %v261
  %v267 = vmul.f32 1.0, %v266
  %v268 = vtanh.pop %v223
  %v269 = vmul.f32 %v267, 0.0
  %271 = vrot.lane.b32.xlu0 %v268, 64
  %v272 = vpop.permute.xlu0 %271
  %v274 = vmul.f32 %v267, %v272
  %276 = vrot.lane.b32.xlu0 %v274, 32
  %v277 = vpop.permute.xlu0 %276
  %v279 = vadd.f32 %v269, %v277
  %v280 = vtanh.pop %v279
  %282 = vrot.lane.b32.xlu0 %v280, 64
  %v283 = vpop.permute.xlu0 %282
  %v285 = vmul.f32 %v267, %v283
  %v286 = vxor.u32 %v248, 2147483648
  %v287 = vmul.f32 %v286, 1.442695
  %v288 = vpow.pop %v287
  %v289 = vadd.f32 %v288, 1.0
  %v290 = vrcp.pop %v289
  %v291 = vmul.f32 %v289, %v290
  %v292 = vsub.f32 1.0, %v291
  %v293 = vmul.f32 %v290, %v292
  %v294 = vadd.f32 %v290, %v293
  %vm295 = vweird.f32 %v289
  %vm296 = vweird.f32 %v290
  %vm297 = vmor %vm295, %vm296
  %v298 = vsel %vm297, %v290, %v294
  %v299 = vand.u32 2147483647, %v289
  %vm300 = vcmp.eq.f32.partialorder %v299, 8.507059e+37
  %v301 = vand.u32 %v289, 2147483648
  %v302 = vor.u32 1.1754944e-38, %v301
  %v303 = vsel %vm300, %v302, %v298
  %v304 = vmul.f32 1.0, %v303
  %v305 = vtanh.pop %v248
  %v306 = vmul.f32 %v304, 0.0
  %308 = vrot.lane.b32.xlu0 %v305, 64
  %v309 = vpop.permute.xlu0 %308
  %v311 = vmul.f32 %v304, %v309
  %313 = vrot.lane.b32.xlu0 %v311, 32
  %v314 = vpop.permute.xlu0 %313
  %v316 = vadd.f32 %v306, %v314
  %v317 = vtanh.pop %v316
  %319 = vrot.lane.b32.xlu0 %v317, 64
  %v320 = vpop.permute.xlu0 %319
  %v322 = vmul.f32 %v304, %v320
  %324 = vrot.lane.b32.xlu0 %v285, 32
  %v325 = vpop.permute.xlu0 %324
  %327 = vst.msk [vmem:[#allocation2] sm:$0xff] %vm199, %v325
  %329 = vrot.lane.b32.xlu0 %v322, 32
  %v330 = vpop.permute.xlu0 %329
  %332 = vst.msk [vmem:[#allocation3 + $0x38] sm:$0xff] %vm199, %v330
  %v333 = vld [vmem:[#allocation4 + $0x8] sm:$0xff]
  %v334 = vld [vmem:[#allocation5 + $0x30] sm:$0xff]
  %v335 = vld [vmem:[%s2] sm:$0xff]
  %v336 = vld [vmem:[%s2 + $0x8] sm:$0xff]
  %v337 = vld [vmem:[%s2 + $0x10] sm:$0xff]
  %v338 = vld [vmem:[%s2 + $0x18] sm:$0xff]
  %v339 = vsel %vm199, %v325, 0
  %341 = vmatpush.msra.mxu0 0.0
  %342 = vmatpush.msra.mxu0 0.0
  %343 = vmatpush.msra.mxu0 0.0
  %344 = vmatpush.msra.mxu0 0.0
  %345 = vmatpush.msra.mxu0 0.0
  %346 = vmatpush.msra.mxu0 0.0
  %347 = vmatpush.msra.mxu0 0.0
  %348 = vmatpush.msra.mxu0 0.0
  %349 = vmatpush.msra.mxu0 0.0
  %350 = vmatpush.msra.mxu0 0.0
  %351 = vmatpush.msra.mxu0 0.0
  %352 = vmatpush.msra.mxu0 0.0
  %353 = vmatpush.msra.mxu0 %v338
  %354 = vmatpush.msra.mxu0 %v337
  %355 = vmatpush.msra.mxu0 %v336
  %356 = vmatpush.msra.mxu0 %v335
  %357 = vmatmul.f32.gmra.mxu0 %v339
  %v358 = vpop.f32.mrf.mxu0
  %v359 = vadd.f32 0.0, %v358
  %360 = vdwg.mxu0
  %v361 = vadd.f32 %v333, %v359
  %v362 = vld [vmem:[%s5] sm:$0xff]
  %v363 = vld [vmem:[%s5 + $0x8] sm:$0xff]
  %v364 = vld [vmem:[%s5 + $0x10] sm:$0xff]
  %v365 = vld [vmem:[%s5 + $0x18] sm:$0xff]
  %v366 = vsel %vm199, %v330, 0
  %368 = vmatpush.msra.mxu0 0.0
  %369 = vmatpush.msra.mxu0 0.0
  %370 = vmatpush.msra.mxu0 0.0
  %371 = vmatpush.msra.mxu0 0.0
  %372 = vmatpush.msra.mxu0 0.0
  %373 = vmatpush.msra.mxu0 0.0
  %374 = vmatpush.msra.mxu0 0.0
  %375 = vmatpush.msra.mxu0 0.0
  %376 = vmatpush.msra.mxu0 0.0
  %377 = vmatpush.msra.mxu0 0.0
  %378 = vmatpush.msra.mxu0 0.0
  %379 = vmatpush.msra.mxu0 0.0
  %380 = vmatpush.msra.mxu0 %v365
  %381 = vmatpush.msra.mxu0 %v364
  %382 = vmatpush.msra.mxu0 %v363
  %383 = vmatpush.msra.mxu0 %v362
  %384 = vmatmul.f32.gmra.mxu0 %v366
  %v385 = vpop.f32.mrf.mxu0
  %v386 = vadd.f32 0.0, %v385
  %387 = vdwg.mxu0
  %v388 = vadd.f32 %v334, %v386
  %v389 = vxor.u32 %v361, 2147483648
  %v390 = vmul.f32 %v389, 1.442695
  %v391 = vpow.pop %v390
  %v392 = vadd.f32 %v391, 1.0
  %v393 = vrcp.pop %v392
  %v394 = vmul.f32 %v392, %v393
  %v395 = vsub.f32 1.0, %v394
  %v396 = vmul.f32 %v393, %v395
  %v397 = vadd.f32 %v393, %v396
  %vm398 = vweird.f32 %v392
  %vm399 = vweird.f32 %v393
  %vm400 = vmor %vm398, %vm399
  %v401 = vsel %vm400, %v393, %v397
  %v402 = vand.u32 2147483647, %v392
  %vm403 = vcmp.eq.f32.partialorder %v402, 8.507059e+37
  %v404 = vand.u32 %v392, 2147483648
  %v405 = vor.u32 1.1754944e-38, %v404
  %v406 = vsel %vm403, %v405, %v401
  %v407 = vmul.f32 1.0, %v406
  %v408 = vtanh.pop %v361
  %v409 = vmul.f32 %v407, %v279
  %411 = vrot.lane.b32.xlu0 %v408, 64
  %v412 = vpop.permute.xlu0 %411
  %v414 = vmul.f32 %v407, %v412
  %416 = vrot.lane.b32.xlu0 %v414, 32
  %v417 = vpop.permute.xlu0 %416
  %v419 = vadd.f32 %v409, %v417
  %v420 = vtanh.pop %v419
  %422 = vrot.lane.b32.xlu0 %v420, 64
  %v423 = vpop.permute.xlu0 %422
  %v425 = vmul.f32 %v407, %v423
  %v426 = vxor.u32 %v388, 2147483648
  %v427 = vmul.f32 %v426, 1.442695
  %v428 = vpow.pop %v427
  %v429 = vadd.f32 %v428, 1.0
  %v430 = vrcp.pop %v429
  %v431 = vmul.f32 %v429, %v430
  %v432 = vsub.f32 1.0, %v431
  %v433 = vmul.f32 %v430, %v432
  %v434 = vadd.f32 %v430, %v433
  %vm435 = vweird.f32 %v429
  %vm436 = vweird.f32 %v430
  %vm437 = vmor %vm435, %vm436
  %v438 = vsel %vm437, %v430, %v434
  %v439 = vand.u32 2147483647, %v429
  %vm440 = vcmp.eq.f32.partialorder %v439, 8.507059e+37
  %v441 = vand.u32 %v429, 2147483648
  %v442 = vor.u32 1.1754944e-38, %v441
  %v443 = vsel %vm440, %v442, %v438
  %v444 = vmul.f32 1.0, %v443
  %v445 = vtanh.pop %v388
  %v446 = vmul.f32 %v444, %v316
  %448 = vrot.lane.b32.xlu0 %v445, 64
  %v449 = vpop.permute.xlu0 %448
  %v451 = vmul.f32 %v444, %v449
  %453 = vrot.lane.b32.xlu0 %v451, 32
  %v454 = vpop.permute.xlu0 %453
  %v456 = vadd.f32 %v446, %v454
  %v457 = vtanh.pop %v456
  %459 = vrot.lane.b32.xlu0 %v457, 64
  %v460 = vpop.permute.xlu0 %459
  %v462 = vmul.f32 %v444, %v460
  %464 = vrot.lane.b32.xlu0 %v425, 32
  %v465 = vpop.permute.xlu0 %464
  %467 = vst.msk [vmem:[#allocation2 + $0x8] sm:$0xff] %vm199, %v465
  %469 = vrot.lane.b32.xlu0 %v462, 32
  %v470 = vpop.permute.xlu0 %469
  %472 = vst.msk [vmem:[#allocation3 + $0x30] sm:$0xff] %vm199, %v470
  %v473 = vld [vmem:[#allocation4 + $0x10] sm:$0xff]
  %v474 = vld [vmem:[#allocation5 + $0x28] sm:$0xff]
  %v475 = vld [vmem:[%s2] sm:$0xff]
  %v476 = vld [vmem:[%s2 + $0x8] sm:$0xff]
  %v477 = vld [vmem:[%s2 + $0x10] sm:$0xff]
  %v478 = vld [vmem:[%s2 + $0x18] sm:$0xff]
  %v479 = vsel %vm199, %v465, 0
  %481 = vmatpush.msra.mxu0 0.0
  %482 = vmatpush.msra.mxu0 0.0
  %483 = vmatpush.msra.mxu0 0.0
  %484 = vmatpush.msra.mxu0 0.0
  %485 = vmatpush.msra.mxu0 0.0
  %486 = vmatpush.msra.mxu0 0.0
  %487 = vmatpush.msra.mxu0 0.0
  %488 = vmatpush.msra.mxu0 0.0
  %489 = vmatpush.msra.mxu0 0.0
  %490 = vmatpush.msra.mxu0 0.0
  %491 = vmatpush.msra.mxu0 0.0
  %492 = vmatpush.msra.mxu0 0.0
  %493 = vmatpush.msra.mxu0 %v478
  %494 = vmatpush.msra.mxu0 %v477
  %495 = vmatpush.msra.mxu0 %v476
  %496 = vmatpush.msra.mxu0 %v475
  %497 = vmatmul.f32.gmra.mxu0 %v479
  %v498 = vpop.f32.mrf.mxu0
  %v499 = vadd.f32 0.0, %v498
  %500 = vdwg.mxu0
  %v501 = vadd.f32 %v473, %v499
  %v502 = vld [vmem:[%s5] sm:$0xff]
  %v503 = vld [vmem:[%s5 + $0x8] sm:$0xff]
  %v504 = vld [vmem:[%s5 + $0x10] sm:$0xff]
  %v505 = vld [vmem:[%s5 + $0x18] sm:$0xff]
  %v506 = vsel %vm199, %v470, 0
  %508 = vmatpush.msra.mxu0 0.0
  %509 = vmatpush.msra.mxu0 0.0
  %510 = vmatpush.msra.mxu0 0.0
  %511 = vmatpush.msra.mxu0 0.0
  %512 = vmatpush.msra.mxu0 0.0
  %513 = vmatpush.msra.mxu0 0.0
  %514 = vmatpush.msra.mxu0 0.0
  %515 = vmatpush.msra.mxu0 0.0
  %516 = vmatpush.msra.mxu0 0.0
  %517 = vmatpush.msra.mxu0 0.0
  %518 = vmatpush.msra.mxu0 0.0
  %519 = vmatpush.msra.mxu0 0.0
  %520 = vmatpush.msra.mxu0 %v505
  %521 = vmatpush.msra.mxu0 %v504
  %522 = vmatpush.msra.mxu0 %v503
  %523 = vmatpush.msra.mxu0 %v502
  %524 = vmatmul.f32.gmra.mxu0 %v506
  %v525 = vpop.f32.mrf.mxu0
  %v526 = vadd.f32 0.0, %v525
  %527 = vdwg.mxu0
  %v528 = vadd.f32 %v474, %v526
  %v529 = vxor.u32 %v501, 2147483648
  %v530 = vmul.f32 %v529, 1.442695
  %v531 = vpow.pop %v530
  %v532 = vadd.f32 %v531, 1.0
  %v533 = vrcp.pop %v532
  %v534 = vmul.f32 %v532, %v533
  %v535 = vsub.f32 1.0, %v534
  %v536 = vmul.f32 %v533, %v535
  %v537 = vadd.f32 %v533, %v536
  %vm538 = vweird.f32 %v532
  %vm539 = vweird.f32 %v533
  %vm540 = vmor %vm538, %vm539
  %v541 = vsel %vm540, %v533, %v537
  %v542 = vand.u32 2147483647, %v532
  %vm543 = vcmp.eq.f32.partialorder %v542, 8.507059e+37
  %v544 = vand.u32 %v532, 2147483648
  %v545 = vor.u32 1.1754944e-38, %v544
  %v546 = vsel %vm543, %v545, %v541
  %v547 = vmul.f32 1.0, %v546
  %v548 = vtanh.pop %v501
  %v549 = vmul.f32 %v547, %v419
  %551 = vrot.lane.b32.xlu0 %v548, 64
  %v552 = vpop.permute.xlu0 %551
  %v554 = vmul.f32 %v547, %v552
  %556 = vrot.lane.b32.xlu0 %v554, 32
  %v557 = vpop.permute.xlu0 %556
  %v559 = vadd.f32 %v549, %v557
  %v560 = vtanh.pop %v559
  %562 = vrot.lane.b32.xlu0 %v560, 64
  %v563 = vpop.permute.xlu0 %562
  %v565 = vmul.f32 %v547, %v563
  %v566 = vxor.u32 %v528, 2147483648
  %v567 = vmul.f32 %v566, 1.442695
  %v568 = vpow.pop %v567
  %v569 = vadd.f32 %v568, 1.0
  %v570 = vrcp.pop %v569
  %v571 = vmul.f32 %v569, %v570
  %v572 = vsub.f32 1.0, %v571
  %v573 = vmul.f32 %v570, %v572
  %v574 = vadd.f32 %v570, %v573
  %vm575 = vweird.f32 %v569
  %vm576 = vweird.f32 %v570
  %vm577 = vmor %vm575, %vm576
  %v578 = vsel %vm577, %v570, %v574
  %v579 = vand.u32 2147483647, %v569
  %vm580 = vcmp.eq.f32.partialorder %v579, 8.507059e+37
  %v581 = vand.u32 %v569, 2147483648
  %v582 = vor.u32 1.1754944e-38, %v581
  %v583 = vsel %vm580, %v582, %v578
  %v584 = vmul.f32 1.0, %v583
  %v585 = vtanh.pop %v528
  %v586 = vmul.f32 %v584, %v456
  %588 = vrot.lane.b32.xlu0 %v585, 64
  %v589 = vpop.permute.xlu0 %588
  %v591 = vmul.f32 %v584, %v589
  %593 = vrot.lane.b32.xlu0 %v591, 32
  %v594 = vpop.permute.xlu0 %593
  %v596 = vadd.f32 %v586, %v594
  %v597 = vtanh.pop %v596
  %599 = vrot.lane.b32.xlu0 %v597, 64
  %v600 = vpop.permute.xlu0 %599
  %v602 = vmul.f32 %v584, %v600
  %604 = vrot.lane.b32.xlu0 %v565, 32
  %v605 = vpop.permute.xlu0 %604
  %607 = vst.msk [vmem:[#allocation2 + $0x10] sm:$0xff] %vm199, %v605
  %609 = vrot.lane.b32.xlu0 %v602, 32
  %v610 = vpop.permute.xlu0 %609
  %612 = vst.msk [vmem:[#allocation3 + $0x28] sm:$0xff] %vm199, %v610
  %v613 = vld [vmem:[#allocation4 + $0x18] sm:$0xff]
  %v614 = vld [vmem:[#allocation5 + $0x20] sm:$0xff]
  %v615 = vld [vmem:[%s2] sm:$0xff]
  %v616 = vld [vmem:[%s2 + $0x8] sm:$0xff]
  %v617 = vld [vmem:[%s2 + $0x10] sm:$0xff]
  %v618 = vld [vmem:[%s2 + $0x18] sm:$0xff]
  %v619 = vsel %vm199, %v605, 0
  %621 = vmatpush.msra.mxu0 0.0
  %622 = vmatpush.msra.mxu0 0.0
  %623 = vmatpush.msra.mxu0 0.0
  %624 = vmatpush.msra.mxu0 0.0
  %625 = vmatpush.msra.mxu0 0.0
  %626 = vmatpush.msra.mxu0 0.0
  %627 = vmatpush.msra.mxu0 0.0
  %628 = vmatpush.msra.mxu0 0.0
  %629 = vmatpush.msra.mxu0 0.0
  %630 = vmatpush.msra.mxu0 0.0
  %631 = vmatpush.msra.mxu0 0.0
  %632 = vmatpush.msra.mxu0 0.0
  %633 = vmatpush.msra.mxu0 %v618
  %634 = vmatpush.msra.mxu0 %v617
  %635 = vmatpush.msra.mxu0 %v616
  %636 = vmatpush.msra.mxu0 %v615
  %637 = vmatmul.f32.gmra.mxu0 %v619
  %v638 = vpop.f32.mrf.mxu0
  %v639 = vadd.f32 0.0, %v638
  %640 = vdwg.mxu0
  %v641 = vadd.f32 %v613, %v639
  %v642 = vld [vmem:[%s5] sm:$0xff]
  %v643 = vld [vmem:[%s5 + $0x8] sm:$0xff]
  %v644 = vld [vmem:[%s5 + $0x10] sm:$0xff]
  %v645 = vld [vmem:[%s5 + $0x18] sm:$0xff]
  %v646 = vsel %vm199, %v610, 0
  %648 = vmatpush.msra.mxu0 0.0
  %649 = vmatpush.msra.mxu0 0.0
  %650 = vmatpush.msra.mxu0 0.0
  %651 = vmatpush.msra.mxu0 0.0
  %652 = vmatpush.msra.mxu0 0.0
  %653 = vmatpush.msra.mxu0 0.0
  %654 = vmatpush.msra.mxu0 0.0
  %655 = vmatpush.msra.mxu0 0.0
  %656 = vmatpush.msra.mxu0 0.0
  %657 = vmatpush.msra.mxu0 0.0
  %658 = vmatpush.msra.mxu0 0.0
  %659 = vmatpush.msra.mxu0 0.0
  %660 = vmatpush.msra.mxu0 %v645
  %661 = vmatpush.msra.mxu0 %v644
  %662 = vmatpush.msra.mxu0 %v643
  %663 = vmatpush.msra.mxu0 %v642
  %664 = vmatmul.f32.gmra.mxu0 %v646
  %v665 = vpop.f32.mrf.mxu0
  %v666 = vadd.f32 0.0, %v665
  %667 = vdwg.mxu0
  %v668 = vadd.f32 %v614, %v666
  %v669 = vxor.u32 %v641, 2147483648
  %v670 = vmul.f32 %v669, 1.442695
  %v671 = vpow.pop %v670
  %v672 = vadd.f32 %v671, 1.0
  %v673 = vrcp.pop %v672
  %v674 = vmul.f32 %v672, %v673
  %v675 = vsub.f32 1.0, %v674
  %v676 = vmul.f32 %v673, %v675
  %v677 = vadd.f32 %v673, %v676
  %vm678 = vweird.f32 %v672
  %vm679 = vweird.f32 %v673
  %vm680 = vmor %vm678, %vm679
  %v681 = vsel %vm680, %v673, %v677
  %v682 = vand.u32 2147483647, %v672
  %vm683 = vcmp.eq.f32.partialorder %v682, 8.507059e+37
  %v684 = vand.u32 %v672, 2147483648
  %v685 = vor.u32 1.1754944e-38, %v684
  %v686 = vsel %vm683, %v685, %v681
  %v687 = vmul.f32 1.0, %v686
  %v688 = vtanh.pop %v641
  %v689 = vmul.f32 %v687, %v559
  %691 = vrot.lane.b32.xlu0 %v688, 64
  %v692 = vpop.permute.xlu0 %691
  %v694 = vmul.f32 %v687, %v692
  %696 = vrot.lane.b32.xlu0 %v694, 32
  %v697 = vpop.permute.xlu0 %696
  %v699 = vadd.f32 %v689, %v697
  %v700 = vtanh.pop %v699
  %702 = vrot.lane.b32.xlu0 %v700, 64
  %v703 = vpop.permute.xlu0 %702
  %v705 = vmul.f32 %v687, %v703
  %v706 = vxor.u32 %v668, 2147483648
  %v707 = vmul.f32 %v706, 1.442695
  %v708 = vpow.pop %v707
  %v709 = vadd.f32 %v708, 1.0
  %v710 = vrcp.pop %v709
  %v711 = vmul.f32 %v709, %v710
  %v712 = vsub.f32 1.0, %v711
  %v713 = vmul.f32 %v710, %v712
  %v714 = vadd.f32 %v710, %v713
  %vm715 = vweird.f32 %v709
  %vm716 = vweird.f32 %v710
  %vm717 = vmor %vm715, %vm716
  %v718 = vsel %vm717, %v710, %v714
  %v719 = vand.u32 2147483647, %v709
  %vm720 = vcmp.eq.f32.partialorder %v719, 8.507059e+37
  %v721 = vand.u32 %v709, 2147483648
  %v722 = vor.u32 1.1754944e-38, %v721
  %v723 = vsel %vm720, %v722, %v718
  %v724 = vmul.f32 1.0, %v723
  %v725 = vtanh.pop %v668
  %v726 = vmul.f32 %v724, %v596
  %728 = vrot.lane.b32.xlu0 %v725, 64
  %v729 = vpop.permute.xlu0 %728
  %v731 = vmul.f32 %v724, %v729
  %733 = vrot.lane.b32.xlu0 %v731, 32
  %v734 = vpop.permute.xlu0 %733
  %v736 = vadd.f32 %v726, %v734
  %v737 = vtanh.pop %v736
  %739 = vrot.lane.b32.xlu0 %v737, 64
  %v740 = vpop.permute.xlu0 %739
  %v742 = vmul.f32 %v724, %v740
  %744 = vrot.lane.b32.xlu0 %v705, 32
  %v745 = vpop.permute.xlu0 %744
  %747 = vst.msk [vmem:[#allocation2 + $0x18] sm:$0xff] %vm199, %v745
  %749 = vrot.lane.b32.xlu0 %v742, 32
  %v750 = vpop.permute.xlu0 %749
  %752 = vst.msk [vmem:[#allocation3 + $0x20] sm:$0xff] %vm199, %v750
  %v753 = vld [vmem:[#allocation4 + $0x20] sm:$0xff]
  %v754 = vld [vmem:[#allocation5 + $0x18] sm:$0xff]
  %v755 = vld [vmem:[%s2] sm:$0xff]
  %v756 = vld [vmem:[%s2 + $0x8] sm:$0xff]
  %v757 = vld [vmem:[%s2 + $0x10] sm:$0xff]
  %v758 = vld [vmem:[%s2 + $0x18] sm:$0xff]
  %v759 = vsel %vm199, %v745, 0
  %761 = vmatpush.msra.mxu0 0.0
  %762 = vmatpush.msra.mxu0 0.0
  %763 = vmatpush.msra.mxu0 0.0
  %764 = vmatpush.msra.mxu0 0.0
  %765 = vmatpush.msra.mxu0 0.0
  %766 = vmatpush.msra.mxu0 0.0
  %767 = vmatpush.msra.mxu0 0.0
  %768 = vmatpush.msra.mxu0 0.0
  %769 = vmatpush.msra.mxu0 0.0
  %770 = vmatpush.msra.mxu0 0.0
  %771 = vmatpush.msra.mxu0 0.0
  %772 = vmatpush.msra.mxu0 0.0
  %773 = vmatpush.msra.mxu0 %v758
  %774 = vmatpush.msra.mxu0 %v757
  %775 = vmatpush.msra.mxu0 %v756
  %776 = vmatpush.msra.mxu0 %v755
  %777 = vmatmul.f32.gmra.mxu0 %v759
  %v778 = vpop.f32.mrf.mxu0
  %v779 = vadd.f32 0.0, %v778
  %780 = vdwg.mxu0
  %v781 = vadd.f32 %v753, %v779
  %v782 = vld [vmem:[%s5] sm:$0xff]
  %v783 = vld [vmem:[%s5 + $0x8] sm:$0xff]
  %v784 = vld [vmem:[%s5 + $0x10] sm:$0xff]
  %v785 = vld [vmem:[%s5 + $0x18] sm:$0xff]
  %v786 = vsel %vm199, %v750, 0
  %788 = vmatpush.msra.mxu0 0.0
  %789 = vmatpush.msra.mxu0 0.0
  %790 = vmatpush.msra.mxu0 0.0
  %791 = vmatpush.msra.mxu0 0.0
  %792 = vmatpush.msra.mxu0 0.0
  %793 = vmatpush.msra.mxu0 0.0
  %794 = vmatpush.msra.mxu0 0.0
  %795 = vmatpush.msra.mxu0 0.0
  %796 = vmatpush.msra.mxu0 0.0
  %797 = vmatpush.msra.mxu0 0.0
  %798 = vmatpush.msra.mxu0 0.0
  %799 = vmatpush.msra.mxu0 0.0
  %800 = vmatpush.msra.mxu0 %v785
  %801 = vmatpush.msra.mxu0 %v784
  %802 = vmatpush.msra.mxu0 %v783
  %803 = vmatpush.msra.mxu0 %v782
  %804 = vmatmul.f32.gmra.mxu0 %v786
  %v805 = vpop.f32.mrf.mxu0
  %v806 = vadd.f32 0.0, %v805
  %807 = vdwg.mxu0
  %v808 = vadd.f32 %v754, %v806
  %v809 = vxor.u32 %v781, 2147483648
  %v810 = vmul.f32 %v809, 1.442695
  %v811 = vpow.pop %v810
  %v812 = vadd.f32 %v811, 1.0
  %v813 = vrcp.pop %v812
  %v814 = vmul.f32 %v812, %v813
  %v815 = vsub.f32 1.0, %v814
  %v816 = vmul.f32 %v813, %v815
  %v817 = vadd.f32 %v813, %v816
  %vm818 = vweird.f32 %v812
  %vm819 = vweird.f32 %v813
  %vm820 = vmor %vm818, %vm819
  %v821 = vsel %vm820, %v813, %v817
  %v822 = vand.u32 2147483647, %v812
  %vm823 = vcmp.eq.f32.partialorder %v822, 8.507059e+37
  %v824 = vand.u32 %v812, 2147483648
  %v825 = vor.u32 1.1754944e-38, %v824
  %v826 = vsel %vm823, %v825, %v821
  %v827 = vmul.f32 1.0, %v826
  %v828 = vtanh.pop %v781
  %v829 = vmul.f32 %v827, %v699
  %831 = vrot.lane.b32.xlu0 %v828, 64
  %v832 = vpop.permute.xlu0 %831
  %v834 = vmul.f32 %v827, %v832
  %836 = vrot.lane.b32.xlu0 %v834, 32
  %v837 = vpop.permute.xlu0 %836
  %v839 = vadd.f32 %v829, %v837
  %v840 = vtanh.pop %v839
  %842 = vrot.lane.b32.xlu0 %v840, 64
  %v843 = vpop.permute.xlu0 %842
  %v845 = vmul.f32 %v827, %v843
  %v846 = vxor.u32 %v808, 2147483648
  %v847 = vmul.f32 %v846, 1.442695
  %v848 = vpow.pop %v847
  %v849 = vadd.f32 %v848, 1.0
  %v850 = vrcp.pop %v849
  %v851 = vmul.f32 %v849, %v850
  %v852 = vsub.f32 1.0, %v851
  %v853 = vmul.f32 %v850, %v852
  %v854 = vadd.f32 %v850, %v853
  %vm855 = vweird.f32 %v849
  %vm856 = vweird.f32 %v850
  %vm857 = vmor %vm855, %vm856
  %v858 = vsel %vm857, %v850, %v854
  %v859 = vand.u32 2147483647, %v849
  %vm860 = vcmp.eq.f32.partialorder %v859, 8.507059e+37
  %v861 = vand.u32 %v849, 2147483648
  %v862 = vor.u32 1.1754944e-38, %v861
  %v863 = vsel %vm860, %v862, %v858
  %v864 = vmul.f32 1.0, %v863
  %v865 = vtanh.pop %v808
  %v866 = vmul.f32 %v864, %v736
  %868 = vrot.lane.b32.xlu0 %v865, 64
  %v869 = vpop.permute.xlu0 %868
  %v871 = vmul.f32 %v864, %v869
  %873 = vrot.lane.b32.xlu0 %v871, 32
  %v874 = vpop.permute.xlu0 %873
  %v876 = vadd.f32 %v866, %v874
  %v877 = vtanh.pop %v876
  %879 = vrot.lane.b32.xlu0 %v877, 64
  %v880 = vpop.permute.xlu0 %879
  %v882 = vmul.f32 %v864, %v880
  %884 = vrot.lane.b32.xlu0 %v845, 32
  %v885 = vpop.permute.xlu0 %884
  %887 = vst.msk [vmem:[#allocation2 + $0x20] sm:$0xff] %vm199, %v885
  %889 = vrot.lane.b32.xlu0 %v882, 32
  %v890 = vpop.permute.xlu0 %889
  %892 = vst.msk [vmem:[#allocation3 + $0x18] sm:$0xff] %vm199, %v890
  %v893 = vld [vmem:[#allocation4 + $0x28] sm:$0xff]
  %v894 = vld [vmem:[#allocation5 + $0x10] sm:$0xff]
  %v895 = vld [vmem:[%s2] sm:$0xff]
  %v896 = vld [vmem:[%s2 + $0x8] sm:$0xff]
  %v897 = vld [vmem:[%s2 + $0x10] sm:$0xff]
  %v898 = vld [vmem:[%s2 + $0x18] sm:$0xff]
  %v899 = vsel %vm199, %v885, 0
  %901 = vmatpush.msra.mxu0 0.0
  %902 = vmatpush.msra.mxu0 0.0
  %903 = vmatpush.msra.mxu0 0.0
  %904 = vmatpush.msra.mxu0 0.0
  %905 = vmatpush.msra.mxu0 0.0
  %906 = vmatpush.msra.mxu0 0.0
  %907 = vmatpush.msra.mxu0 0.0
  %908 = vmatpush.msra.mxu0 0.0
  %909 = vmatpush.msra.mxu0 0.0
  %910 = vmatpush.msra.mxu0 0.0
  %911 = vmatpush.msra.mxu0 0.0
  %912 = vmatpush.msra.mxu0 0.0
  %913 = vmatpush.msra.mxu0 %v898
  %914 = vmatpush.msra.mxu0 %v897
  %915 = vmatpush.msra.mxu0 %v896
  %916 = vmatpush.msra.mxu0 %v895
  %917 = vmatmul.f32.gmra.mxu0 %v899
  %v918 = vpop.f32.mrf.mxu0
  %v919 = vadd.f32 0.0, %v918
  %920 = vdwg.mxu0
  %v921 = vadd.f32 %v893, %v919
  %v922 = vld [vmem:[%s5] sm:$0xff]
  %v923 = vld [vmem:[%s5 + $0x8] sm:$0xff]
  %v924 = vld [vmem:[%s5 + $0x10] sm:$0xff]
  %v925 = vld [vmem:[%s5 + $0x18] sm:$0xff]
  %v926 = vsel %vm199, %v890, 0
  %928 = vmatpush.msra.mxu0 0.0
  %929 = vmatpush.msra.mxu0 0.0
  %930 = vmatpush.msra.mxu0 0.0
  %931 = vmatpush.msra.mxu0 0.0
  %932 = vmatpush.msra.mxu0 0.0
  %933 = vmatpush.msra.mxu0 0.0
  %934 = vmatpush.msra.mxu0 0.0
  %935 = vmatpush.msra.mxu0 0.0
  %936 = vmatpush.msra.mxu0 0.0
  %937 = vmatpush.msra.mxu0 0.0
  %938 = vmatpush.msra.mxu0 0.0
  %939 = vmatpush.msra.mxu0 0.0
  %940 = vmatpush.msra.mxu0 %v925
  %941 = vmatpush.msra.mxu0 %v924
  %942 = vmatpush.msra.mxu0 %v923
  %943 = vmatpush.msra.mxu0 %v922
  %944 = vmatmul.f32.gmra.mxu0 %v926
  %v945 = vpop.f32.mrf.mxu0
  %v946 = vadd.f32 0.0, %v945
  %947 = vdwg.mxu0
  %v948 = vadd.f32 %v894, %v946
  %v949 = vxor.u32 %v921, 2147483648
  %v950 = vmul.f32 %v949, 1.442695
  %v951 = vpow.pop %v950
  %v952 = vadd.f32 %v951, 1.0
  %v953 = vrcp.pop %v952
  %v954 = vmul.f32 %v952, %v953
  %v955 = vsub.f32 1.0, %v954
  %v956 = vmul.f32 %v953, %v955
  %v957 = vadd.f32 %v953, %v956
  %vm958 = vweird.f32 %v952
  %vm959 = vweird.f32 %v953
  %vm960 = vmor %vm958, %vm959
  %v961 = vsel %vm960, %v953, %v957
  %v962 = vand.u32 2147483647, %v952
  %vm963 = vcmp.eq.f32.partialorder %v962, 8.507059e+37
  %v964 = vand.u32 %v952, 2147483648
  %v965 = vor.u32 1.1754944e-38, %v964
  %v966 = vsel %vm963, %v965, %v961
  %v967 = vmul.f32 1.0, %v966
  %v968 = vtanh.pop %v921
  %v969 = vmul.f32 %v967, %v839
  %971 = vrot.lane.b32.xlu0 %v968, 64
  %v972 = vpop.permute.xlu0 %971
  %v974 = vmul.f32 %v967, %v972
  %976 = vrot.lane.b32.xlu0 %v974, 32
  %v977 = vpop.permute.xlu0 %976
  %v979 = vadd.f32 %v969, %v977
  %v980 = vtanh.pop %v979
  %982 = vrot.lane.b32.xlu0 %v980, 64
  %v983 = vpop.permute.xlu0 %982
  %v985 = vmul.f32 %v967, %v983
  %v986 = vxor.u32 %v948, 2147483648
  %v987 = vmul.f32 %v986, 1.442695
  %v988 = vpow.pop %v987
  %v989 = vadd.f32 %v988, 1.0
  %v990 = vrcp.pop %v989
  %v991 = vmul.f32 %v989, %v990
  %v992 = vsub.f32 1.0, %v991
  %v993 = vmul.f32 %v990, %v992
  %v994 = vadd.f32 %v990, %v993
  %vm995 = vweird.f32 %v989
  %vm996 = vweird.f32 %v990
  %vm997 = vmor %vm995, %vm996
  %v998 = vsel %vm997, %v990, %v994
  %v999 = vand.u32 2147483647, %v989
  %vm1000 = vcmp.eq.f32.partialorder %v999, 8.507059e+37
  %v1001 = vand.u32 %v989, 2147483648
  %v1002 = vor.u32 1.1754944e-38, %v1001
  %v1003 = vsel %vm1000, %v1002, %v998
  %v1004 = vmul.f32 1.0, %v1003
  %v1005 = vtanh.pop %v948
  %v1006 = vmul.f32 %v1004, %v876
  %1008 = vrot.lane.b32.xlu0 %v1005, 64
  %v1009 = vpop.permute.xlu0 %1008
  %v1011 = vmul.f32 %v1004, %v1009
  %1013 = vrot.lane.b32.xlu0 %v1011, 32
  %v1014 = vpop.permute.xlu0 %1013
  %v1016 = vadd.f32 %v1006, %v1014
  %v1017 = vtanh.pop %v1016
  %1019 = vrot.lane.b32.xlu0 %v1017, 64
  %v1020 = vpop.permute.xlu0 %1019
  %v1022 = vmul.f32 %v1004, %v1020
  %1024 = vrot.lane.b32.xlu0 %v985, 32
  %v1025 = vpop.permute.xlu0 %1024
  %1027 = vst.msk [vmem:[#allocation2 + $0x28] sm:$0xff] %vm199, %v1025
  %1029 = vrot.lane.b32.xlu0 %v1022, 32
  %v1030 = vpop.permute.xlu0 %1029
  %1032 = vst.msk [vmem:[#allocation3 + $0x10] sm:$0xff] %vm199, %v1030
  %v1033 = vld [vmem:[#allocation4 + $0x30] sm:$0xff]
  %v1034 = vld [vmem:[#allocation5 + $0x8] sm:$0xff]
  %v1035 = vld [vmem:[%s2] sm:$0xff]
  %v1036 = vld [vmem:[%s2 + $0x8] sm:$0xff]
  %v1037 = vld [vmem:[%s2 + $0x10] sm:$0xff]
  %v1038 = vld [vmem:[%s2 + $0x18] sm:$0xff]
  %v1039 = vsel %vm199, %v1025, 0
  %1041 = vmatpush.msra.mxu0 0.0
  %1042 = vmatpush.msra.mxu0 0.0
  %1043 = vmatpush.msra.mxu0 0.0
  %1044 = vmatpush.msra.mxu0 0.0
  %1045 = vmatpush.msra.mxu0 0.0
  %1046 = vmatpush.msra.mxu0 0.0
  %1047 = vmatpush.msra.mxu0 0.0
  %1048 = vmatpush.msra.mxu0 0.0
  %1049 = vmatpush.msra.mxu0 0.0
  %1050 = vmatpush.msra.mxu0 0.0
  %1051 = vmatpush.msra.mxu0 0.0
  %1052 = vmatpush.msra.mxu0 0.0
  %1053 = vmatpush.msra.mxu0 %v1038
  %1054 = vmatpush.msra.mxu0 %v1037
  %1055 = vmatpush.msra.mxu0 %v1036
  %1056 = vmatpush.msra.mxu0 %v1035
  %1057 = vmatmul.f32.gmra.mxu0 %v1039
  %v1058 = vpop.f32.mrf.mxu0
  %v1059 = vadd.f32 0.0, %v1058
  %1060 = vdwg.mxu0
  %v1061 = vadd.f32 %v1033, %v1059
  %v1062 = vld [vmem:[%s5] sm:$0xff]
  %v1063 = vld [vmem:[%s5 + $0x8] sm:$0xff]
  %v1064 = vld [vmem:[%s5 + $0x10] sm:$0xff]
  %v1065 = vld [vmem:[%s5 + $0x18] sm:$0xff]
  %v1066 = vsel %vm199, %v1030, 0
  %1068 = vmatpush.msra.mxu0 0.0
  %1069 = vmatpush.msra.mxu0 0.0
  %1070 = vmatpush.msra.mxu0 0.0
  %1071 = vmatpush.msra.mxu0 0.0
  %1072 = vmatpush.msra.mxu0 0.0
  %1073 = vmatpush.msra.mxu0 0.0
  %1074 = vmatpush.msra.mxu0 0.0
  %1075 = vmatpush.msra.mxu0 0.0
  %1076 = vmatpush.msra.mxu0 0.0
  %1077 = vmatpush.msra.mxu0 0.0
  %1078 = vmatpush.msra.mxu0 0.0
  %1079 = vmatpush.msra.mxu0 0.0
  %1080 = vmatpush.msra.mxu0 %v1065
  %1081 = vmatpush.msra.mxu0 %v1064
  %1082 = vmatpush.msra.mxu0 %v1063
  %1083 = vmatpush.msra.mxu0 %v1062
  %1084 = vmatmul.f32.gmra.mxu0 %v1066
  %v1085 = vpop.f32.mrf.mxu0
  %v1086 = vadd.f32 0.0, %v1085
  %1087 = vdwg.mxu0
  %v1088 = vadd.f32 %v1034, %v1086
  %v1089 = vxor.u32 %v1061, 2147483648
  %v1090 = vmul.f32 %v1089, 1.442695
  %v1091 = vpow.pop %v1090
  %v1092 = vadd.f32 %v1091, 1.0
  %v1093 = vrcp.pop %v1092
  %v1094 = vmul.f32 %v1092, %v1093
  %v1095 = vsub.f32 1.0, %v1094
  %v1096 = vmul.f32 %v1093, %v1095
  %v1097 = vadd.f32 %v1093, %v1096
  %vm1098 = vweird.f32 %v1092
  %vm1099 = vweird.f32 %v1093
  %vm1100 = vmor %vm1098, %vm1099
  %v1101 = vsel %vm1100, %v1093, %v1097
  %v1102 = vand.u32 2147483647, %v1092
  %vm1103 = vcmp.eq.f32.partialorder %v1102, 8.507059e+37
  %v1104 = vand.u32 %v1092, 2147483648
  %v1105 = vor.u32 1.1754944e-38, %v1104
  %v1106 = vsel %vm1103, %v1105, %v1101
  %v1107 = vmul.f32 1.0, %v1106
  %v1108 = vtanh.pop %v1061
  %v1109 = vmul.f32 %v1107, %v979
  %1111 = vrot.lane.b32.xlu0 %v1108, 64
  %v1112 = vpop.permute.xlu0 %1111
  %v1114 = vmul.f32 %v1107, %v1112
  %1116 = vrot.lane.b32.xlu0 %v1114, 32
  %v1117 = vpop.permute.xlu0 %1116
  %v1119 = vadd.f32 %v1109, %v1117
  %v1120 = vtanh.pop %v1119
  %1122 = vrot.lane.b32.xlu0 %v1120, 64
  %v1123 = vpop.permute.xlu0 %1122
  %v1125 = vmul.f32 %v1107, %v1123
  %v1126 = vxor.u32 %v1088, 2147483648
  %v1127 = vmul.f32 %v1126, 1.442695
  %v1128 = vpow.pop %v1127
  %v1129 = vadd.f32 %v1128, 1.0
  %v1130 = vrcp.pop %v1129
  %v1131 = vmul.f32 %v1129, %v1130
  %v1132 = vsub.f32 1.0, %v1131
  %v1133 = vmul.f32 %v1130, %v1132
  %v1134 = vadd.f32 %v1130, %v1133
  %vm1135 = vweird.f32 %v1129
  %vm1136 = vweird.f32 %v1130
  %vm1137 = vmor %vm1135, %vm1136
  %v1138 = vsel %vm1137, %v1130, %v1134
  %v1139 = vand.u32 2147483647, %v1129
  %vm1140 = vcmp.eq.f32.partialorder %v1139, 8.507059e+37
  %v1141 = vand.u32 %v1129, 2147483648
  %v1142 = vor.u32 1.1754944e-38, %v1141
  %v1143 = vsel %vm1140, %v1142, %v1138
  %v1144 = vmul.f32 1.0, %v1143
  %v1145 = vtanh.pop %v1088
  %v1146 = vmul.f32 %v1144, %v1016
  %1148 = vrot.lane.b32.xlu0 %v1145, 64
  %v1149 = vpop.permute.xlu0 %1148
  %v1151 = vmul.f32 %v1144, %v1149
  %1153 = vrot.lane.b32.xlu0 %v1151, 32
  %v1154 = vpop.permute.xlu0 %1153
  %v1156 = vadd.f32 %v1146, %v1154
  %v1157 = vtanh.pop %v1156
  %1159 = vrot.lane.b32.xlu0 %v1157, 64
  %v1160 = vpop.permute.xlu0 %1159
  %v1162 = vmul.f32 %v1144, %v1160
  %1164 = vrot.lane.b32.xlu0 %v1125, 32
  %v1165 = vpop.permute.xlu0 %1164
  %1167 = vst.msk [vmem:[#allocation2 + $0x30] sm:$0xff] %vm199, %v1165
  %1169 = vrot.lane.b32.xlu0 %v1162, 32
  %v1170 = vpop.permute.xlu0 %1169
  %1172 = vst.msk [vmem:[#allocation3 + $0x8] sm:$0xff] %vm199, %v1170
  %v1173 = vld [vmem:[#allocation4 + $0x38] sm:$0xff]
  %v1174 = vld [vmem:[#allocation5] sm:$0xff]
  %v1175 = vld [vmem:[%s2] sm:$0xff]
  %v1176 = vld [vmem:[%s2 + $0x8] sm:$0xff]
  %v1177 = vld [vmem:[%s2 + $0x10] sm:$0xff]
  %v1178 = vld [vmem:[%s2 + $0x18] sm:$0xff]
  %v1179 = vsel %vm199, %v1165, 0
  %1181 = vmatpush.msra.mxu0 0.0
  %1182 = vmatpush.msra.mxu0 0.0
  %1183 = vmatpush.msra.mxu0 0.0
  %1184 = vmatpush.msra.mxu0 0.0
  %1185 = vmatpush.msra.mxu0 0.0
  %1186 = vmatpush.msra.mxu0 0.0
  %1187 = vmatpush.msra.mxu0 0.0
  %1188 = vmatpush.msra.mxu0 0.0
  %1189 = vmatpush.msra.mxu0 0.0
  %1190 = vmatpush.msra.mxu0 0.0
  %1191 = vmatpush.msra.mxu0 0.0
  %1192 = vmatpush.msra.mxu0 0.0
  %1193 = vmatpush.msra.mxu0 %v1178
  %1194 = vmatpush.msra.mxu0 %v1177
  %1195 = vmatpush.msra.mxu0 %v1176
  %1196 = vmatpush.msra.mxu0 %v1175
  %1197 = vmatmul.f32.gmra.mxu0 %v1179
  %v1198 = vpop.f32.mrf.mxu0
  %v1199 = vadd.f32 0.0, %v1198
  %1200 = vdwg.mxu0
  %v1201 = vadd.f32 %v1173, %v1199
  %v1202 = vld [vmem:[%s5] sm:$0xff]
  %v1203 = vld [vmem:[%s5 + $0x8] sm:$0xff]
  %v1204 = vld [vmem:[%s5 + $0x10] sm:$0xff]
  %v1205 = vld [vmem:[%s5 + $0x18] sm:$0xff]
  %v1206 = vsel %vm199, %v1170, 0
  %1208 = vmatpush.msra.mxu0 0.0
  %1209 = vmatpush.msra.mxu0 0.0
  %1210 = vmatpush.msra.mxu0 0.0
  %1211 = vmatpush.msra.mxu0 0.0
  %1212 = vmatpush.msra.mxu0 0.0
  %1213 = vmatpush.msra.mxu0 0.0
  %1214 = vmatpush.msra.mxu0 0.0
  %1215 = vmatpush.msra.mxu0 0.0
  %1216 = vmatpush.msra.mxu0 0.0
  %1217 = vmatpush.msra.mxu0 0.0
  %1218 = vmatpush.msra.mxu0 0.0
  %1219 = vmatpush.msra.mxu0 0.0
  %1220 = vmatpush.msra.mxu0 %v1205
  %1221 = vmatpush.msra.mxu0 %v1204
  %1222 = vmatpush.msra.mxu0 %v1203
  %1223 = vmatpush.msra.mxu0 %v1202
  %1224 = vmatmul.f32.gmra.mxu0 %v1206
  %v1225 = vpop.f32.mrf.mxu0
  %v1226 = vadd.f32 0.0, %v1225
  %1227 = vdwg.mxu0
  %v1228 = vadd.f32 %v1174, %v1226
  %v1229 = vxor.u32 %v1201, 2147483648
  %v1230 = vmul.f32 %v1229, 1.442695
  %v1231 = vpow.pop %v1230
  %v1232 = vadd.f32 %v1231, 1.0
  %v1233 = vrcp.pop %v1232
  %v1234 = vmul.f32 %v1232, %v1233
  %v1235 = vsub.f32 1.0, %v1234
  %v1236 = vmul.f32 %v1233, %v1235
  %v1237 = vadd.f32 %v1233, %v1236
  %vm1238 = vweird.f32 %v1232
  %vm1239 = vweird.f32 %v1233
  %vm1240 = vmor %vm1238, %vm1239
  %v1241 = vsel %vm1240, %v1233, %v1237
  %v1242 = vand.u32 2147483647, %v1232
  %vm1243 = vcmp.eq.f32.partialorder %v1242, 8.507059e+37
  %v1244 = vand.u32 %v1232, 2147483648
  %v1245 = vor.u32 1.1754944e-38, %v1244
  %v1246 = vsel %vm1243, %v1245, %v1241
  %v1247 = vmul.f32 1.0, %v1246
  %v1248 = vtanh.pop %v1201
  %v1249 = vmul.f32 %v1247, %v1119
  %1251 = vrot.lane.b32.xlu0 %v1248, 64
  %v1252 = vpop.permute.xlu0 %1251
  %v1254 = vmul.f32 %v1247, %v1252
  %1256 = vrot.lane.b32.xlu0 %v1254, 32
  %v1257 = vpop.permute.xlu0 %1256
  %v1259 = vadd.f32 %v1249, %v1257
  %v1260 = vtanh.pop %v1259
  %1262 = vrot.lane.b32.xlu0 %v1260, 64
  %v1263 = vpop.permute.xlu0 %1262
  %v1265 = vmul.f32 %v1247, %v1263
  %v1266 = vxor.u32 %v1228, 2147483648
  %v1267 = vmul.f32 %v1266, 1.442695
  %v1268 = vpow.pop %v1267
  %v1269 = vadd.f32 %v1268, 1.0
  %v1270 = vrcp.pop %v1269
  %v1271 = vmul.f32 %v1269, %v1270
  %v1272 = vsub.f32 1.0, %v1271
  %v1273 = vmul.f32 %v1270, %v1272
  %v1274 = vadd.f32 %v1270, %v1273
  %vm1275 = vweird.f32 %v1269
  %vm1276 = vweird.f32 %v1270
  %vm1277 = vmor %vm1275, %vm1276
  %v1278 = vsel %vm1277, %v1270, %v1274
  %v1279 = vand.u32 2147483647, %v1269
  %vm1280 = vcmp.eq.f32.partialorder %v1279, 8.507059e+37
  %v1281 = vand.u32 %v1269, 2147483648
  %v1282 = vor.u32 1.1754944e-38, %v1281
  %v1283 = vsel %vm1280, %v1282, %v1278
  %v1284 = vmul.f32 1.0, %v1283
  %v1285 = vtanh.pop %v1228
  %v1286 = vmul.f32 %v1284, %v1156
  %1288 = vrot.lane.b32.xlu0 %v1285, 64
  %v1289 = vpop.permute.xlu0 %1288
  %v1291 = vmul.f32 %v1284, %v1289
  %1293 = vrot.lane.b32.xlu0 %v1291, 32
  %v1294 = vpop.permute.xlu0 %1293
  %v1296 = vadd.f32 %v1286, %v1294
  %v1297 = vtanh.pop %v1296
  %1299 = vrot.lane.b32.xlu0 %v1297, 64
  %v1300 = vpop.permute.xlu0 %1299
  %v1302 = vmul.f32 %v1284, %v1300
  %1304 = vrot.lane.b32.xlu0 %v1265, 32
  %v1305 = vpop.permute.xlu0 %1304
  %1307 = vst.msk [vmem:[#allocation2 + $0x38] sm:$0xff] %vm199, %v1305
  %1309 = vrot.lane.b32.xlu0 %v1302, 32
  %v1310 = vpop.permute.xlu0 %1309
  %1312 = vst.msk [vmem:[#allocation3] sm:$0xff] %vm199, %v1310
  %v1313 = vld [vmem:[#allocation2] sm:$0xff]
  %v1314 = vld [vmem:[#allocation2 + $0x8] sm:$0xff]
  %v1315 = vld [vmem:[#allocation2 + $0x10] sm:$0xff]
  %v1316 = vld [vmem:[#allocation2 + $0x18] sm:$0xff]
  %v1317 = vld [vmem:[#allocation2 + $0x20] sm:$0xff]
  %v1318 = vld [vmem:[#allocation2 + $0x28] sm:$0xff]
  %v1319 = vld [vmem:[#allocation2 + $0x30] sm:$0xff]
  %v1320 = vld [vmem:[#allocation2 + $0x38] sm:$0xff]
  %v1321 = vld [vmem:[#allocation3] sm:$0xff]
  %v1322 = vld [vmem:[#allocation3 + $0x8] sm:$0xff]
  %v1323 = vld [vmem:[#allocation3 + $0x10] sm:$0xff]
  %v1324 = vld [vmem:[#allocation3 + $0x18] sm:$0xff]
  %v1325 = vld [vmem:[#allocation3 + $0x20] sm:$0xff]
  %v1326 = vld [vmem:[#allocation3 + $0x28] sm:$0xff]
  %v1327 = vld [vmem:[#allocation3 + $0x30] sm:$0xff]
  %v1328 = vld [vmem:[#allocation3 + $0x38] sm:$0xff]
  %v1329 = vld [vmem:[%s7] sm:$0xff]
  %v1330 = vld [vmem:[%s7 + $0x8] sm:$0xff]
  %v1331 = vld [vmem:[%s7 + $0x10] sm:$0xff]
  %v1332 = vld [vmem:[%s7 + $0x18] sm:$0xff]
  %v1333 = vld [vmem:[%s7 + $0x20] sm:$0xff]
  %v1334 = vld [vmem:[%s7 + $0x28] sm:$0xff]
  %v1335 = vld [vmem:[%s7 + $0x30] sm:$0xff]
  %v1336 = vld [vmem:[%s7 + $0x38] sm:$0xff]
  %v1338 = vsel %vm199, %v1321, 0
  %v1341 = vsel %vm199, %v1322, 0
  %v1344 = vsel %vm199, %v1323, 0
  %v1347 = vsel %vm199, %v1324, 0
  %v1350 = vsel %vm199, %v1325, 0
  %v1353 = vsel %vm199, %v1326, 0
  %v1356 = vsel %vm199, %v1327, 0
  %v1359 = vsel %vm199, %v1328, 0
  %1361 = vmatpush.msra.mxu0 0.0
  %1362 = vmatpush.msra.mxu0 0.0
  %1363 = vmatpush.msra.mxu0 0.0
  %1364 = vmatpush.msra.mxu0 0.0
  %1365 = vmatpush.msra.mxu0 0.0
  %1366 = vmatpush.msra.mxu0 0.0
  %1367 = vmatpush.msra.mxu0 0.0
  %1368 = vmatpush.msra.mxu0 0.0
  %1369 = vmatpush.msra.mxu0 0.0
  %1370 = vmatpush.msra.mxu0 0.0
  %1371 = vmatpush.msra.mxu0 0.0
  %1372 = vmatpush.msra.mxu0 0.0
  %1373 = vmatpush.msra.mxu0 %v1336
  %1374 = vmatpush.msra.mxu0 %v1335
  %1375 = vmatpush.msra.mxu0 %v1334
  %1376 = vmatpush.msra.mxu0 %v1333
  %1377 = vmatmul.f32.gmra.mxu0 %v1338
  %v1378 = vpop.f32.mrf.mxu0
  %v1379 = vadd.f32 0.0, %v1378
  %1380 = vmatmul.f32.gmra.mxu0 %v1341
  %v1381 = vpop.f32.mrf.mxu0
  %v1382 = vadd.f32 0.0, %v1381
  %1383 = vmatmul.f32.gmra.mxu0 %v1344
  %v1384 = vpop.f32.mrf.mxu0
  %v1385 = vadd.f32 0.0, %v1384
  %1386 = vmatmul.f32.gmra.mxu0 %v1347
  %v1387 = vpop.f32.mrf.mxu0
  %v1388 = vadd.f32 0.0, %v1387
  %1389 = vmatmul.f32.gmra.mxu0 %v1350
  %v1390 = vpop.f32.mrf.mxu0
  %v1391 = vadd.f32 0.0, %v1390
  %1392 = vmatmul.f32.gmra.mxu0 %v1353
  %v1393 = vpop.f32.mrf.mxu0
  %v1394 = vadd.f32 0.0, %v1393
  %1395 = vmatmul.f32.gmra.mxu0 %v1356
  %v1396 = vpop.f32.mrf.mxu0
  %v1397 = vadd.f32 0.0, %v1396
  %1398 = vmatmul.f32.gmra.mxu0 %v1359
  %v1399 = vpop.f32.mrf.mxu0
  %v1400 = vadd.f32 0.0, %v1399
  %1401 = vdwg.mxu0
  %v1403 = vsel %vm199, %v1313, 0
  %v1406 = vsel %vm199, %v1314, 0
  %v1409 = vsel %vm199, %v1315, 0
  %v1412 = vsel %vm199, %v1316, 0
  %v1415 = vsel %vm199, %v1317, 0
  %v1418 = vsel %vm199, %v1318, 0
  %v1421 = vsel %vm199, %v1319, 0
  %v1424 = vsel %vm199, %v1320, 0
  %1426 = vmatpush.msra.mxu0 0.0
  %1427 = vmatpush.msra.mxu0 0.0
  %1428 = vmatpush.msra.mxu0 0.0
  %1429 = vmatpush.msra.mxu0 0.0
  %1430 = vmatpush.msra.mxu0 0.0
  %1431 = vmatpush.msra.mxu0 0.0
  %1432 = vmatpush.msra.mxu0 0.0
  %1433 = vmatpush.msra.mxu0 0.0
  %1434 = vmatpush.msra.mxu0 0.0
  %1435 = vmatpush.msra.mxu0 0.0
  %1436 = vmatpush.msra.mxu0 0.0
  %1437 = vmatpush.msra.mxu0 0.0
  %1438 = vmatpush.msra.mxu0 %v1332
  %1439 = vmatpush.msra.mxu0 %v1331
  %1440 = vmatpush.msra.mxu0 %v1330
  %1441 = vmatpush.msra.mxu0 %v1329
  %1442 = vmatmul.f32.gmra.mxu0 %v1403
  %v1443 = vpop.f32.mrf.mxu0
  %v1444 = vadd.f32 %v1379, %v1443
  %1445 = vmatmul.f32.gmra.mxu0 %v1406
  %v1446 = vpop.f32.mrf.mxu0
  %v1447 = vadd.f32 %v1382, %v1446
  %1448 = vmatmul.f32.gmra.mxu0 %v1409
  %v1449 = vpop.f32.mrf.mxu0
  %v1450 = vadd.f32 %v1385, %v1449
  %1451 = vmatmul.f32.gmra.mxu0 %v1412
  %v1452 = vpop.f32.mrf.mxu0
  %v1453 = vadd.f32 %v1388, %v1452
  %1454 = vmatmul.f32.gmra.mxu0 %v1415
  %v1455 = vpop.f32.mrf.mxu0
  %v1456 = vadd.f32 %v1391, %v1455
  %1457 = vmatmul.f32.gmra.mxu0 %v1418
  %v1458 = vpop.f32.mrf.mxu0
  %v1459 = vadd.f32 %v1394, %v1458
  %1460 = vmatmul.f32.gmra.mxu0 %v1421
  %v1461 = vpop.f32.mrf.mxu0
  %v1462 = vadd.f32 %v1397, %v1461
  %1463 = vmatmul.f32.gmra.mxu0 %v1424
  %v1464 = vpop.f32.mrf.mxu0
  %v1465 = vadd.f32 %v1400, %v1464
  %1466 = vdwg.mxu0
  %v1467 = vld [vmem:[%s9] sm:$0x1]
  %v1469 = vperm.slane %v1467, 0
  %v1471 = vadd.f32 %v1444, %v1469
  %v1472 = vadd.f32 %v1447, %v1469
  %v1473 = vadd.f32 %v1450, %v1469
  %v1474 = vadd.f32 %v1453, %v1469
  %v1475 = vadd.f32 %v1456, %v1469
  %v1476 = vadd.f32 %v1459, %v1469
  %v1477 = vadd.f32 %v1462, %v1469
  %v1478 = vadd.f32 %v1465, %v1469
  %1479 = vst [vmem:[#allocation4] sm:$0xff] %v1471
  %1480 = vst [vmem:[#allocation4 + $0x8] sm:$0xff] %v1472
  %1481 = vst [vmem:[#allocation4 + $0x10] sm:$0xff] %v1473
  %1482 = vst [vmem:[#allocation4 + $0x18] sm:$0xff] %v1474
  %1483 = vst [vmem:[#allocation4 + $0x20] sm:$0xff] %v1475
  %1484 = vst [vmem:[#allocation4 + $0x28] sm:$0xff] %v1476
  %1485 = vst [vmem:[#allocation4 + $0x30] sm:$0xff] %v1477
  %1486 = vst [vmem:[#allocation4 + $0x38] sm:$0xff] %v1478
  %v1487 = vld [vmem:[%s10] sm:$0xff]
  %v1488 = vld [vmem:[%s10 + $0x8] sm:$0xff]
  %v1489 = vld [vmem:[%s10 + $0x10] sm:$0xff]
  %v1490 = vld [vmem:[%s10 + $0x18] sm:$0xff]
  %v1491 = vld [vmem:[%s10 + $0x20] sm:$0xff]
  %v1492 = vld [vmem:[%s10 + $0x28] sm:$0xff]
  %v1493 = vld [vmem:[%s10 + $0x30] sm:$0xff]
  %v1494 = vld [vmem:[%s10 + $0x38] sm:$0xff]
  %1495 = vmatpush.msra.mxu0 0.0
  %1496 = vmatpush.msra.mxu0 0.0
  %1497 = vmatpush.msra.mxu0 0.0
  %1498 = vmatpush.msra.mxu0 0.0
  %1499 = vmatpush.msra.mxu0 0.0
  %1500 = vmatpush.msra.mxu0 0.0
  %1501 = vmatpush.msra.mxu0 0.0
  %1502 = vmatpush.msra.mxu0 0.0
  %1503 = vmatpush.msra.mxu0 0.0
  %1504 = vmatpush.msra.mxu0 0.0
  %1505 = vmatpush.msra.mxu0 0.0
  %1506 = vmatpush.msra.mxu0 0.0
  %1507 = vmatpush.msra.mxu0 %v1494
  %1508 = vmatpush.msra.mxu0 %v1493
  %1509 = vmatpush.msra.mxu0 %v1492
  %1510 = vmatpush.msra.mxu0 %v1491
  %1511 = vmatmul.f32.gmra.mxu0 %v1338
  %v1512 = vpop.f32.mrf.mxu0
  %v1513 = vadd.f32 0.0, %v1512
  %1514 = vmatmul.f32.gmra.mxu0 %v1341
  %v1515 = vpop.f32.mrf.mxu0
  %v1516 = vadd.f32 0.0, %v1515
  %1517 = vmatmul.f32.gmra.mxu0 %v1344
  %v1518 = vpop.f32.mrf.mxu0
  %v1519 = vadd.f32 0.0, %v1518
  %1520 = vmatmul.f32.gmra.mxu0 %v1347
  %v1521 = vpop.f32.mrf.mxu0
  %v1522 = vadd.f32 0.0, %v1521
  %1523 = vmatmul.f32.gmra.mxu0 %v1350
  %v1524 = vpop.f32.mrf.mxu0
  %v1525 = vadd.f32 0.0, %v1524
  %1526 = vmatmul.f32.gmra.mxu0 %v1353
  %v1527 = vpop.f32.mrf.mxu0
  %v1528 = vadd.f32 0.0, %v1527
  %1529 = vmatmul.f32.gmra.mxu0 %v1356
  %v1530 = vpop.f32.mrf.mxu0
  %v1531 = vadd.f32 0.0, %v1530
  %1532 = vmatmul.f32.gmra.mxu0 %v1359
  %v1533 = vpop.f32.mrf.mxu0
  %v1534 = vadd.f32 0.0, %v1533
  %1535 = vdwg.mxu0
  %1536 = vmatpush.msra.mxu0 0.0
  %1537 = vmatpush.msra.mxu0 0.0
  %1538 = vmatpush.msra.mxu0 0.0
  %1539 = vmatpush.msra.mxu0 0.0
  %1540 = vmatpush.msra.mxu0 0.0
  %1541 = vmatpush.msra.mxu0 0.0
  %1542 = vmatpush.msra.mxu0 0.0
  %1543 = vmatpush.msra.mxu0 0.0
  %1544 = vmatpush.msra.mxu0 0.0
  %1545 = vmatpush.msra.mxu0 0.0
  %1546 = vmatpush.msra.mxu0 0.0
  %1547 = vmatpush.msra.mxu0 0.0
  %1548 = vmatpush.msra.mxu0 %v1490
  %1549 = vmatpush.msra.mxu0 %v1489
  %1550 = vmatpush.msra.mxu0 %v1488
  %1551 = vmatpush.msra.mxu0 %v1487
  %1552 = vmatmul.f32.gmra.mxu0 %v1403
  %v1553 = vpop.f32.mrf.mxu0
  %v1554 = vadd.f32 %v1513, %v1553
  %1555 = vmatmul.f32.gmra.mxu0 %v1406
  %v1556 = vpop.f32.mrf.mxu0
  %v1557 = vadd.f32 %v1516, %v1556
  %1558 = vmatmul.f32.gmra.mxu0 %v1409
  %v1559 = vpop.f32.mrf.mxu0
  %v1560 = vadd.f32 %v1519, %v1559
  %1561 = vmatmul.f32.gmra.mxu0 %v1412
  %v1562 = vpop.f32.mrf.mxu0
  %v1563 = vadd.f32 %v1522, %v1562
  %1564 = vmatmul.f32.gmra.mxu0 %v1415
  %v1565 = vpop.f32.mrf.mxu0
  %v1566 = vadd.f32 %v1525, %v1565
  %1567 = vmatmul.f32.gmra.mxu0 %v1418
  %v1568 = vpop.f32.mrf.mxu0
  %v1569 = vadd.f32 %v1528, %v1568
  %1570 = vmatmul.f32.gmra.mxu0 %v1421
  %v1571 = vpop.f32.mrf.mxu0
  %v1572 = vadd.f32 %v1531, %v1571
  %1573 = vmatmul.f32.gmra.mxu0 %v1424
  %v1574 = vpop.f32.mrf.mxu0
  %v1575 = vadd.f32 %v1534, %v1574
  %1576 = vdwg.mxu0
  %v1577 = vld [vmem:[%s12] sm:$0x1]
  %v1579 = vperm.slane %v1577, 0
  %v1581 = vadd.f32 %v1554, %v1579
  %v1582 = vadd.f32 %v1557, %v1579
  %v1583 = vadd.f32 %v1560, %v1579
  %v1584 = vadd.f32 %v1563, %v1579
  %v1585 = vadd.f32 %v1566, %v1579
  %v1586 = vadd.f32 %v1569, %v1579
  %v1587 = vadd.f32 %v1572, %v1579
  %v1588 = vadd.f32 %v1575, %v1579
  %1589 = vst [vmem:[#allocation5] sm:$0xff] %v1581
  %1590 = vst [vmem:[#allocation5 + $0x8] sm:$0xff] %v1582
  %1591 = vst [vmem:[#allocation5 + $0x10] sm:$0xff] %v1583
  %1592 = vst [vmem:[#allocation5 + $0x18] sm:$0xff] %v1584
  %1593 = vst [vmem:[#allocation5 + $0x20] sm:$0xff] %v1585
  %1594 = vst [vmem:[#allocation5 + $0x28] sm:$0xff] %v1586
  %1595 = vst [vmem:[#allocation5 + $0x30] sm:$0xff] %v1587
  %1596 = vst [vmem:[#allocation5 + $0x38] sm:$0xff] %v1588
  %v1597 = vld [vmem:[#allocation4] sm:$0xff]
  %v1598 = vld [vmem:[#allocation5 + $0x38] sm:$0xff]
  %v1599 = vld [vmem:[%s8] sm:$0xff]
  %v1600 = vld [vmem:[%s8 + $0x8] sm:$0xff]
  %v1601 = vld [vmem:[%s8 + $0x10] sm:$0xff]
  %v1602 = vld [vmem:[%s8 + $0x18] sm:$0xff]
  %1603 = vmatpush.msra.mxu0 0.0
  %1604 = vmatpush.msra.mxu0 0.0
  %1605 = vmatpush.msra.mxu0 0.0
  %1606 = vmatpush.msra.mxu0 0.0
  %1607 = vmatpush.msra.mxu0 0.0
  %1608 = vmatpush.msra.mxu0 0.0
  %1609 = vmatpush.msra.mxu0 0.0
  %1610 = vmatpush.msra.mxu0 0.0
  %1611 = vmatpush.msra.mxu0 0.0
  %1612 = vmatpush.msra.mxu0 0.0
  %1613 = vmatpush.msra.mxu0 0.0
  %1614 = vmatpush.msra.mxu0 0.0
  %1615 = vmatpush.msra.mxu0 %v1602
  %1616 = vmatpush.msra.mxu0 %v1601
  %1617 = vmatpush.msra.mxu0 %v1600
  %1618 = vmatpush.msra.mxu0 %v1599
  %1619 = vmatmul.f32.gmra.mxu0 %v201
  %v1620 = vpop.f32.mrf.mxu0
  %v1621 = vadd.f32 0.0, %v1620
  %1622 = vdwg.mxu0
  %v1623 = vadd.f32 %v1597, %v1621
  %v1624 = vld [vmem:[%s11] sm:$0xff]
  %v1625 = vld [vmem:[%s11 + $0x8] sm:$0xff]
  %v1626 = vld [vmem:[%s11 + $0x10] sm:$0xff]
  %v1627 = vld [vmem:[%s11 + $0x18] sm:$0xff]
  %1628 = vmatpush.msra.mxu0 0.0
  %1629 = vmatpush.msra.mxu0 0.0
  %1630 = vmatpush.msra.mxu0 0.0
  %1631 = vmatpush.msra.mxu0 0.0
  %1632 = vmatpush.msra.mxu0 0.0
  %1633 = vmatpush.msra.mxu0 0.0
  %1634 = vmatpush.msra.mxu0 0.0
  %1635 = vmatpush.msra.mxu0 0.0
  %1636 = vmatpush.msra.mxu0 0.0
  %1637 = vmatpush.msra.mxu0 0.0
  %1638 = vmatpush.msra.mxu0 0.0
  %1639 = vmatpush.msra.mxu0 0.0
  %1640 = vmatpush.msra.mxu0 %v1627
  %1641 = vmatpush.msra.mxu0 %v1626
  %1642 = vmatpush.msra.mxu0 %v1625
  %1643 = vmatpush.msra.mxu0 %v1624
  %1644 = vmatmul.f32.gmra.mxu0 %v201
  %v1645 = vpop.f32.mrf.mxu0
  %v1646 = vadd.f32 0.0, %v1645
  %1647 = vdwg.mxu0
  %v1648 = vadd.f32 %v1598, %v1646
  %v1649 = vxor.u32 %v1623, 2147483648
  %v1650 = vmul.f32 %v1649, 1.442695
  %v1651 = vpow.pop %v1650
  %v1652 = vadd.f32 %v1651, 1.0
  %v1653 = vrcp.pop %v1652
  %v1654 = vmul.f32 %v1652, %v1653
  %v1655 = vsub.f32 1.0, %v1654
  %v1656 = vmul.f32 %v1653, %v1655
  %v1657 = vadd.f32 %v1653, %v1656
  %vm1658 = vweird.f32 %v1652
  %vm1659 = vweird.f32 %v1653
  %vm1660 = vmor %vm1658, %vm1659
  %v1661 = vsel %vm1660, %v1653, %v1657
  %v1662 = vand.u32 2147483647, %v1652
  %vm1663 = vcmp.eq.f32.partialorder %v1662, 8.507059e+37
  %v1664 = vand.u32 %v1652, 2147483648
  %v1665 = vor.u32 1.1754944e-38, %v1664
  %v1666 = vsel %vm1663, %v1665, %v1661
  %v1667 = vmul.f32 1.0, %v1666
  %v1668 = vtanh.pop %v1623
  %v1669 = vmul.f32 %v1667, 0.0
  %1671 = vrot.lane.b32.xlu0 %v1668, 64
  %v1672 = vpop.permute.xlu0 %1671
  %v1674 = vmul.f32 %v1667, %v1672
  %1676 = vrot.lane.b32.xlu0 %v1674, 32
  %v1677 = vpop.permute.xlu0 %1676
  %v1679 = vadd.f32 %v1669, %v1677
  %v1680 = vtanh.pop %v1679
  %1682 = vrot.lane.b32.xlu0 %v1680, 64
  %v1683 = vpop.permute.xlu0 %1682
  %v1685 = vmul.f32 %v1667, %v1683
  %v1686 = vxor.u32 %v1648, 2147483648
  %v1687 = vmul.f32 %v1686, 1.442695
  %v1688 = vpow.pop %v1687
  %v1689 = vadd.f32 %v1688, 1.0
  %v1690 = vrcp.pop %v1689
  %v1691 = vmul.f32 %v1689, %v1690
  %v1692 = vsub.f32 1.0, %v1691
  %v1693 = vmul.f32 %v1690, %v1692
  %v1694 = vadd.f32 %v1690, %v1693
  %vm1695 = vweird.f32 %v1689
  %vm1696 = vweird.f32 %v1690
  %vm1697 = vmor %vm1695, %vm1696
  %v1698 = vsel %vm1697, %v1690, %v1694
  %v1699 = vand.u32 2147483647, %v1689
  %vm1700 = vcmp.eq.f32.partialorder %v1699, 8.507059e+37
  %v1701 = vand.u32 %v1689, 2147483648
  %v1702 = vor.u32 1.1754944e-38, %v1701
  %v1703 = vsel %vm1700, %v1702, %v1698
  %v1704 = vmul.f32 1.0, %v1703
  %v1705 = vtanh.pop %v1648
  %v1706 = vmul.f32 %v1704, 0.0
  %1708 = vrot.lane.b32.xlu0 %v1705, 64
  %v1709 = vpop.permute.xlu0 %1708
  %v1711 = vmul.f32 %v1704, %v1709
  %1713 = vrot.lane.b32.xlu0 %v1711, 32
  %v1714 = vpop.permute.xlu0 %1713
  %v1716 = vadd.f32 %v1706, %v1714
  %v1717 = vtanh.pop %v1716
  %1719 = vrot.lane.b32.xlu0 %v1717, 64
  %v1720 = vpop.permute.xlu0 %1719
  %v1722 = vmul.f32 %v1704, %v1720
  %v1723 = vld [vmem:[#allocation4 + $0x8] sm:$0xff]
  %v1724 = vld [vmem:[#allocation5 + $0x30] sm:$0xff]
  %1726 = vrot.lane.b32.xlu0 %v1685, 32
  %v1727 = vpop.permute.xlu0 %1726
  %v1728 = vsel %vm199, %v1727, 0
  %1730 = vmatpush.msra.mxu0 0.0
  %1731 = vmatpush.msra.mxu0 0.0
  %1732 = vmatpush.msra.mxu0 0.0
  %1733 = vmatpush.msra.mxu0 0.0
  %1734 = vmatpush.msra.mxu0 0.0
  %1735 = vmatpush.msra.mxu0 0.0
  %1736 = vmatpush.msra.mxu0 0.0
  %1737 = vmatpush.msra.mxu0 0.0
  %1738 = vmatpush.msra.mxu0 0.0
  %1739 = vmatpush.msra.mxu0 0.0
  %1740 = vmatpush.msra.mxu0 0.0
  %1741 = vmatpush.msra.mxu0 0.0
  %1742 = vmatpush.msra.mxu0 %v1602
  %1743 = vmatpush.msra.mxu0 %v1601
  %1744 = vmatpush.msra.mxu0 %v1600
  %1745 = vmatpush.msra.mxu0 %v1599
  %1746 = vmatmul.f32.gmra.mxu0 %v1728
  %v1747 = vpop.f32.mrf.mxu0
  %v1748 = vadd.f32 0.0, %v1747
  %1749 = vdwg.mxu0
  %v1750 = vadd.f32 %v1723, %v1748
  %1752 = vrot.lane.b32.xlu0 %v1722, 32
  %v1753 = vpop.permute.xlu0 %1752
  %v1754 = vsel %vm199, %v1753, 0
  %1756 = vmatpush.msra.mxu0 0.0
  %1757 = vmatpush.msra.mxu0 0.0
  %1758 = vmatpush.msra.mxu0 0.0
  %1759 = vmatpush.msra.mxu0 0.0
  %1760 = vmatpush.msra.mxu0 0.0
  %1761 = vmatpush.msra.mxu0 0.0
  %1762 = vmatpush.msra.mxu0 0.0
  %1763 = vmatpush.msra.mxu0 0.0
  %1764 = vmatpush.msra.mxu0 0.0
  %1765 = vmatpush.msra.mxu0 0.0
  %1766 = vmatpush.msra.mxu0 0.0
  %1767 = vmatpush.msra.mxu0 0.0
  %1768 = vmatpush.msra.mxu0 %v1627
  %1769 = vmatpush.msra.mxu0 %v1626
  %1770 = vmatpush.msra.mxu0 %v1625
  %1771 = vmatpush.msra.mxu0 %v1624
  %1772 = vmatmul.f32.gmra.mxu0 %v1754
  %v1773 = vpop.f32.mrf.mxu0
  %v1774 = vadd.f32 0.0, %v1773
  %1775 = vdwg.mxu0
  %v1776 = vadd.f32 %v1724, %v1774
  %v1777 = vxor.u32 %v1750, 2147483648
  %v1778 = vmul.f32 %v1777, 1.442695
  %v1779 = vpow.pop %v1778
  %v1780 = vadd.f32 %v1779, 1.0
  %v1781 = vrcp.pop %v1780
  %v1782 = vmul.f32 %v1780, %v1781
  %v1783 = vsub.f32 1.0, %v1782
  %v1784 = vmul.f32 %v1781, %v1783
  %v1785 = vadd.f32 %v1781, %v1784
  %vm1786 = vweird.f32 %v1780
  %vm1787 = vweird.f32 %v1781
  %vm1788 = vmor %vm1786, %vm1787
  %v1789 = vsel %vm1788, %v1781, %v1785
  %v1790 = vand.u32 2147483647, %v1780
  %vm1791 = vcmp.eq.f32.partialorder %v1790, 8.507059e+37
  %v1792 = vand.u32 %v1780, 2147483648
  %v1793 = vor.u32 1.1754944e-38, %v1792
  %v1794 = vsel %vm1791, %v1793, %v1789
  %v1795 = vmul.f32 1.0, %v1794
  %v1796 = vtanh.pop %v1750
  %v1797 = vmul.f32 %v1795, %v1679
  %1799 = vrot.lane.b32.xlu0 %v1796, 64
  %v1800 = vpop.permute.xlu0 %1799
  %v1802 = vmul.f32 %v1795, %v1800
  %1804 = vrot.lane.b32.xlu0 %v1802, 32
  %v1805 = vpop.permute.xlu0 %1804
  %v1807 = vadd.f32 %v1797, %v1805
  %v1808 = vtanh.pop %v1807
  %1810 = vrot.lane.b32.xlu0 %v1808, 64
  %v1811 = vpop.permute.xlu0 %1810
  %v1813 = vmul.f32 %v1795, %v1811
  %v1814 = vxor.u32 %v1776, 2147483648
  %v1815 = vmul.f32 %v1814, 1.442695
  %v1816 = vpow.pop %v1815
  %v1817 = vadd.f32 %v1816, 1.0
  %v1818 = vrcp.pop %v1817
  %v1819 = vmul.f32 %v1817, %v1818
  %v1820 = vsub.f32 1.0, %v1819
  %v1821 = vmul.f32 %v1818, %v1820
  %v1822 = vadd.f32 %v1818, %v1821
  %vm1823 = vweird.f32 %v1817
  %vm1824 = vweird.f32 %v1818
  %vm1825 = vmor %vm1823, %vm1824
  %v1826 = vsel %vm1825, %v1818, %v1822
  %v1827 = vand.u32 2147483647, %v1817
  %vm1828 = vcmp.eq.f32.partialorder %v1827, 8.507059e+37
  %v1829 = vand.u32 %v1817, 2147483648
  %v1830 = vor.u32 1.1754944e-38, %v1829
  %v1831 = vsel %vm1828, %v1830, %v1826
  %v1832 = vmul.f32 1.0, %v1831
  %v1833 = vtanh.pop %v1776
  %v1834 = vmul.f32 %v1832, %v1716
  %1836 = vrot.lane.b32.xlu0 %v1833, 64
  %v1837 = vpop.permute.xlu0 %1836
  %v1839 = vmul.f32 %v1832, %v1837
  %1841 = vrot.lane.b32.xlu0 %v1839, 32
  %v1842 = vpop.permute.xlu0 %1841
  %v1844 = vadd.f32 %v1834, %v1842
  %v1845 = vtanh.pop %v1844
  %1847 = vrot.lane.b32.xlu0 %v1845, 64
  %v1848 = vpop.permute.xlu0 %1847
  %v1850 = vmul.f32 %v1832, %v1848
  %v1851 = vld [vmem:[#allocation4 + $0x10] sm:$0xff]
  %v1852 = vld [vmem:[#allocation5 + $0x28] sm:$0xff]
  %1854 = vrot.lane.b32.xlu0 %v1813, 32
  %v1855 = vpop.permute.xlu0 %1854
  %v1856 = vsel %vm199, %v1855, 0
  %1858 = vmatpush.msra.mxu0 0.0
  %1859 = vmatpush.msra.mxu0 0.0
  %1860 = vmatpush.msra.mxu0 0.0
  %1861 = vmatpush.msra.mxu0 0.0
  %1862 = vmatpush.msra.mxu0 0.0
  %1863 = vmatpush.msra.mxu0 0.0
  %1864 = vmatpush.msra.mxu0 0.0
  %1865 = vmatpush.msra.mxu0 0.0
  %1866 = vmatpush.msra.mxu0 0.0
  %1867 = vmatpush.msra.mxu0 0.0
  %1868 = vmatpush.msra.mxu0 0.0
  %1869 = vmatpush.msra.mxu0 0.0
  %1870 = vmatpush.msra.mxu0 %v1602
  %1871 = vmatpush.msra.mxu0 %v1601
  %1872 = vmatpush.msra.mxu0 %v1600
  %1873 = vmatpush.msra.mxu0 %v1599
  %1874 = vmatmul.f32.gmra.mxu0 %v1856
  %v1875 = vpop.f32.mrf.mxu0
  %v1876 = vadd.f32 0.0, %v1875
  %1877 = vdwg.mxu0
  %v1878 = vadd.f32 %v1851, %v1876
  %1880 = vrot.lane.b32.xlu0 %v1850, 32
  %v1881 = vpop.permute.xlu0 %1880
  %v1882 = vsel %vm199, %v1881, 0
  %1884 = vmatpush.msra.mxu0 0.0
  %1885 = vmatpush.msra.mxu0 0.0
  %1886 = vmatpush.msra.mxu0 0.0
  %1887 = vmatpush.msra.mxu0 0.0
  %1888 = vmatpush.msra.mxu0 0.0
  %1889 = vmatpush.msra.mxu0 0.0
  %1890 = vmatpush.msra.mxu0 0.0
  %1891 = vmatpush.msra.mxu0 0.0
  %1892 = vmatpush.msra.mxu0 0.0
  %1893 = vmatpush.msra.mxu0 0.0
  %1894 = vmatpush.msra.mxu0 0.0
  %1895 = vmatpush.msra.mxu0 0.0
  %1896 = vmatpush.msra.mxu0 %v1627
  %1897 = vmatpush.msra.mxu0 %v1626
  %1898 = vmatpush.msra.mxu0 %v1625
  %1899 = vmatpush.msra.mxu0 %v1624
  %1900 = vmatmul.f32.gmra.mxu0 %v1882
  %v1901 = vpop.f32.mrf.mxu0
  %v1902 = vadd.f32 0.0, %v1901
  %1903 = vdwg.mxu0
  %v1904 = vadd.f32 %v1852, %v1902
  %v1905 = vxor.u32 %v1878, 2147483648
  %v1906 = vmul.f32 %v1905, 1.442695
  %v1907 = vpow.pop %v1906
  %v1908 = vadd.f32 %v1907, 1.0
  %v1909 = vrcp.pop %v1908
  %v1910 = vmul.f32 %v1908, %v1909
  %v1911 = vsub.f32 1.0, %v1910
  %v1912 = vmul.f32 %v1909, %v1911
  %v1913 = vadd.f32 %v1909, %v1912
  %vm1914 = vweird.f32 %v1908
  %vm1915 = vweird.f32 %v1909
  %vm1916 = vmor %vm1914, %vm1915
  %v1917 = vsel %vm1916, %v1909, %v1913
  %v1918 = vand.u32 2147483647, %v1908
  %vm1919 = vcmp.eq.f32.partialorder %v1918, 8.507059e+37
  %v1920 = vand.u32 %v1908, 2147483648
  %v1921 = vor.u32 1.1754944e-38, %v1920
  %v1922 = vsel %vm1919, %v1921, %v1917
  %v1923 = vmul.f32 1.0, %v1922
  %v1924 = vtanh.pop %v1878
  %v1925 = vmul.f32 %v1923, %v1807
  %1927 = vrot.lane.b32.xlu0 %v1924, 64
  %v1928 = vpop.permute.xlu0 %1927
  %v1930 = vmul.f32 %v1923, %v1928
  %1932 = vrot.lane.b32.xlu0 %v1930, 32
  %v1933 = vpop.permute.xlu0 %1932
  %v1935 = vadd.f32 %v1925, %v1933
  %v1936 = vtanh.pop %v1935
  %1938 = vrot.lane.b32.xlu0 %v1936, 64
  %v1939 = vpop.permute.xlu0 %1938
  %v1941 = vmul.f32 %v1923, %v1939
  %v1942 = vxor.u32 %v1904, 2147483648
  %v1943 = vmul.f32 %v1942, 1.442695
  %v1944 = vpow.pop %v1943
  %v1945 = vadd.f32 %v1944, 1.0
  %v1946 = vrcp.pop %v1945
  %v1947 = vmul.f32 %v1945, %v1946
  %v1948 = vsub.f32 1.0, %v1947
  %v1949 = vmul.f32 %v1946, %v1948
  %v1950 = vadd.f32 %v1946, %v1949
  %vm1951 = vweird.f32 %v1945
  %vm1952 = vweird.f32 %v1946
  %vm1953 = vmor %vm1951, %vm1952
  %v1954 = vsel %vm1953, %v1946, %v1950
  %v1955 = vand.u32 2147483647, %v1945
  %vm1956 = vcmp.eq.f32.partialorder %v1955, 8.507059e+37
  %v1957 = vand.u32 %v1945, 2147483648
  %v1958 = vor.u32 1.1754944e-38, %v1957
  %v1959 = vsel %vm1956, %v1958, %v1954
  %v1960 = vmul.f32 1.0, %v1959
  %v1961 = vtanh.pop %v1904
  %v1962 = vmul.f32 %v1960, %v1844
  %1964 = vrot.lane.b32.xlu0 %v1961, 64
  %v1965 = vpop.permute.xlu0 %1964
  %v1967 = vmul.f32 %v1960, %v1965
  %1969 = vrot.lane.b32.xlu0 %v1967, 32
  %v1970 = vpop.permute.xlu0 %1969
  %v1972 = vadd.f32 %v1962, %v1970
  %v1973 = vtanh.pop %v1972
  %1975 = vrot.lane.b32.xlu0 %v1973, 64
  %v1976 = vpop.permute.xlu0 %1975
  %v1978 = vmul.f32 %v1960, %v1976
  %v1979 = vld [vmem:[#allocation4 + $0x18] sm:$0xff]
  %v1980 = vld [vmem:[#allocation5 + $0x20] sm:$0xff]
  %1982 = vrot.lane.b32.xlu0 %v1941, 32
  %v1983 = vpop.permute.xlu0 %1982
  %v1984 = vsel %vm199, %v1983, 0
  %1986 = vmatpush.msra.mxu0 0.0
  %1987 = vmatpush.msra.mxu0 0.0
  %1988 = vmatpush.msra.mxu0 0.0
  %1989 = vmatpush.msra.mxu0 0.0
  %1990 = vmatpush.msra.mxu0 0.0
  %1991 = vmatpush.msra.mxu0 0.0
  %1992 = vmatpush.msra.mxu0 0.0
  %1993 = vmatpush.msra.mxu0 0.0
  %1994 = vmatpush.msra.mxu0 0.0
  %1995 = vmatpush.msra.mxu0 0.0
  %1996 = vmatpush.msra.mxu0 0.0
  %1997 = vmatpush.msra.mxu0 0.0
  %1998 = vmatpush.msra.mxu0 %v1602
  %1999 = vmatpush.msra.mxu0 %v1601
  %2000 = vmatpush.msra.mxu0 %v1600
  %2001 = vmatpush.msra.mxu0 %v1599
  %2002 = vmatmul.f32.gmra.mxu0 %v1984
  %v2003 = vpop.f32.mrf.mxu0
  %v2004 = vadd.f32 0.0, %v2003
  %2005 = vdwg.mxu0
  %v2006 = vadd.f32 %v1979, %v2004
  %2008 = vrot.lane.b32.xlu0 %v1978, 32
  %v2009 = vpop.permute.xlu0 %2008
  %v2010 = vsel %vm199, %v2009, 0
  %2012 = vmatpush.msra.mxu0 0.0
  %2013 = vmatpush.msra.mxu0 0.0
  %2014 = vmatpush.msra.mxu0 0.0
  %2015 = vmatpush.msra.mxu0 0.0
  %2016 = vmatpush.msra.mxu0 0.0
  %2017 = vmatpush.msra.mxu0 0.0
  %2018 = vmatpush.msra.mxu0 0.0
  %2019 = vmatpush.msra.mxu0 0.0
  %2020 = vmatpush.msra.mxu0 0.0
  %2021 = vmatpush.msra.mxu0 0.0
  %2022 = vmatpush.msra.mxu0 0.0
  %2023 = vmatpush.msra.mxu0 0.0
  %2024 = vmatpush.msra.mxu0 %v1627
  %2025 = vmatpush.msra.mxu0 %v1626
  %2026 = vmatpush.msra.mxu0 %v1625
  %2027 = vmatpush.msra.mxu0 %v1624
  %2028 = vmatmul.f32.gmra.mxu0 %v2010
  %v2029 = vpop.f32.mrf.mxu0
  %v2030 = vadd.f32 0.0, %v2029
  %2031 = vdwg.mxu0
  %v2032 = vadd.f32 %v1980, %v2030
  %v2033 = vxor.u32 %v2006, 2147483648
  %v2034 = vmul.f32 %v2033, 1.442695
  %v2035 = vpow.pop %v2034
  %v2036 = vadd.f32 %v2035, 1.0
  %v2037 = vrcp.pop %v2036
  %v2038 = vmul.f32 %v2036, %v2037
  %v2039 = vsub.f32 1.0, %v2038
  %v2040 = vmul.f32 %v2037, %v2039
  %v2041 = vadd.f32 %v2037, %v2040
  %vm2042 = vweird.f32 %v2036
  %vm2043 = vweird.f32 %v2037
  %vm2044 = vmor %vm2042, %vm2043
  %v2045 = vsel %vm2044, %v2037, %v2041
  %v2046 = vand.u32 2147483647, %v2036
  %vm2047 = vcmp.eq.f32.partialorder %v2046, 8.507059e+37
  %v2048 = vand.u32 %v2036, 2147483648
  %v2049 = vor.u32 1.1754944e-38, %v2048
  %v2050 = vsel %vm2047, %v2049, %v2045
  %v2051 = vmul.f32 1.0, %v2050
  %v2052 = vtanh.pop %v2006
  %v2053 = vmul.f32 %v2051, %v1935
  %2055 = vrot.lane.b32.xlu0 %v2052, 64
  %v2056 = vpop.permute.xlu0 %2055
  %v2058 = vmul.f32 %v2051, %v2056
  %2060 = vrot.lane.b32.xlu0 %v2058, 32
  %v2061 = vpop.permute.xlu0 %2060
  %v2063 = vadd.f32 %v2053, %v2061
  %v2064 = vtanh.pop %v2063
  %2066 = vrot.lane.b32.xlu0 %v2064, 64
  %v2067 = vpop.permute.xlu0 %2066
  %v2069 = vmul.f32 %v2051, %v2067
  %v2070 = vxor.u32 %v2032, 2147483648
  %v2071 = vmul.f32 %v2070, 1.442695
  %v2072 = vpow.pop %v2071
  %v2073 = vadd.f32 %v2072, 1.0
  %v2074 = vrcp.pop %v2073
  %v2075 = vmul.f32 %v2073, %v2074
  %v2076 = vsub.f32 1.0, %v2075
  %v2077 = vmul.f32 %v2074, %v2076
  %v2078 = vadd.f32 %v2074, %v2077
  %vm2079 = vweird.f32 %v2073
  %vm2080 = vweird.f32 %v2074
  %vm2081 = vmor %vm2079, %vm2080
  %v2082 = vsel %vm2081, %v2074, %v2078
  %v2083 = vand.u32 2147483647, %v2073
  %vm2084 = vcmp.eq.f32.partialorder %v2083, 8.507059e+37
  %v2085 = vand.u32 %v2073, 2147483648
  %v2086 = vor.u32 1.1754944e-38, %v2085
  %v2087 = vsel %vm2084, %v2086, %v2082
  %v2088 = vmul.f32 1.0, %v2087
  %v2089 = vtanh.pop %v2032
  %v2090 = vmul.f32 %v2088, %v1972
  %2092 = vrot.lane.b32.xlu0 %v2089, 64
  %v2093 = vpop.permute.xlu0 %2092
  %v2095 = vmul.f32 %v2088, %v2093
  %2097 = vrot.lane.b32.xlu0 %v2095, 32
  %v2098 = vpop.permute.xlu0 %2097
  %v2100 = vadd.f32 %v2090, %v2098
  %v2101 = vtanh.pop %v2100
  %2103 = vrot.lane.b32.xlu0 %v2101, 64
  %v2104 = vpop.permute.xlu0 %2103
  %v2106 = vmul.f32 %v2088, %v2104
  %v2107 = vld [vmem:[#allocation4 + $0x20] sm:$0xff]
  %v2108 = vld [vmem:[#allocation5 + $0x18] sm:$0xff]
  %2110 = vrot.lane.b32.xlu0 %v2069, 32
  %v2111 = vpop.permute.xlu0 %2110
  %v2112 = vsel %vm199, %v2111, 0
  %2114 = vmatpush.msra.mxu0 0.0
  %2115 = vmatpush.msra.mxu0 0.0
  %2116 = vmatpush.msra.mxu0 0.0
  %2117 = vmatpush.msra.mxu0 0.0
  %2118 = vmatpush.msra.mxu0 0.0
  %2119 = vmatpush.msra.mxu0 0.0
  %2120 = vmatpush.msra.mxu0 0.0
  %2121 = vmatpush.msra.mxu0 0.0
  %2122 = vmatpush.msra.mxu0 0.0
  %2123 = vmatpush.msra.mxu0 0.0
  %2124 = vmatpush.msra.mxu0 0.0
  %2125 = vmatpush.msra.mxu0 0.0
  %2126 = vmatpush.msra.mxu0 %v1602
  %2127 = vmatpush.msra.mxu0 %v1601
  %2128 = vmatpush.msra.mxu0 %v1600
  %2129 = vmatpush.msra.mxu0 %v1599
  %2130 = vmatmul.f32.gmra.mxu0 %v2112
  %v2131 = vpop.f32.mrf.mxu0
  %v2132 = vadd.f32 0.0, %v2131
  %2133 = vdwg.mxu0
  %v2134 = vadd.f32 %v2107, %v2132
  %2136 = vrot.lane.b32.xlu0 %v2106, 32
  %v2137 = vpop.permute.xlu0 %2136
  %v2138 = vsel %vm199, %v2137, 0
  %2140 = vmatpush.msra.mxu0 0.0
  %2141 = vmatpush.msra.mxu0 0.0
  %2142 = vmatpush.msra.mxu0 0.0
  %2143 = vmatpush.msra.mxu0 0.0
  %2144 = vmatpush.msra.mxu0 0.0
  %2145 = vmatpush.msra.mxu0 0.0
  %2146 = vmatpush.msra.mxu0 0.0
  %2147 = vmatpush.msra.mxu0 0.0
  %2148 = vmatpush.msra.mxu0 0.0
  %2149 = vmatpush.msra.mxu0 0.0
  %2150 = vmatpush.msra.mxu0 0.0
  %2151 = vmatpush.msra.mxu0 0.0
  %2152 = vmatpush.msra.mxu0 %v1627
  %2153 = vmatpush.msra.mxu0 %v1626
  %2154 = vmatpush.msra.mxu0 %v1625
  %2155 = vmatpush.msra.mxu0 %v1624
  %2156 = vmatmul.f32.gmra.mxu0 %v2138
  %v2157 = vpop.f32.mrf.mxu0
  %v2158 = vadd.f32 0.0, %v2157
  %2159 = vdwg.mxu0
  %v2160 = vadd.f32 %v2108, %v2158
  %v2161 = vxor.u32 %v2134, 2147483648
  %v2162 = vmul.f32 %v2161, 1.442695
  %v2163 = vpow.pop %v2162
  %v2164 = vadd.f32 %v2163, 1.0
  %v2165 = vrcp.pop %v2164
  %v2166 = vmul.f32 %v2164, %v2165
  %v2167 = vsub.f32 1.0, %v2166
  %v2168 = vmul.f32 %v2165, %v2167
  %v2169 = vadd.f32 %v2165, %v2168
  %vm2170 = vweird.f32 %v2164
  %vm2171 = vweird.f32 %v2165
  %vm2172 = vmor %vm2170, %vm2171
  %v2173 = vsel %vm2172, %v2165, %v2169
  %v2174 = vand.u32 2147483647, %v2164
  %vm2175 = vcmp.eq.f32.partialorder %v2174, 8.507059e+37
  %v2176 = vand.u32 %v2164, 2147483648
  %v2177 = vor.u32 1.1754944e-38, %v2176
  %v2178 = vsel %vm2175, %v2177, %v2173
  %v2179 = vmul.f32 1.0, %v2178
  %v2180 = vtanh.pop %v2134
  %v2181 = vmul.f32 %v2179, %v2063
  %2183 = vrot.lane.b32.xlu0 %v2180, 64
  %v2184 = vpop.permute.xlu0 %2183
  %v2186 = vmul.f32 %v2179, %v2184
  %2188 = vrot.lane.b32.xlu0 %v2186, 32
  %v2189 = vpop.permute.xlu0 %2188
  %v2191 = vadd.f32 %v2181, %v2189
  %v2192 = vtanh.pop %v2191
  %2194 = vrot.lane.b32.xlu0 %v2192, 64
  %v2195 = vpop.permute.xlu0 %2194
  %v2197 = vmul.f32 %v2179, %v2195
  %v2198 = vxor.u32 %v2160, 2147483648
  %v2199 = vmul.f32 %v2198, 1.442695
  %v2200 = vpow.pop %v2199
  %v2201 = vadd.f32 %v2200, 1.0
  %v2202 = vrcp.pop %v2201
  %v2203 = vmul.f32 %v2201, %v2202
  %v2204 = vsub.f32 1.0, %v2203
  %v2205 = vmul.f32 %v2202, %v2204
  %v2206 = vadd.f32 %v2202, %v2205
  %vm2207 = vweird.f32 %v2201
  %vm2208 = vweird.f32 %v2202
  %vm2209 = vmor %vm2207, %vm2208
  %v2210 = vsel %vm2209, %v2202, %v2206
  %v2211 = vand.u32 2147483647, %v2201
  %vm2212 = vcmp.eq.f32.partialorder %v2211, 8.507059e+37
  %v2213 = vand.u32 %v2201, 2147483648
  %v2214 = vor.u32 1.1754944e-38, %v2213
  %v2215 = vsel %vm2212, %v2214, %v2210
  %v2216 = vmul.f32 1.0, %v2215
  %v2217 = vtanh.pop %v2160
  %v2218 = vmul.f32 %v2216, %v2100
  %2220 = vrot.lane.b32.xlu0 %v2217, 64
  %v2221 = vpop.permute.xlu0 %2220
  %v2223 = vmul.f32 %v2216, %v2221
  %2225 = vrot.lane.b32.xlu0 %v2223, 32
  %v2226 = vpop.permute.xlu0 %2225
  %v2228 = vadd.f32 %v2218, %v2226
  %v2229 = vtanh.pop %v2228
  %2231 = vrot.lane.b32.xlu0 %v2229, 64
  %v2232 = vpop.permute.xlu0 %2231
  %v2234 = vmul.f32 %v2216, %v2232
  %v2235 = vld [vmem:[#allocation4 + $0x28] sm:$0xff]
  %v2236 = vld [vmem:[#allocation5 + $0x10] sm:$0xff]
  %2238 = vrot.lane.b32.xlu0 %v2197, 32
  %v2239 = vpop.permute.xlu0 %2238
  %v2240 = vsel %vm199, %v2239, 0
  %2242 = vmatpush.msra.mxu0 0.0
  %2243 = vmatpush.msra.mxu0 0.0
  %2244 = vmatpush.msra.mxu0 0.0
  %2245 = vmatpush.msra.mxu0 0.0
  %2246 = vmatpush.msra.mxu0 0.0
  %2247 = vmatpush.msra.mxu0 0.0
  %2248 = vmatpush.msra.mxu0 0.0
  %2249 = vmatpush.msra.mxu0 0.0
  %2250 = vmatpush.msra.mxu0 0.0
  %2251 = vmatpush.msra.mxu0 0.0
  %2252 = vmatpush.msra.mxu0 0.0
  %2253 = vmatpush.msra.mxu0 0.0
  %2254 = vmatpush.msra.mxu0 %v1602
  %2255 = vmatpush.msra.mxu0 %v1601
  %2256 = vmatpush.msra.mxu0 %v1600
  %2257 = vmatpush.msra.mxu0 %v1599
  %2258 = vmatmul.f32.gmra.mxu0 %v2240
  %v2259 = vpop.f32.mrf.mxu0
  %v2260 = vadd.f32 0.0, %v2259
  %2261 = vdwg.mxu0
  %v2262 = vadd.f32 %v2235, %v2260
  %2264 = vrot.lane.b32.xlu0 %v2234, 32
  %v2265 = vpop.permute.xlu0 %2264
  %v2266 = vsel %vm199, %v2265, 0
  %2268 = vmatpush.msra.mxu0 0.0
  %2269 = vmatpush.msra.mxu0 0.0
  %2270 = vmatpush.msra.mxu0 0.0
  %2271 = vmatpush.msra.mxu0 0.0
  %2272 = vmatpush.msra.mxu0 0.0
  %2273 = vmatpush.msra.mxu0 0.0
  %2274 = vmatpush.msra.mxu0 0.0
  %2275 = vmatpush.msra.mxu0 0.0
  %2276 = vmatpush.msra.mxu0 0.0
  %2277 = vmatpush.msra.mxu0 0.0
  %2278 = vmatpush.msra.mxu0 0.0
  %2279 = vmatpush.msra.mxu0 0.0
  %2280 = vmatpush.msra.mxu0 %v1627
  %2281 = vmatpush.msra.mxu0 %v1626
  %2282 = vmatpush.msra.mxu0 %v1625
  %2283 = vmatpush.msra.mxu0 %v1624
  %2284 = vmatmul.f32.gmra.mxu0 %v2266
  %v2285 = vpop.f32.mrf.mxu0
  %v2286 = vadd.f32 0.0, %v2285
  %2287 = vdwg.mxu0
  %v2288 = vadd.f32 %v2236, %v2286
  %v2289 = vxor.u32 %v2262, 2147483648
  %v2290 = vmul.f32 %v2289, 1.442695
  %v2291 = vpow.pop %v2290
  %v2292 = vadd.f32 %v2291, 1.0
  %v2293 = vrcp.pop %v2292
  %v2294 = vmul.f32 %v2292, %v2293
  %v2295 = vsub.f32 1.0, %v2294
  %v2296 = vmul.f32 %v2293, %v2295
  %v2297 = vadd.f32 %v2293, %v2296
  %vm2298 = vweird.f32 %v2292
  %vm2299 = vweird.f32 %v2293
  %vm2300 = vmor %vm2298, %vm2299
  %v2301 = vsel %vm2300, %v2293, %v2297
  %v2302 = vand.u32 2147483647, %v2292
  %vm2303 = vcmp.eq.f32.partialorder %v2302, 8.507059e+37
  %v2304 = vand.u32 %v2292, 2147483648
  %v2305 = vor.u32 1.1754944e-38, %v2304
  %v2306 = vsel %vm2303, %v2305, %v2301
  %v2307 = vmul.f32 1.0, %v2306
  %v2308 = vtanh.pop %v2262
  %v2309 = vmul.f32 %v2307, %v2191
  %2311 = vrot.lane.b32.xlu0 %v2308, 64
  %v2312 = vpop.permute.xlu0 %2311
  %v2314 = vmul.f32 %v2307, %v2312
  %2316 = vrot.lane.b32.xlu0 %v2314, 32
  %v2317 = vpop.permute.xlu0 %2316
  %v2319 = vadd.f32 %v2309, %v2317
  %v2320 = vtanh.pop %v2319
  %2322 = vrot.lane.b32.xlu0 %v2320, 64
  %v2323 = vpop.permute.xlu0 %2322
  %v2325 = vmul.f32 %v2307, %v2323
  %v2326 = vxor.u32 %v2288, 2147483648
  %v2327 = vmul.f32 %v2326, 1.442695
  %v2328 = vpow.pop %v2327
  %v2329 = vadd.f32 %v2328, 1.0
  %v2330 = vrcp.pop %v2329
  %v2331 = vmul.f32 %v2329, %v2330
  %v2332 = vsub.f32 1.0, %v2331
  %v2333 = vmul.f32 %v2330, %v2332
  %v2334 = vadd.f32 %v2330, %v2333
  %vm2335 = vweird.f32 %v2329
  %vm2336 = vweird.f32 %v2330
  %vm2337 = vmor %vm2335, %vm2336
  %v2338 = vsel %vm2337, %v2330, %v2334
  %v2339 = vand.u32 2147483647, %v2329
  %vm2340 = vcmp.eq.f32.partialorder %v2339, 8.507059e+37
  %v2341 = vand.u32 %v2329, 2147483648
  %v2342 = vor.u32 1.1754944e-38, %v2341
  %v2343 = vsel %vm2340, %v2342, %v2338
  %v2344 = vmul.f32 1.0, %v2343
  %v2345 = vtanh.pop %v2288
  %v2346 = vmul.f32 %v2344, %v2228
  %2348 = vrot.lane.b32.xlu0 %v2345, 64
  %v2349 = vpop.permute.xlu0 %2348
  %v2351 = vmul.f32 %v2344, %v2349
  %2353 = vrot.lane.b32.xlu0 %v2351, 32
  %v2354 = vpop.permute.xlu0 %2353
  %v2356 = vadd.f32 %v2346, %v2354
  %v2357 = vtanh.pop %v2356
  %2359 = vrot.lane.b32.xlu0 %v2357, 64
  %v2360 = vpop.permute.xlu0 %2359
  %v2362 = vmul.f32 %v2344, %v2360
  %v2363 = vld [vmem:[#allocation4 + $0x30] sm:$0xff]
  %v2364 = vld [vmem:[#allocation5 + $0x8] sm:$0xff]
  %2366 = vrot.lane.b32.xlu0 %v2325, 32
  %v2367 = vpop.permute.xlu0 %2366
  %v2368 = vsel %vm199, %v2367, 0
  %2370 = vmatpush.msra.mxu0 0.0
  %2371 = vmatpush.msra.mxu0 0.0
  %2372 = vmatpush.msra.mxu0 0.0
  %2373 = vmatpush.msra.mxu0 0.0
  %2374 = vmatpush.msra.mxu0 0.0
  %2375 = vmatpush.msra.mxu0 0.0
  %2376 = vmatpush.msra.mxu0 0.0
  %2377 = vmatpush.msra.mxu0 0.0
  %2378 = vmatpush.msra.mxu0 0.0
  %2379 = vmatpush.msra.mxu0 0.0
  %2380 = vmatpush.msra.mxu0 0.0
  %2381 = vmatpush.msra.mxu0 0.0
  %2382 = vmatpush.msra.mxu0 %v1602
  %2383 = vmatpush.msra.mxu0 %v1601
  %2384 = vmatpush.msra.mxu0 %v1600
  %2385 = vmatpush.msra.mxu0 %v1599
  %2386 = vmatmul.f32.gmra.mxu0 %v2368
  %v2387 = vpop.f32.mrf.mxu0
  %v2388 = vadd.f32 0.0, %v2387
  %2389 = vdwg.mxu0
  %v2390 = vadd.f32 %v2363, %v2388
  %2392 = vrot.lane.b32.xlu0 %v2362, 32
  %v2393 = vpop.permute.xlu0 %2392
  %v2394 = vsel %vm199, %v2393, 0
  %2396 = vmatpush.msra.mxu0 0.0
  %2397 = vmatpush.msra.mxu0 0.0
  %2398 = vmatpush.msra.mxu0 0.0
  %2399 = vmatpush.msra.mxu0 0.0
  %2400 = vmatpush.msra.mxu0 0.0
  %2401 = vmatpush.msra.mxu0 0.0
  %2402 = vmatpush.msra.mxu0 0.0
  %2403 = vmatpush.msra.mxu0 0.0
  %2404 = vmatpush.msra.mxu0 0.0
  %2405 = vmatpush.msra.mxu0 0.0
  %2406 = vmatpush.msra.mxu0 0.0
  %2407 = vmatpush.msra.mxu0 0.0
  %2408 = vmatpush.msra.mxu0 %v1627
  %2409 = vmatpush.msra.mxu0 %v1626
  %2410 = vmatpush.msra.mxu0 %v1625
  %2411 = vmatpush.msra.mxu0 %v1624
  %2412 = vmatmul.f32.gmra.mxu0 %v2394
  %v2413 = vpop.f32.mrf.mxu0
  %v2414 = vadd.f32 0.0, %v2413
  %2415 = vdwg.mxu0
  %v2416 = vadd.f32 %v2364, %v2414
  %v2417 = vxor.u32 %v2390, 2147483648
  %v2418 = vmul.f32 %v2417, 1.442695
  %v2419 = vpow.pop %v2418
  %v2420 = vadd.f32 %v2419, 1.0
  %v2421 = vrcp.pop %v2420
  %v2422 = vmul.f32 %v2420, %v2421
  %v2423 = vsub.f32 1.0, %v2422
  %v2424 = vmul.f32 %v2421, %v2423
  %v2425 = vadd.f32 %v2421, %v2424
  %vm2426 = vweird.f32 %v2420
  %vm2427 = vweird.f32 %v2421
  %vm2428 = vmor %vm2426, %vm2427
  %v2429 = vsel %vm2428, %v2421, %v2425
  %v2430 = vand.u32 2147483647, %v2420
  %vm2431 = vcmp.eq.f32.partialorder %v2430, 8.507059e+37
  %v2432 = vand.u32 %v2420, 2147483648
  %v2433 = vor.u32 1.1754944e-38, %v2432
  %v2434 = vsel %vm2431, %v2433, %v2429
  %v2435 = vmul.f32 1.0, %v2434
  %v2436 = vtanh.pop %v2390
  %v2437 = vmul.f32 %v2435, %v2319
  %2439 = vrot.lane.b32.xlu0 %v2436, 64
  %v2440 = vpop.permute.xlu0 %2439
  %v2442 = vmul.f32 %v2435, %v2440
  %2444 = vrot.lane.b32.xlu0 %v2442, 32
  %v2445 = vpop.permute.xlu0 %2444
  %v2447 = vadd.f32 %v2437, %v2445
  %v2448 = vtanh.pop %v2447
  %2450 = vrot.lane.b32.xlu0 %v2448, 64
  %v2451 = vpop.permute.xlu0 %2450
  %v2453 = vmul.f32 %v2435, %v2451
  %v2454 = vxor.u32 %v2416, 2147483648
  %v2455 = vmul.f32 %v2454, 1.442695
  %v2456 = vpow.pop %v2455
  %v2457 = vadd.f32 %v2456, 1.0
  %v2458 = vrcp.pop %v2457
  %v2459 = vmul.f32 %v2457, %v2458
  %v2460 = vsub.f32 1.0, %v2459
  %v2461 = vmul.f32 %v2458, %v2460
  %v2462 = vadd.f32 %v2458, %v2461
  %vm2463 = vweird.f32 %v2457
  %vm2464 = vweird.f32 %v2458
  %vm2465 = vmor %vm2463, %vm2464
  %v2466 = vsel %vm2465, %v2458, %v2462
  %v2467 = vand.u32 2147483647, %v2457
  %vm2468 = vcmp.eq.f32.partialorder %v2467, 8.507059e+37
  %v2469 = vand.u32 %v2457, 2147483648
  %v2470 = vor.u32 1.1754944e-38, %v2469
  %v2471 = vsel %vm2468, %v2470, %v2466
  %v2472 = vmul.f32 1.0, %v2471
  %v2473 = vtanh.pop %v2416
  %v2474 = vmul.f32 %v2472, %v2356
  %2476 = vrot.lane.b32.xlu0 %v2473, 64
  %v2477 = vpop.permute.xlu0 %2476
  %v2479 = vmul.f32 %v2472, %v2477
  %2481 = vrot.lane.b32.xlu0 %v2479, 32
  %v2482 = vpop.permute.xlu0 %2481
  %v2484 = vadd.f32 %v2474, %v2482
  %v2485 = vtanh.pop %v2484
  %2487 = vrot.lane.b32.xlu0 %v2485, 64
  %v2488 = vpop.permute.xlu0 %2487
  %v2490 = vmul.f32 %v2472, %v2488
  %v2491 = vld [vmem:[#allocation4 + $0x38] sm:$0xff]
  %v2492 = vld [vmem:[#allocation5] sm:$0xff]
  %2494 = vrot.lane.b32.xlu0 %v2453, 32
  %v2495 = vpop.permute.xlu0 %2494
  %v2496 = vsel %vm199, %v2495, 0
  %2498 = vmatpush.msra.mxu0 0.0
  %2499 = vmatpush.msra.mxu0 0.0
  %2500 = vmatpush.msra.mxu0 0.0
  %2501 = vmatpush.msra.mxu0 0.0
  %2502 = vmatpush.msra.mxu0 0.0
  %2503 = vmatpush.msra.mxu0 0.0
  %2504 = vmatpush.msra.mxu0 0.0
  %2505 = vmatpush.msra.mxu0 0.0
  %2506 = vmatpush.msra.mxu0 0.0
  %2507 = vmatpush.msra.mxu0 0.0
  %2508 = vmatpush.msra.mxu0 0.0
  %2509 = vmatpush.msra.mxu0 0.0
  %2510 = vmatpush.msra.mxu0 %v1602
  %2511 = vmatpush.msra.mxu0 %v1601
  %2512 = vmatpush.msra.mxu0 %v1600
  %2513 = vmatpush.msra.mxu0 %v1599
  %2514 = vmatmul.f32.gmra.mxu0 %v2496
  %v2515 = vpop.f32.mrf.mxu0
  %v2516 = vadd.f32 0.0, %v2515
  %2517 = vdwg.mxu0
  %v2518 = vadd.f32 %v2491, %v2516
  %2520 = vrot.lane.b32.xlu0 %v2490, 32
  %v2521 = vpop.permute.xlu0 %2520
  %v2522 = vsel %vm199, %v2521, 0
  %2524 = vmatpush.msra.mxu0 0.0
  %2525 = vmatpush.msra.mxu0 0.0
  %2526 = vmatpush.msra.mxu0 0.0
  %2527 = vmatpush.msra.mxu0 0.0
  %2528 = vmatpush.msra.mxu0 0.0
  %2529 = vmatpush.msra.mxu0 0.0
  %2530 = vmatpush.msra.mxu0 0.0
  %2531 = vmatpush.msra.mxu0 0.0
  %2532 = vmatpush.msra.mxu0 0.0
  %2533 = vmatpush.msra.mxu0 0.0
  %2534 = vmatpush.msra.mxu0 0.0
  %2535 = vmatpush.msra.mxu0 0.0
  %2536 = vmatpush.msra.mxu0 %v1627
  %2537 = vmatpush.msra.mxu0 %v1626
  %2538 = vmatpush.msra.mxu0 %v1625
  %2539 = vmatpush.msra.mxu0 %v1624
  %2540 = vmatmul.f32.gmra.mxu0 %v2522
  %v2541 = vpop.f32.mrf.mxu0
  %v2542 = vadd.f32 0.0, %v2541
  %2543 = vdwg.mxu0
  %v2544 = vadd.f32 %v2492, %v2542
  %v2545 = vxor.u32 %v2518, 2147483648
  %v2546 = vmul.f32 %v2545, 1.442695
  %v2547 = vpow.pop %v2546
  %v2548 = vadd.f32 %v2547, 1.0
  %v2549 = vrcp.pop %v2548
  %v2550 = vmul.f32 %v2548, %v2549
  %v2551 = vsub.f32 1.0, %v2550
  %v2552 = vmul.f32 %v2549, %v2551
  %v2553 = vadd.f32 %v2549, %v2552
  %vm2554 = vweird.f32 %v2548
  %vm2555 = vweird.f32 %v2549
  %vm2556 = vmor %vm2554, %vm2555
  %v2557 = vsel %vm2556, %v2549, %v2553
  %v2558 = vand.u32 2147483647, %v2548
  %vm2559 = vcmp.eq.f32.partialorder %v2558, 8.507059e+37
  %v2560 = vand.u32 %v2548, 2147483648
  %v2561 = vor.u32 1.1754944e-38, %v2560
  %v2562 = vsel %vm2559, %v2561, %v2557
  %v2563 = vmul.f32 1.0, %v2562
  %v2564 = vtanh.pop %v2518
  %v2565 = vmul.f32 %v2563, %v2447
  %2567 = vrot.lane.b32.xlu0 %v2564, 64
  %v2568 = vpop.permute.xlu0 %2567
  %v2570 = vmul.f32 %v2563, %v2568
  %2572 = vrot.lane.b32.xlu0 %v2570, 32
  %v2573 = vpop.permute.xlu0 %2572
  %v2575 = vadd.f32 %v2565, %v2573
  %v2576 = vtanh.pop %v2575
  %2578 = vrot.lane.b32.xlu0 %v2576, 64
  %v2579 = vpop.permute.xlu0 %2578
  %v2581 = vmul.f32 %v2563, %v2579
  %v2582 = vxor.u32 %v2544, 2147483648
  %v2583 = vmul.f32 %v2582, 1.442695
  %v2584 = vpow.pop %v2583
  %v2585 = vadd.f32 %v2584, 1.0
  %v2586 = vrcp.pop %v2585
  %v2587 = vmul.f32 %v2585, %v2586
  %v2588 = vsub.f32 1.0, %v2587
  %v2589 = vmul.f32 %v2586, %v2588
  %v2590 = vadd.f32 %v2586, %v2589
  %vm2591 = vweird.f32 %v2585
  %vm2592 = vweird.f32 %v2586
  %vm2593 = vmor %vm2591, %vm2592
  %v2594 = vsel %vm2593, %v2586, %v2590
  %v2595 = vand.u32 2147483647, %v2585
  %vm2596 = vcmp.eq.f32.partialorder %v2595, 8.507059e+37
  %v2597 = vand.u32 %v2585, 2147483648
  %v2598 = vor.u32 1.1754944e-38, %v2597
  %v2599 = vsel %vm2596, %v2598, %v2594
  %v2600 = vmul.f32 1.0, %v2599
  %v2601 = vtanh.pop %v2544
  %v2602 = vmul.f32 %v2600, %v2484
  %2604 = vrot.lane.b32.xlu0 %v2601, 64
  %v2605 = vpop.permute.xlu0 %2604
  %v2607 = vmul.f32 %v2600, %v2605
  %2609 = vrot.lane.b32.xlu0 %v2607, 32
  %v2610 = vpop.permute.xlu0 %2609
  %v2612 = vadd.f32 %v2602, %v2610
  %v2613 = vtanh.pop %v2612
  %2615 = vrot.lane.b32.xlu0 %v2613, 64
  %v2616 = vpop.permute.xlu0 %2615
  %v2618 = vmul.f32 %v2600, %v2616
  %v2619 = vld [vmem:[%s13] sm:$0xff]
  %v2620 = vld [vmem:[%s13 + $0x8] sm:$0xff]
  %v2621 = vld [vmem:[%s13 + $0x10] sm:$0xff]
  %v2622 = vld [vmem:[%s13 + $0x18] sm:$0xff]
  %v2623 = vld [vmem:[%s13 + $0x20] sm:$0xff]
  %v2624 = vld [vmem:[%s13 + $0x28] sm:$0xff]
  %v2625 = vld [vmem:[%s13 + $0x30] sm:$0xff]
  %v2626 = vld [vmem:[%s13 + $0x38] sm:$0xff]
  %2628 = vrot.lane.b32.xlu0 %v2618, 32
  %v2629 = vpop.permute.xlu0 %2628
  %v2630 = vsel %vm199, %v2629, 0
  %2632 = vmatpush.msra.mxu0 0.0
  %2633 = vmatpush.msra.mxu0 0.0
  %2634 = vmatpush.msra.mxu0 0.0
  %2635 = vmatpush.msra.mxu0 0.0
  %2636 = vmatpush.msra.mxu0 0.0
  %2637 = vmatpush.msra.mxu0 0.0
  %2638 = vmatpush.msra.mxu0 0.0
  %2639 = vmatpush.msra.mxu0 0.0
  %2640 = vmatpush.msra.mxu0 0.0
  %2641 = vmatpush.msra.mxu0 0.0
  %2642 = vmatpush.msra.mxu0 0.0
  %2643 = vmatpush.msra.mxu0 0.0
  %2644 = vmatpush.msra.mxu0 %v2626
  %2645 = vmatpush.msra.mxu0 %v2625
  %2646 = vmatpush.msra.mxu0 %v2624
  %2647 = vmatpush.msra.mxu0 %v2623
  %2648 = vmatmul.f32.gmra.mxu0 %v2630
  %v2649 = vpop.f32.mrf.mxu0
  %v2650 = vadd.f32 0.0, %v2649
  %2651 = vdwg.mxu0
  %2653 = vrot.lane.b32.xlu0 %v2581, 32
  %v2654 = vpop.permute.xlu0 %2653
  %v2655 = vsel %vm199, %v2654, 0
  %2657 = vmatpush.msra.mxu0 0.0
  %2658 = vmatpush.msra.mxu0 0.0
  %2659 = vmatpush.msra.mxu0 0.0
  %2660 = vmatpush.msra.mxu0 0.0
  %2661 = vmatpush.msra.mxu0 0.0
  %2662 = vmatpush.msra.mxu0 0.0
  %2663 = vmatpush.msra.mxu0 0.0
  %2664 = vmatpush.msra.mxu0 0.0
  %2665 = vmatpush.msra.mxu0 0.0
  %2666 = vmatpush.msra.mxu0 0.0
  %2667 = vmatpush.msra.mxu0 0.0
  %2668 = vmatpush.msra.mxu0 0.0
  %2669 = vmatpush.msra.mxu0 %v2622
  %2670 = vmatpush.msra.mxu0 %v2621
  %2671 = vmatpush.msra.mxu0 %v2620
  %2672 = vmatpush.msra.mxu0 %v2619
  %2673 = vmatmul.f32.gmra.mxu0 %v2655
  %v2674 = vpop.f32.mrf.mxu0
  %v2675 = vadd.f32 %v2650, %v2674
  %2676 = vdwg.mxu0
  %v2677 = vld [vmem:[%s14] sm:$0x1]
  %v2679 = vperm.slane %v2677, 0
  %v2681 = vadd.f32 %v2675, %v2679
  %vm2682 = vcmask 64512
  %2683 = vst.msk [vmem:[%s15] sm:$0xff] %vm2682, %v2681
  // Predicated region
  $region62: #{encoder_forward.1} parent=0 // pred_check
    _
  $region63: #{encoder_forward.1} parent=0 // pred_check_branch
    %2685 = sbr.rel (0) target = $region65
  $region64: #{encoder_forward.1} parent=0 // pred_region
    _
  $region65: #{encoder_forward.1} parent=0 // pred_fallthru
    _
  // Predicated region
  $region66: #{encoder_forward.1} parent=0 // pred_check
    _
  $region67: #{encoder_forward.1} parent=0 // pred_check_branch
    %2687 = sbr.rel (0) target = $region69
  $region68: #{encoder_forward.1} parent=0 // pred_region
    _
  $region69: #{encoder_forward.1} parent=0 // pred_fallthru
    _

</llo_original>
